<compile_context>
chip_gen: v7x
topology: tpu7x:2x2x1
jax: 0.10.0
libtpu: 0.0.40
codegen_flags: <defaults>
</compile_context>

<pallas_src>
import jax
import jax.numpy as jnp
from jax.experimental import pallas as pl
from jax.experimental.pallas import tpu as pltpu


def _round_up(x, m):
    return (x + m - 1) // m * m


def _cout_tiling(cout):
    """(padded cout, cout tile): lane-dense 128 tiles only when cout is large."""
    if cout % 128 == 0:
        return cout, 128
    if cout <= 256:
        return cout, cout                      # single tile, no padded HBM bytes
    cp = _round_up(cout, 128)
    return cp, 128


def _pick_row_tile(Ho, Wo, ck1, ck2, budget_bytes=2 << 20):
    """Output-row band size: keep the biggest per-step bf16 input band ~<= budget."""
    per_row = 2 * max((Wo + 3) * max(ck1, 1), (Wo + 2) * max(ck2, 1))
    tr = budget_bytes // max(per_row, 1)
    tr = int(max(8, min(128, tr)))
    return max(1, min(Ho, tr))


def _make_band_kernel(E, CK, orow, ocol, group, G, mask_cfg):
    """Fused conv (E x E effective taps over channel-folded input) + bias + PReLU.

    Refs per grid step:
      x_ref: (1, orow+E-1, ocol+E-1, CK)  bf16 input band (halo already in the band)
      w_ref: (G, group*CK, tco)           bf16 grouped tap weights
      b_ref, a_ref: (1, tco)              f32 bias / PReLU slopes
      o_ref: (1, orow, ocol, tco)         output band
    """
    taps = [(dr, dc) for dr in range(E) for dc in range(E)]

    def kernel(x_ref, w_ref, b_ref, a_ref, o_ref):
        tco = o_ref.shape[-1]
        P = orow * ocol
        acc = jnp.zeros((P, tco), jnp.float32)
        for gi in range(G):
            grp = taps[gi * group:(gi + 1) * group]
            # Per-tap *ref* slices (never materialize the whole block as one value).
            pieces = [x_ref[0, dr:dr + orow, dc:dc + ocol, :] for dr, dc in grp]
            xc = pieces[0] if len(pieces) == 1 else jnp.concatenate(pieces, axis=-1)
            kdim = len(grp) * CK
            wg = w_ref[gi] if kdim == group * CK else w_ref[gi, :kdim, :]
            acc = acc + jnp.dot(xc.reshape(P, kdim), wg,
                                preferred_element_type=jnp.float32)
        y = acc + b_ref[...]                                  # bias (f32)
        y = jnp.where(y > 0.0, y, a_ref[...] * y)             # per-channel PReLU
        y = y.reshape(orow, ocol, tco)
        if mask_cfg is not None:
            # Layer 1 emits layer 2's halo'd band: zero the pad=1 border and any
            # rows that fall outside the real image.
            TR, R, Hv, Wv = mask_cfg
            r = pl.program_id(0) % R
            ri = jax.lax.broadcasted_iota(jnp.int32, (orow, ocol, 1), 0)
            ci = jax.lax.broadcasted_iota(jnp.int32, (orow, ocol, 1), 1)
            o_row = r * TR - 1 + ri
            o_col = ci - 1
            valid = (o_row >= 0) & (o_row < Hv) & (o_col >= 0) & (o_col < Wv)
            y = jnp.where(valid, y, jnp.zeros_like(y))
        o_ref[...] = y.reshape(o_ref.shape).astype(o_ref.dtype)

    return kernel


def _conv_prelu_banded(x_bands, wg, bias, alpha, *, E, CK, orow, ocol,
                       group, G, tco, cout_pad, mask_cfg, out_dtype):
    NR, inr, inc, ck = x_bands.shape
    assert ck == CK
    kernel = _make_band_kernel(E, CK, orow, ocol, group, G, mask_cfg)

    flops = 2 * NR * orow * ocol * (E * E * CK) * cout_pad
    bytes_accessed = (x_bands.size * x_bands.dtype.itemsize
                      + wg.size * wg.dtype.itemsize
                      + (bias.size + alpha.size) * 4
                      + NR * orow * ocol * cout_pad * jnp.dtype(out_dtype).itemsize)

    return pl.pallas_call(
        kernel,
        out_shape=jax.ShapeDtypeStruct((NR, orow, ocol, cout_pad), out_dtype),
        grid_spec=pltpu.PrefetchScalarGridSpec(
            num_scalar_prefetch=0,
            grid=(NR, cout_pad // tco),
            in_specs=[
                # Input band: constant along the (inner) Cout-tile axis -> fetched
                # once per band and stays resident across output-channel tiles.
                pl.BlockSpec((1, inr, inc, CK), lambda nr, j: (nr, 0, 0, 0)),
                pl.BlockSpec((G, group * CK, tco), lambda nr, j: (0, 0, j)),
                pl.BlockSpec((1, tco), lambda nr, j: (0, j)),
                pl.BlockSpec((1, tco), lambda nr, j: (0, j)),
            ],
            out_specs=pl.BlockSpec((1, orow, ocol, tco), lambda nr, j: (nr, 0, 0, j)),
        ),
        compiler_params=pltpu.CompilerParams(
            dimension_semantics=("parallel", "parallel"),
            vmem_limit_bytes=32 * 1024 * 1024,          # safe headroom on v7x (64 MiB)
        ),
        cost_estimate=pl.CostEstimate(flops=flops, transcendentals=0,
                                      bytes_accessed=bytes_accessed),
    )(x_bands, wg, bias, alpha)


def _prep_banded_input(x_nhwc, s, TR, R, Ho, Wo):
    """bf16 cast + conv pad + space-to-channel phase fold + overlapping row-band gather.

    Only ever applied to the small in_planes-channel tensor (one fused XLA pass).
    Returns (N*R, TR+E+1, Wo+E+1, s*s*Cin) with E = 2//s + 1.
    """
    N, H, W, Cin = x_nhwc.shape
    E = 2 // s + 1
    inr = TR + E + 1                    # band rows (covers the +/-1 output halo)
    Qh = R * TR + E + 1                 # total folded rows
    Qw = Wo + E + 1                     # total folded cols (= band cols, no W banding)
    U, V = s * Qh, s * Qw
    xb = x_nhwc.astype(jnp.bfloat16)
    xb = jnp.pad(xb, ((0, 0),
                      (s + 1, U - (s + 1) - H),
                      (s + 1, V - (s + 1) - W),
                      (0, 0)))
    # Fold the s x s spatial phases into channels: (N, U, V, C) -> (N, Qh, Qw, s*s*C).
    xb = xb.reshape(N, Qh, s, Qw, s, Cin).transpose(0, 1, 3, 2, 4, 5)
    xb = xb.reshape(N, Qh, Qw, s * s * Cin)
    # Overlapping row-band gather (halo ~ (E+1)/TR duplicated bytes).
    idx = jnp.arange(R)[:, None] * TR + jnp.arange(inr)[None, :]
    xb = jnp.take(xb, idx, axis=1)                      # (N, R, inr, Qw, s*s*Cin)
    return xb.reshape(N * R, inr, Qw, s * s * Cin)


def _prep_weights(w_oihw, s, cin_pad, cout_pad, group, G):
    """(Cout, Cin, 3, 3) -> grouped (G, group * s*s*cin_pad, cout_pad) bf16 tap matrices."""
    Cout, Cin, KH, KW = w_oihw.shape
    assert KH == 3 and KW == 3 and Cin <= cin_pad and Cout <= cout_pad
    E = 2 // s + 1
    CK = s * s * cin_pad
    w = jnp.zeros((E, E, s, s, cin_pad, cout_pad), jnp.float32)
    for kh in range(KH):
        for kw in range(KW):
            dr, pr = kh // s, kh % s
            dc, pc = kw // s, kw % s
            w = w.at[dr, dc, pr, pc, :Cin, :Cout].set(
                jnp.transpose(w_oihw[:, :, kh, kw].astype(jnp.float32)))
    w = w.reshape(E * E, CK, cout_pad)
    w = jnp.pad(w, ((0, G * group - E * E), (0, 0), (0, 0)))
    w = w.reshape(G, group, CK, cout_pad).reshape(G, group * CK, cout_pad)
    return w.astype(jnp.bfloat16)


def _prep_vec(v, cout_pad):
    return jnp.pad(v.astype(jnp.float32), (0, cout_pad - v.shape[0])).reshape(1, cout_pad)


def conv2_forward(x_nchw, params, stride=2):
    """Conv2.forward: [conv3x3(stride=s)+PReLU] -> [conv3x3(stride=1)+PReLU], NCHW f32."""
    s = int(stride)
    N, Cin, H, W = x_nchw.shape
    w1, b1, a1 = params["w1"], params["b1"], params["a1"]
    w2, b2, a2 = params["w2"], params["b2"], params["a2"]
    Cout = w1.shape[0]
    assert w1.shape[1] == Cin and w2.shape[0] == Cout and w2.shape[1] == Cout

    Ho = (H - 1) // s + 1                      # conv(k=3, pad=1, stride=s) output
    Wo = (W - 1) // s + 1
    E1 = 2 // s + 1
    CK1 = s * s * Cin                          # layer-1 folded (space-to-channel) K
    Cmid, tco1 = _cout_tiling(Cout)            # intermediate channels / layer-1 tile
    Cfin, tco2 = _cout_tiling(Cout)            # layer-2 output channels / tile
    CK2 = Cmid
    TR = _pick_row_tile(Ho, Wo, CK1, CK2)      # output rows per band
    R = -(-Ho // TR)

    # Pair taps (K=256) when the folded channel count is exactly 128: fills the
    # 256-deep v6e/v7x MXU; on v5e the 128-deep MXU just takes two passes (harmless).
    g1 = 2 if CK1 == 128 else 1
    G1 = -(-(E1 * E1) // g1)
    g2 = 2 if CK2 == 128 else 1
    G2 = -(-9 // g2)

    # ---- layer 1: stride=s conv + PReLU, emits layer-2's halo'd input bands -------
    x = jnp.transpose(x_nchw, (0, 2, 3, 1))                 # NCHW -> NHWC (once)
    xb = _prep_banded_input(x, s, TR, R, Ho, Wo)            # (N*R, TR+E1+1, Wo+E1+1, CK1)
    w1g = _prep_weights(w1, s, Cin, Cmid, g1, G1)
    mid = _conv_prelu_banded(
        xb, w1g, _prep_vec(b1, Cmid), _prep_vec(a1, Cmid),
        E=E1, CK=CK1, orow=TR + 2, ocol=Wo + 2, group=g1, G=G1,
        tco=tco1, cout_pad=Cmid,
        mask_cfg=(TR, R, Ho, Wo),              # zero the pad=1 halo / off-image rows
        out_dtype=jnp.bfloat16)

    # ---- layer 2: stride=1 conv + PReLU, directly on the banded intermediate ------
    # (no XLA-side jnp.pad / relayout of the wide intermediate).
    w2g = _prep_weights(w2, 1, Cmid, Cfin, g2, G2)
    out = _conv_prelu_banded(
        mid, w2g, _prep_vec(b2, Cfin), _prep_vec(a2, Cfin),
        E=3, CK=CK2, orow=TR, ocol=Wo, group=g2, G=G2,
        tco=tco2, cout_pad=Cfin,
        mask_cfg=None, out_dtype=jnp.float32)

    # TODO(synk): fold this final row-trim / NHWC->NCHW relayout into the layer-2
    # stores if the consumer can't take NHWC directly (it is one fused XLA copy).
    out = out.reshape(N, R * TR, Wo, Cfin)[:, :Ho, :, :Cout]
    return jnp.transpose(out, (0, 3, 1, 2))                 # NHWC -> NCHW (once)


def init_params(key, in_planes, out_planes):
    k1, k2, k3, k4 = jax.random.split(key, 4)
    return {
        "w1": 0.1 * jax.random.normal(k1, (out_planes, in_planes, 3, 3), jnp.float32),
        "b1": 0.05 * jax.random.normal(k2, (out_planes,), jnp.float32),
        "a1": jnp.full((out_planes,), 0.25, jnp.float32),      # PReLU default init
        "w2": 0.1 * jax.random.normal(k3, (out_planes, out_planes, 3, 3), jnp.float32),
        "b2": 0.05 * jax.random.normal(k4, (out_planes,), jnp.float32),
        "a2": jnp.full((out_planes,), 0.25, jnp.float32),
    }


def _reference_forward(x_nchw, params, stride=2):
    """Pure-JAX reference (lax conv) mirroring nn.Conv2d + nn.PReLU, NCHW, f32."""
    def block(x, w, b, a, s):
        y = jax.lax.conv_general_dilated(
            x, w, window_strides=(s, s), padding=((1, 1), (1, 1)),
            dimension_numbers=("NCHW", "OIHW", "NCHW"))
        y = y + b[None, :, None, None]
        return jnp.where(y > 0, y, a[None, :, None, None] * y)
    y = block(x_nchw, params["w1"], params["b1"], params["a1"], stride)
    y = block(y, params["w2"], params["b2"], params["a2"], 1)
    return y


if __name__ == "__main__":
    key = jax.random.PRNGKey(0)
    kx, kp = jax.random.split(key)

    in_planes, out_planes, stride = 4, 8, 2
    x = jax.random.normal(kx, (2, in_planes, 16, 16), jnp.float32)   # NCHW input
    params = init_params(kp, in_planes, out_planes)

    fwd = jax.jit(conv2_forward, static_argnames=("stride",))
    out = jax.block_until_ready(fwd(x, params, stride=stride))

    ref = jax.block_until_ready(_reference_forward(x, params, stride=stride))
    assert out.shape == ref.shape == (2, out_planes, 8, 8), out.shape
    max_err = float(jnp.max(jnp.abs(out - ref)))
    # bf16 inputs/weights/intermediate with f32 accumulation -> loose tolerance.
    assert max_err < 5e-2, f"mismatch vs reference: max abs err = {max_err}"

    print("KERNEL_OK")
</pallas_src>

<mosaic_0001>
module attributes {stable_mosaic.version = 11 : i64} {
  func.func @kernel(%arg0: i32, %arg1: i32, %arg2: memref<1x11x11x16xbf16, #tpu.memory_space<vmem>>, %arg3: memref<4x16x8xbf16, #tpu.memory_space<vmem>>, %arg4: memref<1x8xf32, #tpu.memory_space<vmem>>, %arg5: memref<1x8xf32, #tpu.memory_space<vmem>>, %arg6: memref<1x10x10x8xbf16, #tpu.memory_space<vmem>>) attributes {dimension_semantics = [#tpu.dimension_semantics<parallel>, #tpu.dimension_semantics<parallel>], iteration_bounds = array<i64: 2, 1>, scalar_prefetch = 0 : i64, scratch_operands = 0 : i64, tpu.core_type = #tpu.core_type<tc>, window_params = [{transform_indices = @transform_0, window_bounds = array<i64: 1, 11, 11, 16>}, {transform_indices = @transform_1, window_bounds = array<i64: 4, 16, 8>}, {transform_indices = @transform_2, window_bounds = array<i64: 1, 8>}, {transform_indices = @transform_3, window_bounds = array<i64: 1, 8>}, {transform_indices = @transform_4, window_bounds = array<i64: 1, 10, 10, 8>}]} {
    %cst = arith.constant 0.000000e+00 : f32
    %0 = vector.broadcast %cst : f32 to vector<100x8xf32>
    %c0 = arith.constant 0 : index
    %c0_0 = arith.constant 0 : index
    %c0_1 = arith.constant 0 : index
    %c0_2 = arith.constant 0 : index
    %1 = vector.load %arg2[%c0, %c0_0, %c0_1, %c0_2] : memref<1x11x11x16xbf16, #tpu.memory_space<vmem>>, vector<1x10x10x16xbf16>
    %2 = vector.shape_cast %1 : vector<1x10x10x16xbf16> to vector<10x10x16xbf16>
    %c0_3 = arith.constant 0 : index
    %c0_4 = arith.constant 0 : index
    %c0_5 = arith.constant 0 : index
    %3 = vector.load %arg3[%c0_3, %c0_4, %c0_5] : memref<4x16x8xbf16, #tpu.memory_space<vmem>>, vector<1x16x8xbf16>
    %4 = vector.shape_cast %3 : vector<1x16x8xbf16> to vector<16x8xbf16>
    %5 = vector.shape_cast %2 : vector<10x10x16xbf16> to vector<100x16xbf16>
    %cst_6 = arith.constant dense<0.000000e+00> : vector<100x8xf32>
    %6 = tpu.matmul %5, %4, %cst_6 {dimension_numbers = #tpu.dot_dimension_numbers<[1], [0], [0], [1], [0, 0, 1, 1], [], []>} : vector<100x16xbf16>, vector<16x8xbf16>, vector<100x8xf32> -> vector<100x8xf32>
    %7 = arith.addf %0, %6 : vector<100x8xf32>
    %c0_7 = arith.constant 0 : index
    %c0_8 = arith.constant 0 : index
    %c1 = arith.constant 1 : index
    %c0_9 = arith.constant 0 : index
    %8 = vector.load %arg2[%c0_7, %c0_8, %c1, %c0_9] : memref<1x11x11x16xbf16, #tpu.memory_space<vmem>>, vector<1x10x10x16xbf16>
    %9 = vector.shape_cast %8 : vector<1x10x10x16xbf16> to vector<10x10x16xbf16>
    %c1_10 = arith.constant 1 : index
    %c0_11 = arith.constant 0 : index
    %c0_12 = arith.constant 0 : index
    %10 = vector.load %arg3[%c1_10, %c0_11, %c0_12] : memref<4x16x8xbf16, #tpu.memory_space<vmem>>, vector<1x16x8xbf16>
    %11 = vector.shape_cast %10 : vector<1x16x8xbf16> to vector<16x8xbf16>
    %12 = vector.shape_cast %9 : vector<10x10x16xbf16> to vector<100x16xbf16>
    %cst_13 = arith.constant dense<0.000000e+00> : vector<100x8xf32>
    %13 = tpu.matmul %12, %11, %cst_13 {dimension_numbers = #tpu.dot_dimension_numbers<[1], [0], [0], [1], [0, 0, 1, 1], [], []>} : vector<100x16xbf16>, vector<16x8xbf16>, vector<100x8xf32> -> vector<100x8xf32>
    %14 = arith.addf %7, %13 : vector<100x8xf32>
    %c0_14 = arith.constant 0 : index
    %c1_15 = arith.constant 1 : index
    %c0_16 = arith.constant 0 : index
    %c0_17 = arith.constant 0 : index
    %15 = vector.load %arg2[%c0_14, %c1_15, %c0_16, %c0_17] : memref<1x11x11x16xbf16, #tpu.memory_space<vmem>>, vector<1x10x10x16xbf16>
    %16 = vector.shape_cast %15 : vector<1x10x10x16xbf16> to vector<10x10x16xbf16>
    %c2 = arith.constant 2 : index
    %c0_18 = arith.constant 0 : index
    %c0_19 = arith.constant 0 : index
    %17 = vector.load %arg3[%c2, %c0_18, %c0_19] : memref<4x16x8xbf16, #tpu.memory_space<vmem>>, vector<1x16x8xbf16>
    %18 = vector.shape_cast %17 : vector<1x16x8xbf16> to vector<16x8xbf16>
    %19 = vector.shape_cast %16 : vector<10x10x16xbf16> to vector<100x16xbf16>
    %cst_20 = arith.constant dense<0.000000e+00> : vector<100x8xf32>
    %20 = tpu.matmul %19, %18, %cst_20 {dimension_numbers = #tpu.dot_dimension_numbers<[1], [0], [0], [1], [0, 0, 1, 1], [], []>} : vector<100x16xbf16>, vector<16x8xbf16>, vector<100x8xf32> -> vector<100x8xf32>
    %21 = arith.addf %14, %20 : vector<100x8xf32>
    %c0_21 = arith.constant 0 : index
    %c1_22 = arith.constant 1 : index
    %c1_23 = arith.constant 1 : index
    %c0_24 = arith.constant 0 : index
    %22 = vector.load %arg2[%c0_21, %c1_22, %c1_23, %c0_24] : memref<1x11x11x16xbf16, #tpu.memory_space<vmem>>, vector<1x10x10x16xbf16>
    %23 = vector.shape_cast %22 : vector<1x10x10x16xbf16> to vector<10x10x16xbf16>
    %c3 = arith.constant 3 : index
    %c0_25 = arith.constant 0 : index
    %c0_26 = arith.constant 0 : index
    %24 = vector.load %arg3[%c3, %c0_25, %c0_26] : memref<4x16x8xbf16, #tpu.memory_space<vmem>>, vector<1x16x8xbf16>
    %25 = vector.shape_cast %24 : vector<1x16x8xbf16> to vector<16x8xbf16>
    %26 = vector.shape_cast %23 : vector<10x10x16xbf16> to vector<100x16xbf16>
    %cst_27 = arith.constant dense<0.000000e+00> : vector<100x8xf32>
    %27 = tpu.matmul %26, %25, %cst_27 {dimension_numbers = #tpu.dot_dimension_numbers<[1], [0], [0], [1], [0, 0, 1, 1], [], []>} : vector<100x16xbf16>, vector<16x8xbf16>, vector<100x8xf32> -> vector<100x8xf32>
    %28 = arith.addf %21, %27 : vector<100x8xf32>
    %c0_28 = arith.constant 0 : index
    %c0_29 = arith.constant 0 : index
    %29 = vector.load %arg4[%c0_28, %c0_29] : memref<1x8xf32, #tpu.memory_space<vmem>>, vector<1x8xf32>
    %30 = vector.broadcast %29 : vector<1x8xf32> to vector<100x8xf32>
    %31 = arith.addf %28, %30 : vector<100x8xf32>
    %cst_30 = arith.constant 0.000000e+00 : f32
    %32 = vector.broadcast %cst_30 : f32 to vector<100x8xf32>
    %33 = arith.cmpf ogt, %31, %32 : vector<100x8xf32>
    %c0_31 = arith.constant 0 : index
    %c0_32 = arith.constant 0 : index
    %34 = vector.load %arg5[%c0_31, %c0_32] : memref<1x8xf32, #tpu.memory_space<vmem>>, vector<1x8xf32>
    %35 = vector.broadcast %34 : vector<1x8xf32> to vector<100x8xf32>
    %36 = arith.mulf %35, %31 : vector<100x8xf32>
    %37 = arith.select %33, %31, %36 : vector<100x8xi1>, vector<100x8xf32>
    %38 = vector.shape_cast %37 : vector<100x8xf32> to vector<10x10x8xf32>
    %c1_i32 = arith.constant 1 : i32
    %c0_i32 = arith.constant 0 : i32
    %39 = arith.cmpi eq, %c1_i32, %c0_i32 : i32
    %c1_i32_33 = arith.constant 1 : i32
    %40 = arith.select %39, %c1_i32_33, %c1_i32 : i32
    %41 = arith.remsi %arg0, %40 : i32
    %c0_i32_34 = arith.constant 0 : i32
    %42 = arith.cmpi ne, %41, %c0_i32_34 : i32
    %c0_i32_35 = arith.constant 0 : i32
    %43 = arith.cmpi slt, %41, %c0_i32_35 : i32
    %c0_i32_36 = arith.constant 0 : i32
    %44 = arith.cmpi slt, %40, %c0_i32_36 : i32
    %45 = arith.xori %43, %44 : i1
    %46 = arith.andi %45, %42 : i1
    %47 = arith.addi %41, %40 : i32
    %48 = arith.select %46, %47, %41 : i32
    %49 = tpu.iota {dimensions = array<i32: 0>} : vector<10x10x1xi32>
    %50 = tpu.iota {dimensions = array<i32: 1>} : vector<10x10x1xi32>
    %c8_i32 = arith.constant 8 : i32
    %51 = arith.muli %48, %c8_i32 : i32
    %c1_i32_37 = arith.constant 1 : i32
    %52 = arith.subi %51, %c1_i32_37 : i32
    %53 = vector.broadcast %52 : i32 to vector<10x10x1xi32>
    %54 = arith.addi %53, %49 : vector<10x10x1xi32>
    %c1_i32_38 = arith.constant 1 : i32
    %55 = vector.broadcast %c1_i32_38 : i32 to vector<10x10x1xi32>
    %56 = arith.subi %50, %55 : vector<10x10x1xi32>
    %c0_i32_39 = arith.constant 0 : i32
    %57 = vector.broadcast %c0_i32_39 : i32 to vector<10x10x1xi32>
    %58 = arith.cmpi sge, %54, %57 : vector<10x10x1xi32>
    %c8_i32_40 = arith.constant 8 : i32
    %59 = vector.broadcast %c8_i32_40 : i32 to vector<10x10x1xi32>
    %60 = arith.cmpi slt, %54, %59 : vector<10x10x1xi32>
    %61 = arith.andi %58, %60 : vector<10x10x1xi1>
    %c0_i32_41 = arith.constant 0 : i32
    %62 = vector.broadcast %c0_i32_41 : i32 to vector<10x10x1xi32>
    %63 = arith.cmpi sge, %56, %62 : vector<10x10x1xi32>
    %64 = arith.andi %61, %63 : vector<10x10x1xi1>
    %c8_i32_42 = arith.constant 8 : i32
    %65 = vector.broadcast %c8_i32_42 : i32 to vector<10x10x1xi32>
    %66 = arith.cmpi slt, %56, %65 : vector<10x10x1xi32>
    %67 = arith.andi %64, %66 : vector<10x10x1xi1>
    %cst_43 = arith.constant 0.000000e+00 : f32
    %68 = vector.broadcast %cst_43 : f32 to vector<10x10x8xf32>
    %69 = vector.shape_cast %67 : vector<10x10x1xi1> to vector<10x10x1xi1>
    %70 = vector.broadcast %69 : vector<10x10x1xi1> to vector<10x10x8xi1>
    %71 = arith.select %70, %38, %68 : vector<10x10x8xi1>, vector<10x10x8xf32>
    %72 = vector.shape_cast %71 : vector<10x10x8xf32> to vector<1x10x10x8xf32>
    %73 = arith.truncf %72 : vector<1x10x10x8xf32> to vector<1x10x10x8xbf16>
    %c0_44 = arith.constant 0 : index
    %c0_45 = arith.constant 0 : index
    %c0_46 = arith.constant 0 : index
    %c0_47 = arith.constant 0 : index
    %74 = vector.load %arg6[%c0_44, %c0_45, %c0_46, %c0_47] : memref<1x10x10x8xbf16, #tpu.memory_space<vmem>>, vector<1x10x10x8xbf16>
    tpu.vector_store %arg6[%c0_44, %c0_45, %c0_46, %c0_47], %73 {strides = array<i32>} : memref<1x10x10x8xbf16, #tpu.memory_space<vmem>>, vector<1x10x10x8xbf16>,
    return
  }
  func.func @transform_0(%arg0: i32, %arg1: i32) -> (i32, i32, i32, i32) {
    %c0_i32 = arith.constant 0 : i32
    %c0_i32_0 = arith.constant 0 : i32
    %c0_i32_1 = arith.constant 0 : i32
    %c0_i32_2 = arith.constant 0 : i32
    return %arg0, %c0_i32, %c0_i32_0, %c0_i32_1 : i32, i32, i32, i32
  }
  func.func @transform_1(%arg0: i32, %arg1: i32) -> (i32, i32, i32) {
    %c0_i32 = arith.constant 0 : i32
    %c0_i32_0 = arith.constant 0 : i32
    %c0_i32_1 = arith.constant 0 : i32
    return %c0_i32, %c0_i32_0, %arg1 : i32, i32, i32
  }
  func.func @transform_2(%arg0: i32, %arg1: i32) -> (i32, i32) {
    %c0_i32 = arith.constant 0 : i32
    %c0_i32_0 = arith.constant 0 : i32
    return %c0_i32, %arg1 : i32, i32
  }
  func.func @transform_3(%arg0: i32, %arg1: i32) -> (i32, i32) {
    %c0_i32 = arith.constant 0 : i32
    %c0_i32_0 = arith.constant 0 : i32
    return %c0_i32, %arg1 : i32, i32
  }
  func.func @transform_4(%arg0: i32, %arg1: i32) -> (i32, i32, i32, i32) {
    %c0_i32 = arith.constant 0 : i32
    %c0_i32_0 = arith.constant 0 : i32
    %c0_i32_1 = arith.constant 0 : i32
    return %arg0, %c0_i32, %c0_i32_0, %arg1 : i32, i32, i32, i32
  }
}

module attributes {stable_mosaic.version = 11 : i64} {
  func.func @kernel(%arg0: i32, %arg1: i32, %arg2: memref<1x10x10x8xbf16, #tpu.memory_space<vmem>>, %arg3: memref<9x8x8xbf16, #tpu.memory_space<vmem>>, %arg4: memref<1x8xf32, #tpu.memory_space<vmem>>, %arg5: memref<1x8xf32, #tpu.memory_space<vmem>>, %arg6: memref<1x8x8x8xf32, #tpu.memory_space<vmem>>) attributes {dimension_semantics = [#tpu.dimension_semantics<parallel>, #tpu.dimension_semantics<parallel>], iteration_bounds = array<i64: 2, 1>, scalar_prefetch = 0 : i64, scratch_operands = 0 : i64, tpu.core_type = #tpu.core_type<tc>, window_params = [{transform_indices = @transform_0, window_bounds = array<i64: 1, 10, 10, 8>}, {transform_indices = @transform_1, window_bounds = array<i64: 9, 8, 8>}, {transform_indices = @transform_2, window_bounds = array<i64: 1, 8>}, {transform_indices = @transform_3, window_bounds = array<i64: 1, 8>}, {transform_indices = @transform_4, window_bounds = array<i64: 1, 8, 8, 8>}]} {
    %cst = arith.constant 0.000000e+00 : f32
    %0 = vector.broadcast %cst : f32 to vector<64x8xf32>
    %c0 = arith.constant 0 : index
    %c0_0 = arith.constant 0 : index
    %c0_1 = arith.constant 0 : index
    %c0_2 = arith.constant 0 : index
    %1 = vector.load %arg2[%c0, %c0_0, %c0_1, %c0_2] : memref<1x10x10x8xbf16, #tpu.memory_space<vmem>>, vector<1x8x8x8xbf16>
    %2 = vector.shape_cast %1 : vector<1x8x8x8xbf16> to vector<8x8x8xbf16>
    %c0_3 = arith.constant 0 : index
    %c0_4 = arith.constant 0 : index
    %c0_5 = arith.constant 0 : index
    %3 = vector.load %arg3[%c0_3, %c0_4, %c0_5] : memref<9x8x8xbf16, #tpu.memory_space<vmem>>, vector<1x8x8xbf16>
    %4 = vector.shape_cast %3 : vector<1x8x8xbf16> to vector<8x8xbf16>
    %5 = vector.shape_cast %2 : vector<8x8x8xbf16> to vector<64x8xbf16>
    %cst_6 = arith.constant dense<0.000000e+00> : vector<64x8xf32>
    %6 = tpu.matmul %5, %4, %cst_6 {dimension_numbers = #tpu.dot_dimension_numbers<[1], [0], [0], [1], [0, 0, 1, 1], [], []>} : vector<64x8xbf16>, vector<8x8xbf16>, vector<64x8xf32> -> vector<64x8xf32>
    %7 = arith.addf %0, %6 : vector<64x8xf32>
    %c0_7 = arith.constant 0 : index
    %c0_8 = arith.constant 0 : index
    %c1 = arith.constant 1 : index
    %c0_9 = arith.constant 0 : index
    %8 = vector.load %arg2[%c0_7, %c0_8, %c1, %c0_9] : memref<1x10x10x8xbf16, #tpu.memory_space<vmem>>, vector<1x8x8x8xbf16>
    %9 = vector.shape_cast %8 : vector<1x8x8x8xbf16> to vector<8x8x8xbf16>
    %c1_10 = arith.constant 1 : index
    %c0_11 = arith.constant 0 : index
    %c0_12 = arith.constant 0 : index
    %10 = vector.load %arg3[%c1_10, %c0_11, %c0_12] : memref<9x8x8xbf16, #tpu.memory_space<vmem>>, vector<1x8x8xbf16>
    %11 = vector.shape_cast %10 : vector<1x8x8xbf16> to vector<8x8xbf16>
    %12 = vector.shape_cast %9 : vector<8x8x8xbf16> to vector<64x8xbf16>
    %cst_13 = arith.constant dense<0.000000e+00> : vector<64x8xf32>
    %13 = tpu.matmul %12, %11, %cst_13 {dimension_numbers = #tpu.dot_dimension_numbers<[1], [0], [0], [1], [0, 0, 1, 1], [], []>} : vector<64x8xbf16>, vector<8x8xbf16>, vector<64x8xf32> -> vector<64x8xf32>
    %14 = arith.addf %7, %13 : vector<64x8xf32>
    %c0_14 = arith.constant 0 : index
    %c0_15 = arith.constant 0 : index
    %c2 = arith.constant 2 : index
    %c0_16 = arith.constant 0 : index
    %15 = vector.load %arg2[%c0_14, %c0_15, %c2, %c0_16] : memref<1x10x10x8xbf16, #tpu.memory_space<vmem>>, vector<1x8x8x8xbf16>
    %16 = vector.shape_cast %15 : vector<1x8x8x8xbf16> to vector<8x8x8xbf16>
    %c2_17 = arith.constant 2 : index
    %c0_18 = arith.constant 0 : index
    %c0_19 = arith.constant 0 : index
    %17 = vector.load %arg3[%c2_17, %c0_18, %c0_19] : memref<9x8x8xbf16, #tpu.memory_space<vmem>>, vector<1x8x8xbf16>
    %18 = vector.shape_cast %17 : vector<1x8x8xbf16> to vector<8x8xbf16>
    %19 = vector.shape_cast %16 : vector<8x8x8xbf16> to vector<64x8xbf16>
    %cst_20 = arith.constant dense<0.000000e+00> : vector<64x8xf32>
    %20 = tpu.matmul %19, %18, %cst_20 {dimension_numbers = #tpu.dot_dimension_numbers<[1], [0], [0], [1], [0, 0, 1, 1], [], []>} : vector<64x8xbf16>, vector<8x8xbf16>, vector<64x8xf32> -> vector<64x8xf32>
    %21 = arith.addf %14, %20 : vector<64x8xf32>
    %c0_21 = arith.constant 0 : index
    %c1_22 = arith.constant 1 : index
    %c0_23 = arith.constant 0 : index
    %c0_24 = arith.constant 0 : index
    %22 = vector.load %arg2[%c0_21, %c1_22, %c0_23, %c0_24] : memref<1x10x10x8xbf16, #tpu.memory_space<vmem>>, vector<1x8x8x8xbf16>
    %23 = vector.shape_cast %22 : vector<1x8x8x8xbf16> to vector<8x8x8xbf16>
    %c3 = arith.constant 3 : index
    %c0_25 = arith.constant 0 : index
    %c0_26 = arith.constant 0 : index
    %24 = vector.load %arg3[%c3, %c0_25, %c0_26] : memref<9x8x8xbf16, #tpu.memory_space<vmem>>, vector<1x8x8xbf16>
    %25 = vector.shape_cast %24 : vector<1x8x8xbf16> to vector<8x8xbf16>
    %26 = vector.shape_cast %23 : vector<8x8x8xbf16> to vector<64x8xbf16>
    %cst_27 = arith.constant dense<0.000000e+00> : vector<64x8xf32>
    %27 = tpu.matmul %26, %25, %cst_27 {dimension_numbers = #tpu.dot_dimension_numbers<[1], [0], [0], [1], [0, 0, 1, 1], [], []>} : vector<64x8xbf16>, vector<8x8xbf16>, vector<64x8xf32> -> vector<64x8xf32>
    %28 = arith.addf %21, %27 : vector<64x8xf32>
    %c0_28 = arith.constant 0 : index
    %c1_29 = arith.constant 1 : index
    %c1_30 = arith.constant 1 : index
    %c0_31 = arith.constant 0 : index
    %29 = vector.load %arg2[%c0_28, %c1_29, %c1_30, %c0_31] : memref<1x10x10x8xbf16, #tpu.memory_space<vmem>>, vector<1x8x8x8xbf16>
    %30 = vector.shape_cast %29 : vector<1x8x8x8xbf16> to vector<8x8x8xbf16>
    %c4 = arith.constant 4 : index
    %c0_32 = arith.constant 0 : index
    %c0_33 = arith.constant 0 : index
    %31 = vector.load %arg3[%c4, %c0_32, %c0_33] : memref<9x8x8xbf16, #tpu.memory_space<vmem>>, vector<1x8x8xbf16>
    %32 = vector.shape_cast %31 : vector<1x8x8xbf16> to vector<8x8xbf16>
    %33 = vector.shape_cast %30 : vector<8x8x8xbf16> to vector<64x8xbf16>
    %cst_34 = arith.constant dense<0.000000e+00> : vector<64x8xf32>
    %34 = tpu.matmul %33, %32, %cst_34 {dimension_numbers = #tpu.dot_dimension_numbers<[1], [0], [0], [1], [0, 0, 1, 1], [], []>} : vector<64x8xbf16>, vector<8x8xbf16>, vector<64x8xf32> -> vector<64x8xf32>
    %35 = arith.addf %28, %34 : vector<64x8xf32>
    %c0_35 = arith.constant 0 : index
    %c1_36 = arith.constant 1 : index
    %c2_37 = arith.constant 2 : index
    %c0_38 = arith.constant 0 : index
    %36 = vector.load %arg2[%c0_35, %c1_36, %c2_37, %c0_38] : memref<1x10x10x8xbf16, #tpu.memory_space<vmem>>, vector<1x8x8x8xbf16>
    %37 = vector.shape_cast %36 : vector<1x8x8x8xbf16> to vector<8x8x8xbf16>
    %c5 = arith.constant 5 : index
    %c0_39 = arith.constant 0 : index
    %c0_40 = arith.constant 0 : index
    %38 = vector.load %arg3[%c5, %c0_39, %c0_40] : memref<9x8x8xbf16, #tpu.memory_space<vmem>>, vector<1x8x8xbf16>
    %39 = vector.shape_cast %38 : vector<1x8x8xbf16> to vector<8x8xbf16>
    %40 = vector.shape_cast %37 : vector<8x8x8xbf16> to vector<64x8xbf16>
    %cst_41 = arith.constant dense<0.000000e+00> : vector<64x8xf32>
    %41 = tpu.matmul %40, %39, %cst_41 {dimension_numbers = #tpu.dot_dimension_numbers<[1], [0], [0], [1], [0, 0, 1, 1], [], []>} : vector<64x8xbf16>, vector<8x8xbf16>, vector<64x8xf32> -> vector<64x8xf32>
    %42 = arith.addf %35, %41 : vector<64x8xf32>
    %c0_42 = arith.constant 0 : index
    %c2_43 = arith.constant 2 : index
    %c0_44 = arith.constant 0 : index
    %c0_45 = arith.constant 0 : index
    %43 = vector.load %arg2[%c0_42, %c2_43, %c0_44, %c0_45] : memref<1x10x10x8xbf16, #tpu.memory_space<vmem>>, vector<1x8x8x8xbf16>
    %44 = vector.shape_cast %43 : vector<1x8x8x8xbf16> to vector<8x8x8xbf16>
    %c6 = arith.constant 6 : index
    %c0_46 = arith.constant 0 : index
    %c0_47 = arith.constant 0 : index
    %45 = vector.load %arg3[%c6, %c0_46, %c0_47] : memref<9x8x8xbf16, #tpu.memory_space<vmem>>, vector<1x8x8xbf16>
    %46 = vector.shape_cast %45 : vector<1x8x8xbf16> to vector<8x8xbf16>
    %47 = vector.shape_cast %44 : vector<8x8x8xbf16> to vector<64x8xbf16>
    %cst_48 = arith.constant dense<0.000000e+00> : vector<64x8xf32>
    %48 = tpu.matmul %47, %46, %cst_48 {dimension_numbers = #tpu.dot_dimension_numbers<[1], [0], [0], [1], [0, 0, 1, 1], [], []>} : vector<64x8xbf16>, vector<8x8xbf16>, vector<64x8xf32> -> vector<64x8xf32>
    %49 = arith.addf %42, %48 : vector<64x8xf32>
    %c0_49 = arith.constant 0 : index
    %c2_50 = arith.constant 2 : index
    %c1_51 = arith.constant 1 : index
    %c0_52 = arith.constant 0 : index
    %50 = vector.load %arg2[%c0_49, %c2_50, %c1_51, %c0_52] : memref<1x10x10x8xbf16, #tpu.memory_space<vmem>>, vector<1x8x8x8xbf16>
    %51 = vector.shape_cast %50 : vector<1x8x8x8xbf16> to vector<8x8x8xbf16>
    %c7 = arith.constant 7 : index
    %c0_53 = arith.constant 0 : index
    %c0_54 = arith.constant 0 : index
    %52 = vector.load %arg3[%c7, %c0_53, %c0_54] : memref<9x8x8xbf16, #tpu.memory_space<vmem>>, vector<1x8x8xbf16>
    %53 = vector.shape_cast %52 : vector<1x8x8xbf16> to vector<8x8xbf16>
    %54 = vector.shape_cast %51 : vector<8x8x8xbf16> to vector<64x8xbf16>
    %cst_55 = arith.constant dense<0.000000e+00> : vector<64x8xf32>
    %55 = tpu.matmul %54, %53, %cst_55 {dimension_numbers = #tpu.dot_dimension_numbers<[1], [0], [0], [1], [0, 0, 1, 1], [], []>} : vector<64x8xbf16>, vector<8x8xbf16>, vector<64x8xf32> -> vector<64x8xf32>
    %56 = arith.addf %49, %55 : vector<64x8xf32>
    %c0_56 = arith.constant 0 : index
    %c2_57 = arith.constant 2 : index
    %c2_58 = arith.constant 2 : index
    %c0_59 = arith.constant 0 : index
    %57 = vector.load %arg2[%c0_56, %c2_57, %c2_58, %c0_59] : memref<1x10x10x8xbf16, #tpu.memory_space<vmem>>, vector<1x8x8x8xbf16>
    %58 = vector.shape_cast %57 : vector<1x8x8x8xbf16> to vector<8x8x8xbf16>
    %c8 = arith.constant 8 : index
    %c0_60 = arith.constant 0 : index
    %c0_61 = arith.constant 0 : index
    %59 = vector.load %arg3[%c8, %c0_60, %c0_61] : memref<9x8x8xbf16, #tpu.memory_space<vmem>>, vector<1x8x8xbf16>
    %60 = vector.shape_cast %59 : vector<1x8x8xbf16> to vector<8x8xbf16>
    %61 = vector.shape_cast %58 : vector<8x8x8xbf16> to vector<64x8xbf16>
    %cst_62 = arith.constant dense<0.000000e+00> : vector<64x8xf32>
    %62 = tpu.matmul %61, %60, %cst_62 {dimension_numbers = #tpu.dot_dimension_numbers<[1], [0], [0], [1], [0, 0, 1, 1], [], []>} : vector<64x8xbf16>, vector<8x8xbf16>, vector<64x8xf32> -> vector<64x8xf32>
    %63 = arith.addf %56, %62 : vector<64x8xf32>
    %c0_63 = arith.constant 0 : index
    %c0_64 = arith.constant 0 : index
    %64 = vector.load %arg4[%c0_63, %c0_64] : memref<1x8xf32, #tpu.memory_space<vmem>>, vector<1x8xf32>
    %65 = vector.broadcast %64 : vector<1x8xf32> to vector<64x8xf32>
    %66 = arith.addf %63, %65 : vector<64x8xf32>
    %cst_65 = arith.constant 0.000000e+00 : f32
    %67 = vector.broadcast %cst_65 : f32 to vector<64x8xf32>
    %68 = arith.cmpf ogt, %66, %67 : vector<64x8xf32>
    %c0_66 = arith.constant 0 : index
    %c0_67 = arith.constant 0 : index
    %69 = vector.load %arg5[%c0_66, %c0_67] : memref<1x8xf32, #tpu.memory_space<vmem>>, vector<1x8xf32>
    %70 = vector.broadcast %69 : vector<1x8xf32> to vector<64x8xf32>
    %71 = arith.mulf %70, %66 : vector<64x8xf32>
    %72 = arith.select %68, %66, %71 : vector<64x8xi1>, vector<64x8xf32>
    %73 = vector.shape_cast %72 : vector<64x8xf32> to vector<8x8x8xf32>
    %74 = vector.shape_cast %73 : vector<8x8x8xf32> to vector<1x8x8x8xf32>
    %c0_68 = arith.constant 0 : index
    %c0_69 = arith.constant 0 : index
    %c0_70 = arith.constant 0 : index
    %c0_71 = arith.constant 0 : index
    %75 = vector.load %arg6[%c0_68, %c0_69, %c0_70, %c0_71] : memref<1x8x8x8xf32, #tpu.memory_space<vmem>>, vector<1x8x8x8xf32>
    tpu.vector_store %arg6[%c0_68, %c0_69, %c0_70, %c0_71], %74 {strides = array<i32>} : memref<1x8x8x8xf32, #tpu.memory_space<vmem>>, vector<1x8x8x8xf32>,
    return
  }
  func.func @transform_0(%arg0: i32, %arg1: i32) -> (i32, i32, i32, i32) {
    %c0_i32 = arith.constant 0 : i32
    %c0_i32_0 = arith.constant 0 : i32
    %c0_i32_1 = arith.constant 0 : i32
    %c0_i32_2 = arith.constant 0 : i32
    return %arg0, %c0_i32, %c0_i32_0, %c0_i32_1 : i32, i32, i32, i32
  }
  func.func @transform_1(%arg0: i32, %arg1: i32) -> (i32, i32, i32) {
    %c0_i32 = arith.constant 0 : i32
    %c0_i32_0 = arith.constant 0 : i32
    %c0_i32_1 = arith.constant 0 : i32
    return %c0_i32, %c0_i32_0, %arg1 : i32, i32, i32
  }
  func.func @transform_2(%arg0: i32, %arg1: i32) -> (i32, i32) {
    %c0_i32 = arith.constant 0 : i32
    %c0_i32_0 = arith.constant 0 : i32
    return %c0_i32, %arg1 : i32, i32
  }
  func.func @transform_3(%arg0: i32, %arg1: i32) -> (i32, i32) {
    %c0_i32 = arith.constant 0 : i32
    %c0_i32_0 = arith.constant 0 : i32
    return %c0_i32, %arg1 : i32, i32
  }
  func.func @transform_4(%arg0: i32, %arg1: i32) -> (i32, i32, i32, i32) {
    %c0_i32 = arith.constant 0 : i32
    %c0_i32_0 = arith.constant 0 : i32
    %c0_i32_1 = arith.constant 0 : i32
    return %arg0, %c0_i32, %c0_i32_0, %arg1 : i32, i32, i32, i32
  }
}

</mosaic_0001>

<llo_original>
// kernel: conv2_forward.3
$region0: #{conv2_forward.3}
  #allocation0 [shape = 'u32[]', space=smem, size = 0x4, offset = 0x4, fixed_abs, tag = 'smem constant byte address 0x4 - core index']
  #allocation1 [shape = 'u32[144,128]{1,0:T(1,128)}', space=vmem, size = 0x12000, scoped, tag = 'internal scratch']
  %s0 = inlined_call_operand.vmem [shape: bf16[2,10,10,8], index: 0, kind: input, shape index: {}]
  %s1 = inlined_call_operand.vmem [shape: bf16[9,8,8], index: 1, kind: input, shape index: {}]
  %s2 = inlined_call_operand.vmem [shape: f32[1,8], index: 2, kind: input, shape index: {}]
  %s3 = inlined_call_operand.vmem [shape: f32[1,8], index: 3, kind: input, shape index: {}]
  %s4 = inlined_call_operand.vmem [shape: f32[2,8,8,8], index: 4, kind: output, shape index: {}]
  %s5 = sld [smem:[#allocation0]]
  $region49: #{conv2_forward.3} parent=0
    _
  %s7 = ssub.s32 1, %s5
  %s8 = scalar_select 0, %s7, %s5
  loop: start=0, step=1, limit=4
  $region2: #{conv2_forward.3} parent=0 // loop_pre_header
    _
  $region3: #{conv2_forward.3} parent=0 // loop_header
    %s10 = sphi 0, %s14
    %p11 = scmp.ge.s32.totalorder %s10, 4
    %s17 = sphi 0, %s29
    %s18 = sphi 0, %s25
    %s19 = sphi 0, %s17
    %s20 = sphi 0, %s18
    %s21 = sphi 0, %s19
    %s22 = sphi 0, %s20
    %s32 = sphi 0, %s34
    %s35 = sphi 0, %s32
    %s36 = sphi 0, %s35
    %s52 = sphi 0, %s36
    %s58 = sphi 0, %s60
    %s61 = sphi 0, %s58
    %s62 = sphi 0, %s61
    %s78 = sphi 0, %s62
    %s84 = sphi 0, %s86
    %s87 = sphi 0, %s84
    %s88 = sphi 0, %s87
    %s104 = sphi 0, %s88
    %s110 = sphi 0, %s112
    %s113 = sphi 0, %s110
    %s114 = sphi 0, %s113
    %s130 = sphi 0, %s114
    %s138 = sphi 0, %s140
    %s141 = sphi 0, %s138
    %s142 = sphi 0, %s141
    %s158 = sphi 0, %s142
  $region4: #{conv2_forward.3} parent=0 // loop_header_branch
    %13 = sbr.rel (%p11) target = $region8
  $region5: #{conv2_forward.3} parent=0 // loop_body
    %s15 = ssub.s32 %s10, 1
    %s16 = ssub.s32 %s10, 2
    %s23 = sadd.s32 1, %s18
    %p24 = scmp.ge.s32.totalorder %s23, 1
    %s25 = scalar_select %p24, 0, %s23
    %s26 = sadd.s32 1, %s17
    %s27 = scalar_select %p24, %s26, %s17
    %p28 = scmp.ge.s32.totalorder %s27, 2
    %s29 = scalar_select %p28, 0, %s27
    %s30 = ssub.s32 %s17, %s29
    %p31 = scmp.eq.s32.totalorder %s30, 0
    %s33 = sadd.s32 %s32, 1
    %s34 = scalar_select %p31, %s32, %s33
    %p37 = pneg %p31
    %p38 = scmp.eq.s32.totalorder %s10, 1
    %p39 = por %p37, %p38
    %p40 = scmp.ne.s32.totalorder %s32, %s35
    %p41 = scmp.eq.s32.totalorder %s10, 0
    %p42 = por %p40, %p41
    %p43 = scmp.ne.s32.totalorder %s32, %s35
    %p44 = scmp.eq.s32.totalorder %s15, 1
    %p45 = por %p43, %p44
    %p46 = scmp.ne.s32.totalorder %s35, %s36
    %p47 = scmp.eq.s32.totalorder %s15, 0
    %p48 = por %p46, %p47
    %p49 = scmp.ne.s32.totalorder %s35, %s36
    %p50 = scmp.eq.s32.totalorder %s16, 1
    %p51 = por %p49, %p50
    %p53 = scmp.ne.s32.totalorder %s36, %s52
    %p54 = scmp.eq.s32.totalorder %s16, 0
    %p55 = por %p53, %p54
    %s56 = ssub.s32 %s18, %s25
    %p57 = scmp.eq.s32.totalorder %s56, 0
    %s59 = sadd.s32 %s58, 1
    %s60 = scalar_select %p57, %s58, %s59
    %p63 = pneg %p57
    %p64 = scmp.eq.s32.totalorder %s10, 1
    %p65 = por %p63, %p64
    %p66 = scmp.ne.s32.totalorder %s58, %s61
    %p67 = scmp.eq.s32.totalorder %s10, 0
    %p68 = por %p66, %p67
    %p69 = scmp.ne.s32.totalorder %s58, %s61
    %p70 = scmp.eq.s32.totalorder %s15, 1
    %p71 = por %p69, %p70
    %p72 = scmp.ne.s32.totalorder %s61, %s62
    %p73 = scmp.eq.s32.totalorder %s15, 0
    %p74 = por %p72, %p73
    %p75 = scmp.ne.s32.totalorder %s61, %s62
    %p76 = scmp.eq.s32.totalorder %s16, 1
    %p77 = por %p75, %p76
    %p79 = scmp.ne.s32.totalorder %s62, %s78
    %p80 = scmp.eq.s32.totalorder %s16, 0
    %p81 = por %p79, %p80
    %s82 = ssub.s32 %s18, %s25
    %p83 = scmp.eq.s32.totalorder %s82, 0
    %s85 = sadd.s32 %s84, 1
    %s86 = scalar_select %p83, %s84, %s85
    %p89 = pneg %p83
    %p90 = scmp.eq.s32.totalorder %s10, 1
    %p91 = por %p89, %p90
    %p92 = scmp.ne.s32.totalorder %s84, %s87
    %p93 = scmp.eq.s32.totalorder %s10, 0
    %p94 = por %p92, %p93
    %p95 = scmp.ne.s32.totalorder %s84, %s87
    %p96 = scmp.eq.s32.totalorder %s15, 1
    %p97 = por %p95, %p96
    %p98 = scmp.ne.s32.totalorder %s87, %s88
    %p99 = scmp.eq.s32.totalorder %s15, 0
    %p100 = por %p98, %p99
    %p101 = scmp.ne.s32.totalorder %s87, %s88
    %p102 = scmp.eq.s32.totalorder %s16, 1
    %p103 = por %p101, %p102
    %p105 = scmp.ne.s32.totalorder %s88, %s104
    %p106 = scmp.eq.s32.totalorder %s16, 0
    %p107 = por %p105, %p106
    %s108 = ssub.s32 %s18, %s25
    %p109 = scmp.eq.s32.totalorder %s108, 0
    %s111 = sadd.s32 %s110, 1
    %s112 = scalar_select %p109, %s110, %s111
    %p115 = pneg %p109
    %p116 = scmp.eq.s32.totalorder %s10, 1
    %p117 = por %p115, %p116
    %p118 = scmp.ne.s32.totalorder %s110, %s113
    %p119 = scmp.eq.s32.totalorder %s10, 0
    %p120 = por %p118, %p119
    %p121 = scmp.ne.s32.totalorder %s110, %s113
    %p122 = scmp.eq.s32.totalorder %s15, 1
    %p123 = por %p121, %p122
    %p124 = scmp.ne.s32.totalorder %s113, %s114
    %p125 = scmp.eq.s32.totalorder %s15, 0
    %p126 = por %p124, %p125
    %p127 = scmp.ne.s32.totalorder %s113, %s114
    %p128 = scmp.eq.s32.totalorder %s16, 1
    %p129 = por %p127, %p128
    %p131 = scmp.ne.s32.totalorder %s114, %s130
    %p132 = scmp.eq.s32.totalorder %s16, 0
    %p133 = por %p131, %p132
    %s134 = ssub.s32 %s17, %s29
    %s135 = ssub.s32 %s18, %s25
    %s136 = sor.u32 %s134, %s135
    %p137 = scmp.eq.s32.totalorder %s136, 0
    %s139 = sadd.s32 %s138, 1
    %s140 = scalar_select %p137, %s138, %s139
    %p143 = pneg %p137
    %p144 = scmp.eq.s32.totalorder %s10, 1
    %p145 = por %p143, %p144
    %p146 = scmp.ne.s32.totalorder %s138, %s141
    %p147 = scmp.eq.s32.totalorder %s10, 0
    %p148 = por %p146, %p147
    %p149 = scmp.ne.s32.totalorder %s138, %s141
    %p150 = scmp.eq.s32.totalorder %s15, 1
    %p151 = por %p149, %p150
    %p152 = scmp.ne.s32.totalorder %s141, %s142
    %p153 = scmp.eq.s32.totalorder %s15, 0
    %p154 = por %p152, %p153
    %p155 = scmp.ne.s32.totalorder %s141, %s142
    %p156 = scmp.eq.s32.totalorder %s16, 1
    %p157 = por %p155, %p156
    %p159 = scmp.ne.s32.totalorder %s142, %s158
    %p160 = scmp.eq.s32.totalorder %s16, 0
    %p161 = por %p159, %p160
    %p162 = scmp.le.s32.totalorder 1, %s10
    %p163 = scmp.lt.s32.totalorder %s10, 3
    %p164 = pnand %p162, %p163
    %p165 = pneg %p164
    // Predicated region
    $region9: #{conv2_forward.3} parent=5 // pred_check
      _
    $region10: #{conv2_forward.3} parent=5 // pred_check_branch
      %167 = sbr.rel (%p164) target = $region12
    $region11: #{conv2_forward.3} parent=5 // pred_region
      %s168 = ssub.s32 %s10, 1
      // Predicated region
      $region13: #{conv2_forward.3} parent=11 // pred_check
        %p169 = pneg %p74
      $region14: #{conv2_forward.3} parent=11 // pred_check_branch
        %171 = sbr.rel (%p169) target = $region16
      $region15: #{conv2_forward.3} parent=11 // pred_region
        %p172 = scmp.lt.s32.totalorder %s20, 0
        %s173 = scalar_select %p172, %s20, 0
        %s174 = smul.addr %s173, 4
        %s175 = scalar_lea.vmem %s1, %s174
      $region16: #{conv2_forward.3} parent=11 // pred_fallthru
        _
      // Predicated region
      $region17: #{conv2_forward.3} parent=11 // pred_check
        %p176 = pneg %p100
      $region18: #{conv2_forward.3} parent=11 // pred_check_branch
        %178 = sbr.rel (%p176) target = $region20
      $region19: #{conv2_forward.3} parent=11 // pred_region
        %p179 = scmp.lt.s32.totalorder %s20, 0
        %s180 = scalar_select %p179, %s20, 0
        %s181 = scalar_lea.vmem %s2, %s180
      $region20: #{conv2_forward.3} parent=11 // pred_fallthru
        _
      // Predicated region
      $region21: #{conv2_forward.3} parent=11 // pred_check
        %p182 = pneg %p126
      $region22: #{conv2_forward.3} parent=11 // pred_check_branch
        %184 = sbr.rel (%p182) target = $region24
      $region23: #{conv2_forward.3} parent=11 // pred_region
        %p185 = scmp.lt.s32.totalorder %s20, 0
        %s186 = scalar_select %p185, %s20, 0
        %s187 = scalar_lea.vmem %s3, %s186
      $region24: #{conv2_forward.3} parent=11 // pred_fallthru
        _
    $region12: #{conv2_forward.3} parent=5 // pred_fallthru
      _
    %p188 = scmp.lt.s32.totalorder %s10, 2
    // Predicated region
    $region25: #{conv2_forward.3} parent=5 // pred_check
      %p189 = pneg %p188
    $region26: #{conv2_forward.3} parent=5 // pred_check_branch
      %191 = sbr.rel (%p189) target = $region28
    $region27: #{conv2_forward.3} parent=5 // pred_region
      // Predicated region
      $region29: #{conv2_forward.3} parent=27 // pred_check
        %p192 = pneg %p42
      $region30: #{conv2_forward.3} parent=27 // pred_check_branch
        %194 = sbr.rel (%p192) target = $region32
      $region31: #{conv2_forward.3} parent=27 // pred_region
        %p195 = scmp.lt.s32.totalorder %s17, 1
        %s196 = scalar_select %p195, %s17, 1
        %s197 = smul.addr %s196, 20
        %s198 = smul.addr %s197, 4
        %s199 = scalar_lea.vmem %s0, %s198
      $region32: #{conv2_forward.3} parent=27 // pred_fallthru
        _
    $region28: #{conv2_forward.3} parent=5 // pred_fallthru
      _
    %p200 = scmp.le.s32.totalorder 1, %s10
    %p201 = scmp.lt.s32.totalorder %s10, 3
    %p202 = pnand %p200, %p201
    %p203 = pneg %p202
    // Predicated region
    $region33: #{conv2_forward.3} parent=5 // pred_check
      _
    $region34: #{conv2_forward.3} parent=5 // pred_check_branch
      %205 = sbr.rel (%p202) target = $region36
    $region35: #{conv2_forward.3} parent=5 // pred_region
      %s206 = ssub.s32 %s10, 1
      %p207 = scmp.lt.s32.totalorder %s19, 1
      %s208 = scalar_select %p207, %s19, 1
      %s209 = smul.addr %s208, 20
      %s210 = smul.addr %s209, 4
      %s211 = scalar_lea.vmem %s0, %s210
      %p212 = pneg %p48
      %p213 = pneg %p45
      %p214 = scmp.lt.s32.totalorder %s20, 0
      %s215 = scalar_select %p214, %s20, 0
      %s216 = smul.addr %s215, 4
      %s217 = scalar_lea.vmem %s1, %s216
      %p218 = pneg %p74
      %p219 = pneg %p71
      %p220 = scmp.lt.s32.totalorder %s20, 0
      %s221 = scalar_select %p220, %s20, 0
      %s222 = scalar_lea.vmem %s2, %s221
      %p223 = pneg %p100
      %p224 = pneg %p97
      %p225 = scmp.lt.s32.totalorder %s20, 0
      %s226 = scalar_select %p225, %s20, 0
      %s227 = scalar_lea.vmem %s3, %s226
      %p228 = pneg %p126
      %p229 = pneg %p123
      %p230 = pneg %p154
      %p231 = pneg %p151
      %p232 = scmp.lt.s32.totalorder %s19, 1
      %s233 = scalar_select %p232, %s19, 1
      %p234 = scmp.lt.s32.totalorder %s20, 0
      %s235 = scalar_select %p234, %s20, 0
      %s236 = smul.addr %s233, 8
      %s237 = sadd.s32 %s235, %s236
      %s238 = smul.addr %s237, 8
      %s239 = scalar_lea.vmem %s4, %s238
      %p240 = scmp.lt.s32.totalorder %s19, 1
      %s241 = scalar_select %p240, %s19, 1
      %s242 = smul.addr %s241, 20
      %s243 = smul.addr %s242, 4
      %s244 = scalar_lea.vmem %s0, %s243
      %p245 = scmp.lt.s32.totalorder %s20, 0
      %s246 = scalar_select %p245, %s20, 0
      %s247 = smul.addr %s246, 4
      %s248 = scalar_lea.vmem %s1, %s247
      %p249 = scmp.lt.s32.totalorder %s20, 0
      %s250 = scalar_select %p249, %s20, 0
      %s251 = scalar_lea.vmem %s2, %s250
      %p252 = scmp.lt.s32.totalorder %s20, 0
      %s253 = scalar_select %p252, %s20, 0
      %s254 = scalar_lea.vmem %s3, %s253
      %p255 = scmp.lt.s32.totalorder %s19, 1
      %s256 = scalar_select %p255, %s19, 1
      %p257 = scmp.lt.s32.totalorder %s20, 0
      %s258 = scalar_select %p257, %s20, 0
      %s259 = smul.addr %s256, 8
      %s260 = sadd.s32 %s258, %s259
      %s261 = smul.addr %s260, 8
      %s262 = scalar_lea.vmem %s4, %s261
      %v264 = vld [vmem:[%s244] sm:$0xf]
      %v265 = vld [vmem:[%s244 + $0x8] sm:$0xf]
      %v266 = vld [vmem:[%s244 + $0x10] sm:$0xf]
      %v267 = vld [vmem:[%s244 + $0x18] sm:$0xf]
      %v268 = vld [vmem:[%s244 + $0x20] sm:$0xf]
      %v269 = vld [vmem:[%s244 + $0x28] sm:$0xf]
      %v270 = vld [vmem:[%s244 + $0x30] sm:$0xf]
      %v271 = vld [vmem:[%s244 + $0x38] sm:$0xf]
      %v272 = vld [vmem:[%s248] sm:$0xf]
      %v273 = vld [vmem:[%s244 + $0x4] sm:$0x1]
      %v274 = vld [vmem:[%s244 + $0xc] sm:$0x1]
      %v275 = vld [vmem:[%s244 + $0x14] sm:$0x1]
      %v276 = vld [vmem:[%s244 + $0x1c] sm:$0x1]
      %v277 = vld [vmem:[%s244 + $0x24] sm:$0x1]
      %v278 = vld [vmem:[%s244 + $0x2c] sm:$0x1]
      %v279 = vld [vmem:[%s244 + $0x34] sm:$0x1]
      %v280 = vld [vmem:[%s244 + $0x3c] sm:$0x1]
      %s281 = scalar_lea.vmem %s248, 4
      %v282 = vld [vmem:[%s281] sm:$0xf]
      %vm283 = vsmask.f32 3328
      %vm284 = vsmask.f32 7440
      %vm285 = vmor %vm283, %vm284
      %v287 = vshrl.u32 %v264, 16
      %v289 = vrot.slane %v287, 4
      %v290 = vshll.u32 %v264, 16
      %v292 = vrot.slane %v290, 5
      %v293 = vor.u32 %v289, %v292
      %v294 = vrot.slane %v293, 4
      %v296 = vshll.u32 %v273, 16
      %v298 = vrot.slane %v296, 5
      %v299 = vsel %vm285, %v294, %v298
      %v301 = vshrl.u32 %v265, 16
      %v303 = vrot.slane %v301, 4
      %v304 = vshll.u32 %v265, 16
      %v306 = vrot.slane %v304, 5
      %v307 = vor.u32 %v303, %v306
      %v308 = vrot.slane %v307, 4
      %v310 = vshll.u32 %v274, 16
      %v312 = vrot.slane %v310, 5
      %v313 = vsel %vm285, %v308, %v312
      %v315 = vshrl.u32 %v266, 16
      %v317 = vrot.slane %v315, 4
      %v318 = vshll.u32 %v266, 16
      %v320 = vrot.slane %v318, 5
      %v321 = vor.u32 %v317, %v320
      %v322 = vrot.slane %v321, 4
      %v324 = vshll.u32 %v275, 16
      %v326 = vrot.slane %v324, 5
      %v327 = vsel %vm285, %v322, %v326
      %v329 = vshrl.u32 %v267, 16
      %v331 = vrot.slane %v329, 4
      %v332 = vshll.u32 %v267, 16
      %v334 = vrot.slane %v332, 5
      %v335 = vor.u32 %v331, %v334
      %v336 = vrot.slane %v335, 4
      %v338 = vshll.u32 %v276, 16
      %v340 = vrot.slane %v338, 5
      %v341 = vsel %vm285, %v336, %v340
      %v343 = vshrl.u32 %v268, 16
      %v345 = vrot.slane %v343, 4
      %v346 = vshll.u32 %v268, 16
      %v348 = vrot.slane %v346, 5
      %v349 = vor.u32 %v345, %v348
      %v350 = vrot.slane %v349, 4
      %v352 = vshll.u32 %v277, 16
      %v354 = vrot.slane %v352, 5
      %v355 = vsel %vm285, %v350, %v354
      %v357 = vshrl.u32 %v269, 16
      %v359 = vrot.slane %v357, 4
      %v360 = vshll.u32 %v269, 16
      %v362 = vrot.slane %v360, 5
      %v363 = vor.u32 %v359, %v362
      %v364 = vrot.slane %v363, 4
      %v366 = vshll.u32 %v278, 16
      %v368 = vrot.slane %v366, 5
      %v369 = vsel %vm285, %v364, %v368
      %v371 = vshrl.u32 %v270, 16
      %v373 = vrot.slane %v371, 4
      %v374 = vshll.u32 %v270, 16
      %v376 = vrot.slane %v374, 5
      %v377 = vor.u32 %v373, %v376
      %v378 = vrot.slane %v377, 4
      %v380 = vshll.u32 %v279, 16
      %v382 = vrot.slane %v380, 5
      %v383 = vsel %vm285, %v378, %v382
      %v385 = vshrl.u32 %v271, 16
      %v387 = vrot.slane %v385, 4
      %v388 = vshll.u32 %v271, 16
      %v390 = vrot.slane %v388, 5
      %v391 = vor.u32 %v387, %v390
      %v392 = vrot.slane %v391, 4
      %v394 = vshll.u32 %v280, 16
      %v396 = vrot.slane %v394, 5
      %v397 = vsel %vm285, %v392, %v396
      %v398 = vunpack.c.l.b16 %v299
      %v399 = vunpack.c.l.b16 %v313
      %v400 = vunpack.c.l.b16 %v327
      %v401 = vunpack.c.l.b16 %v341
      %v402 = vunpack.c.l.b16 %v355
      %v403 = vunpack.c.l.b16 %v369
      %v404 = vunpack.c.l.b16 %v383
      %v405 = vunpack.c.l.b16 %v397
      %v406 = vpack.c.b16 %v399, %v398
      %v407 = vpack.c.b16 %v401, %v400
      %v408 = vpack.c.b16 %v403, %v402
      %v409 = vpack.c.b16 %v405, %v404
      %vm410 = vcmask 64512
      %v412 = vsel %vm410, %v406, 0
      %v415 = vsel %vm410, %v407, 0
      %v418 = vsel %vm410, %v408, 0
      %v421 = vsel %vm410, %v409, 0
      %vm423 = vcmask 1043456
      %v425 = vsel %vm423, %v282, 0
      %427 = vmatprep.subr.bf16.mxu0 0
      %428 = vmatpush1.bf16.msra.mxu0 %v425
      %429 = vmatprep.subr.bf16.mxu0 0
      %430 = vmatpush1.bf16.msra.mxu0 0
      %431 = vmatprep.subr.bf16.mxu0 0
      %432 = vmatpush1.bf16.msra.mxu0 0
      %433 = vmatprep.subr.bf16.mxu0 0
      %434 = vmatpush1.bf16.msra.mxu0 0
      %435 = vmatprep.subr.bf16.mxu0 0
      %436 = vmatpush1.bf16.msra.mxu0 0
      %437 = vmatprep.subr.bf16.mxu0 0
      %438 = vmatpush1.bf16.msra.mxu0 0
      %439 = vmatprep.subr.bf16.mxu0 0
      %440 = vmatpush1.bf16.msra.mxu0 0
      %441 = vmatprep.subr.bf16.mxu0 0
      %442 = vmatpush1.bf16.msra.mxu0 0
      %443 = vmatprep.subr.bf16.mxu0 0
      %444 = vmatpush1.bf16.msra.mxu0 0
      %445 = vmatprep.subr.bf16.mxu0 0
      %446 = vmatpush1.bf16.msra.mxu0 0
      %447 = vmatprep.subr.bf16.mxu0 0
      %448 = vmatpush1.bf16.msra.mxu0 0
      %449 = vmatprep.subr.bf16.mxu0 0
      %450 = vmatpush1.bf16.msra.mxu0 0
      %451 = vmatprep.subr.bf16.mxu0 0
      %452 = vmatpush1.bf16.msra.mxu0 0
      %453 = vmatprep.subr.bf16.mxu0 0
      %454 = vmatpush1.bf16.msra.mxu0 0
      %455 = vmatprep.subr.bf16.mxu0 0
      %456 = vmatpush1.bf16.msra.mxu0 0
      %457 = vmatprep.subr.bf16.mxu0 0
      %458 = vmatpush1.bf16.msra.mxu0 0
      %459 = vmatprep.mubr.bf16.mxu0 0
      %460 = vmatmul.mubr.bf16.gmra.mrb[0].mxu0 %v412
      %v461 = vpop.f32.mrb[0].mxu0
      %v462 = vadd.f32 0.0, %v461
      %v463 = vpop.f32.mrb[0].mxu0
      %v464 = vpop.f32.mrb[0].mxu0
      %v465 = vadd.f32 0.0, %v464
      %v466 = vpop.f32.mrb[0].mxu0
      %467 = vmatprep.mubr.bf16.mxu0 0
      %468 = vmatmul.mubr.bf16.gmra.mrb[0].mxu0 %v415
      %v469 = vpop.f32.mrb[0].mxu0
      %v470 = vadd.f32 0.0, %v469
      %v471 = vpop.f32.mrb[0].mxu0
      %v472 = vpop.f32.mrb[0].mxu0
      %v473 = vadd.f32 0.0, %v472
      %v474 = vpop.f32.mrb[0].mxu0
      %475 = vmatprep.mubr.bf16.mxu0 0
      %476 = vmatmul.mubr.bf16.gmra.mrb[0].mxu0 %v418
      %v477 = vpop.f32.mrb[0].mxu0
      %v478 = vadd.f32 0.0, %v477
      %v479 = vpop.f32.mrb[0].mxu0
      %v480 = vpop.f32.mrb[0].mxu0
      %v481 = vadd.f32 0.0, %v480
      %v482 = vpop.f32.mrb[0].mxu0
      %483 = vmatprep.mubr.bf16.mxu0 0
      %484 = vmatmul.mubr.bf16.gmra.mrb[0].mxu0 %v421
      %v485 = vpop.f32.mrb[0].mxu0
      %v486 = vadd.f32 0.0, %v485
      %v487 = vpop.f32.mrb[0].mxu0
      %v488 = vpop.f32.mrb[0].mxu0
      %v489 = vadd.f32 0.0, %v488
      %v490 = vpop.f32.mrb[0].mxu0
      %491 = vdwg.mxu0
      %v500 = vunpack.c.l.b16 %v264
      %v501 = vunpack.c.l.b16 %v265
      %v502 = vunpack.c.l.b16 %v266
      %v503 = vunpack.c.l.b16 %v267
      %v504 = vunpack.c.l.b16 %v268
      %v505 = vunpack.c.l.b16 %v269
      %v506 = vunpack.c.l.b16 %v270
      %v507 = vunpack.c.l.b16 %v271
      %v508 = vpack.c.b16 %v501, %v500
      %v509 = vpack.c.b16 %v503, %v502
      %v510 = vpack.c.b16 %v505, %v504
      %v511 = vpack.c.b16 %v507, %v506
      %v513 = vsel %vm410, %v508, 0
      %v516 = vsel %vm410, %v509, 0
      %v519 = vsel %vm410, %v510, 0
      %v522 = vsel %vm410, %v511, 0
      %v525 = vsel %vm423, %v272, 0
      %527 = vmatprep.subr.bf16.mxu0 0
      %528 = vmatpush1.bf16.msra.mxu0 %v525
      %529 = vmatprep.subr.bf16.mxu0 0
      %530 = vmatpush1.bf16.msra.mxu0 0
      %531 = vmatprep.subr.bf16.mxu0 0
      %532 = vmatpush1.bf16.msra.mxu0 0
      %533 = vmatprep.subr.bf16.mxu0 0
      %534 = vmatpush1.bf16.msra.mxu0 0
      %535 = vmatprep.subr.bf16.mxu0 0
      %536 = vmatpush1.bf16.msra.mxu0 0
      %537 = vmatprep.subr.bf16.mxu0 0
      %538 = vmatpush1.bf16.msra.mxu0 0
      %539 = vmatprep.subr.bf16.mxu0 0
      %540 = vmatpush1.bf16.msra.mxu0 0
      %541 = vmatprep.subr.bf16.mxu0 0
      %542 = vmatpush1.bf16.msra.mxu0 0
      %543 = vmatprep.subr.bf16.mxu0 0
      %544 = vmatpush1.bf16.msra.mxu0 0
      %545 = vmatprep.subr.bf16.mxu0 0
      %546 = vmatpush1.bf16.msra.mxu0 0
      %547 = vmatprep.subr.bf16.mxu0 0
      %548 = vmatpush1.bf16.msra.mxu0 0
      %549 = vmatprep.subr.bf16.mxu0 0
      %550 = vmatpush1.bf16.msra.mxu0 0
      %551 = vmatprep.subr.bf16.mxu0 0
      %552 = vmatpush1.bf16.msra.mxu0 0
      %553 = vmatprep.subr.bf16.mxu0 0
      %554 = vmatpush1.bf16.msra.mxu0 0
      %555 = vmatprep.subr.bf16.mxu0 0
      %556 = vmatpush1.bf16.msra.mxu0 0
      %557 = vmatprep.subr.bf16.mxu0 0
      %558 = vmatpush1.bf16.msra.mxu0 0
      %559 = vmatprep.mubr.bf16.mxu0 0
      %560 = vmatmul.mubr.bf16.gmra.mrb[0].mxu0 %v513
      %v561 = vpop.f32.mrb[0].mxu0
      %v562 = vadd.f32 %v462, %v561
      %v563 = vpop.f32.mrb[0].mxu0
      %v564 = vpop.f32.mrb[0].mxu0
      %v565 = vadd.f32 %v465, %v564
      %v566 = vpop.f32.mrb[0].mxu0
      %567 = vmatprep.mubr.bf16.mxu0 0
      %568 = vmatmul.mubr.bf16.gmra.mrb[0].mxu0 %v516
      %v569 = vpop.f32.mrb[0].mxu0
      %v570 = vadd.f32 %v470, %v569
      %v571 = vpop.f32.mrb[0].mxu0
      %v572 = vpop.f32.mrb[0].mxu0
      %v573 = vadd.f32 %v473, %v572
      %v574 = vpop.f32.mrb[0].mxu0
      %575 = vmatprep.mubr.bf16.mxu0 0
      %576 = vmatmul.mubr.bf16.gmra.mrb[0].mxu0 %v519
      %v577 = vpop.f32.mrb[0].mxu0
      %v578 = vadd.f32 %v478, %v577
      %v579 = vpop.f32.mrb[0].mxu0
      %v580 = vpop.f32.mrb[0].mxu0
      %v581 = vadd.f32 %v481, %v580
      %v582 = vpop.f32.mrb[0].mxu0
      %583 = vmatprep.mubr.bf16.mxu0 0
      %584 = vmatmul.mubr.bf16.gmra.mrb[0].mxu0 %v522
      %v585 = vpop.f32.mrb[0].mxu0
      %v586 = vadd.f32 %v486, %v585
      %v587 = vpop.f32.mrb[0].mxu0
      %v588 = vpop.f32.mrb[0].mxu0
      %v589 = vadd.f32 %v489, %v588
      %v590 = vpop.f32.mrb[0].mxu0
      %591 = vdwg.mxu0
      %v592 = vld [vmem:[%s244] sm:$0xe]
      %v593 = vld [vmem:[%s244 + $0x8] sm:$0xe]
      %v594 = vld [vmem:[%s244 + $0x10] sm:$0xe]
      %v595 = vld [vmem:[%s244 + $0x18] sm:$0xe]
      %v596 = vld [vmem:[%s244 + $0x20] sm:$0xe]
      %v597 = vld [vmem:[%s244 + $0x28] sm:$0xe]
      %v598 = vld [vmem:[%s244 + $0x30] sm:$0xe]
      %v599 = vld [vmem:[%s244 + $0x38] sm:$0xe]
      %s600 = scalar_lea.vmem %s248, 8
      %v601 = vld [vmem:[%s600] sm:$0xf]
      %vm618 = vcmask 1042432
      %vm619 = vcmask 1046532
      %vm620 = vmor %vm618, %vm619
      %v621 = vrot.slane %v592, 5
      %v622 = vrot.slane %v621, 4
      %v623 = vrot.slane %v273, 5
      %v624 = vsel %vm620, %v622, %v623
      %v625 = vrot.slane %v593, 5
      %v626 = vrot.slane %v625, 4
      %v627 = vrot.slane %v274, 5
      %v628 = vsel %vm620, %v626, %v627
      %v629 = vrot.slane %v594, 5
      %v630 = vrot.slane %v629, 4
      %v631 = vrot.slane %v275, 5
      %v632 = vsel %vm620, %v630, %v631
      %v633 = vrot.slane %v595, 5
      %v634 = vrot.slane %v633, 4
      %v635 = vrot.slane %v276, 5
      %v636 = vsel %vm620, %v634, %v635
      %v637 = vrot.slane %v596, 5
      %v638 = vrot.slane %v637, 4
      %v639 = vrot.slane %v277, 5
      %v640 = vsel %vm620, %v638, %v639
      %v641 = vrot.slane %v597, 5
      %v642 = vrot.slane %v641, 4
      %v643 = vrot.slane %v278, 5
      %v644 = vsel %vm620, %v642, %v643
      %v645 = vrot.slane %v598, 5
      %v646 = vrot.slane %v645, 4
      %v647 = vrot.slane %v279, 5
      %v648 = vsel %vm620, %v646, %v647
      %v649 = vrot.slane %v599, 5
      %v650 = vrot.slane %v649, 4
      %v651 = vrot.slane %v280, 5
      %v652 = vsel %vm620, %v650, %v651
      %v653 = vunpack.c.l.b16 %v624
      %v654 = vunpack.c.l.b16 %v628
      %v655 = vunpack.c.l.b16 %v632
      %v656 = vunpack.c.l.b16 %v636
      %v657 = vunpack.c.l.b16 %v640
      %v658 = vunpack.c.l.b16 %v644
      %v659 = vunpack.c.l.b16 %v648
      %v660 = vunpack.c.l.b16 %v652
      %v661 = vpack.c.b16 %v654, %v653
      %v662 = vpack.c.b16 %v656, %v655
      %v663 = vpack.c.b16 %v658, %v657
      %v664 = vpack.c.b16 %v660, %v659
      %v666 = vsel %vm410, %v661, 0
      %v669 = vsel %vm410, %v662, 0
      %v672 = vsel %vm410, %v663, 0
      %v675 = vsel %vm410, %v664, 0
      %v678 = vsel %vm423, %v601, 0
      %680 = vmatprep.subr.bf16.mxu0 0
      %681 = vmatpush1.bf16.msra.mxu0 %v678
      %682 = vmatprep.subr.bf16.mxu0 0
      %683 = vmatpush1.bf16.msra.mxu0 0
      %684 = vmatprep.subr.bf16.mxu0 0
      %685 = vmatpush1.bf16.msra.mxu0 0
      %686 = vmatprep.subr.bf16.mxu0 0
      %687 = vmatpush1.bf16.msra.mxu0 0
      %688 = vmatprep.subr.bf16.mxu0 0
      %689 = vmatpush1.bf16.msra.mxu0 0
      %690 = vmatprep.subr.bf16.mxu0 0
      %691 = vmatpush1.bf16.msra.mxu0 0
      %692 = vmatprep.subr.bf16.mxu0 0
      %693 = vmatpush1.bf16.msra.mxu0 0
      %694 = vmatprep.subr.bf16.mxu0 0
      %695 = vmatpush1.bf16.msra.mxu0 0
      %696 = vmatprep.subr.bf16.mxu0 0
      %697 = vmatpush1.bf16.msra.mxu0 0
      %698 = vmatprep.subr.bf16.mxu0 0
      %699 = vmatpush1.bf16.msra.mxu0 0
      %700 = vmatprep.subr.bf16.mxu0 0
      %701 = vmatpush1.bf16.msra.mxu0 0
      %702 = vmatprep.subr.bf16.mxu0 0
      %703 = vmatpush1.bf16.msra.mxu0 0
      %704 = vmatprep.subr.bf16.mxu0 0
      %705 = vmatpush1.bf16.msra.mxu0 0
      %706 = vmatprep.subr.bf16.mxu0 0
      %707 = vmatpush1.bf16.msra.mxu0 0
      %708 = vmatprep.subr.bf16.mxu0 0
      %709 = vmatpush1.bf16.msra.mxu0 0
      %710 = vmatprep.subr.bf16.mxu0 0
      %711 = vmatpush1.bf16.msra.mxu0 0
      %712 = vmatprep.mubr.bf16.mxu0 0
      %713 = vmatmul.mubr.bf16.gmra.mrb[0].mxu0 %v666
      %v714 = vpop.f32.mrb[0].mxu0
      %v715 = vadd.f32 0.0, %v714
      %v716 = vpop.f32.mrb[0].mxu0
      %v717 = vpop.f32.mrb[0].mxu0
      %v718 = vadd.f32 0.0, %v717
      %v719 = vpop.f32.mrb[0].mxu0
      %720 = vmatprep.mubr.bf16.mxu0 0
      %721 = vmatmul.mubr.bf16.gmra.mrb[0].mxu0 %v669
      %v722 = vpop.f32.mrb[0].mxu0
      %v723 = vadd.f32 0.0, %v722
      %v724 = vpop.f32.mrb[0].mxu0
      %v725 = vpop.f32.mrb[0].mxu0
      %v726 = vadd.f32 0.0, %v725
      %v727 = vpop.f32.mrb[0].mxu0
      %728 = vmatprep.mubr.bf16.mxu0 0
      %729 = vmatmul.mubr.bf16.gmra.mrb[0].mxu0 %v672
      %v730 = vpop.f32.mrb[0].mxu0
      %v731 = vadd.f32 0.0, %v730
      %v732 = vpop.f32.mrb[0].mxu0
      %v733 = vpop.f32.mrb[0].mxu0
      %v734 = vadd.f32 0.0, %v733
      %v735 = vpop.f32.mrb[0].mxu0
      %736 = vmatprep.mubr.bf16.mxu0 0
      %737 = vmatmul.mubr.bf16.gmra.mrb[0].mxu0 %v675
      %v738 = vpop.f32.mrb[0].mxu0
      %v739 = vadd.f32 0.0, %v738
      %v740 = vpop.f32.mrb[0].mxu0
      %v741 = vpop.f32.mrb[0].mxu0
      %v742 = vadd.f32 0.0, %v741
      %v743 = vpop.f32.mrb[0].mxu0
      %744 = vdwg.mxu0
      %v745 = vadd.f32 %v562, %v715
      %v746 = vadd.f32 %v565, %v718
      %v747 = vadd.f32 %v570, %v723
      %v748 = vadd.f32 %v573, %v726
      %v749 = vadd.f32 %v578, %v731
      %v750 = vadd.f32 %v581, %v734
      %v751 = vadd.f32 %v586, %v739
      %v752 = vadd.f32 %v589, %v742
      %s753 = scalar_lea.vmem %s244, 8
      %v754 = vld [vmem:[%s753] sm:$0xf]
      %v755 = vld [vmem:[%s753 + $0x8] sm:$0xf]
      %v756 = vld [vmem:[%s753 + $0x10] sm:$0xf]
      %v757 = vld [vmem:[%s753 + $0x18] sm:$0xf]
      %v758 = vld [vmem:[%s753 + $0x20] sm:$0xf]
      %v759 = vld [vmem:[%s753 + $0x28] sm:$0xf]
      %v760 = vld [vmem:[%s753 + $0x30] sm:$0xf]
      %v761 = vld [vmem:[%s753 + $0x38] sm:$0xf]
      %s762 = scalar_lea.vmem %s248, 12
      %v763 = vld [vmem:[%s762] sm:$0xf]
      %v772 = vunpack.c.l.b16 %v754
      %v773 = vunpack.c.l.b16 %v755
      %v774 = vunpack.c.l.b16 %v756
      %v775 = vunpack.c.l.b16 %v757
      %v776 = vunpack.c.l.b16 %v758
      %v777 = vunpack.c.l.b16 %v759
      %v778 = vunpack.c.l.b16 %v760
      %v779 = vunpack.c.l.b16 %v761
      %v780 = vpack.c.b16 %v773, %v772
      %v781 = vpack.c.b16 %v775, %v774
      %v782 = vpack.c.b16 %v777, %v776
      %v783 = vpack.c.b16 %v779, %v778
      %v785 = vsel %vm410, %v780, 0
      %v788 = vsel %vm410, %v781, 0
      %v791 = vsel %vm410, %v782, 0
      %v794 = vsel %vm410, %v783, 0
      %v797 = vsel %vm423, %v763, 0
      %799 = vmatprep.subr.bf16.mxu0 0
      %800 = vmatpush1.bf16.msra.mxu0 %v797
      %801 = vmatprep.subr.bf16.mxu0 0
      %802 = vmatpush1.bf16.msra.mxu0 0
      %803 = vmatprep.subr.bf16.mxu0 0
      %804 = vmatpush1.bf16.msra.mxu0 0
      %805 = vmatprep.subr.bf16.mxu0 0
      %806 = vmatpush1.bf16.msra.mxu0 0
      %807 = vmatprep.subr.bf16.mxu0 0
      %808 = vmatpush1.bf16.msra.mxu0 0
      %809 = vmatprep.subr.bf16.mxu0 0
      %810 = vmatpush1.bf16.msra.mxu0 0
      %811 = vmatprep.subr.bf16.mxu0 0
      %812 = vmatpush1.bf16.msra.mxu0 0
      %813 = vmatprep.subr.bf16.mxu0 0
      %814 = vmatpush1.bf16.msra.mxu0 0
      %815 = vmatprep.subr.bf16.mxu0 0
      %816 = vmatpush1.bf16.msra.mxu0 0
      %817 = vmatprep.subr.bf16.mxu0 0
      %818 = vmatpush1.bf16.msra.mxu0 0
      %819 = vmatprep.subr.bf16.mxu0 0
      %820 = vmatpush1.bf16.msra.mxu0 0
      %821 = vmatprep.subr.bf16.mxu0 0
      %822 = vmatpush1.bf16.msra.mxu0 0
      %823 = vmatprep.subr.bf16.mxu0 0
      %824 = vmatpush1.bf16.msra.mxu0 0
      %825 = vmatprep.subr.bf16.mxu0 0
      %826 = vmatpush1.bf16.msra.mxu0 0
      %827 = vmatprep.subr.bf16.mxu0 0
      %828 = vmatpush1.bf16.msra.mxu0 0
      %829 = vmatprep.subr.bf16.mxu0 0
      %830 = vmatpush1.bf16.msra.mxu0 0
      %831 = vmatprep.mubr.bf16.mxu0 0
      %832 = vmatmul.mubr.bf16.gmra.mrb[0].mxu0 %v785
      %v833 = vpop.f32.mrb[0].mxu0
      %v834 = vadd.f32 0.0, %v833
      %v835 = vpop.f32.mrb[0].mxu0
      %v836 = vpop.f32.mrb[0].mxu0
      %v837 = vadd.f32 0.0, %v836
      %v838 = vpop.f32.mrb[0].mxu0
      %839 = vmatprep.mubr.bf16.mxu0 0
      %840 = vmatmul.mubr.bf16.gmra.mrb[0].mxu0 %v788
      %v841 = vpop.f32.mrb[0].mxu0
      %v842 = vadd.f32 0.0, %v841
      %v843 = vpop.f32.mrb[0].mxu0
      %v844 = vpop.f32.mrb[0].mxu0
      %v845 = vadd.f32 0.0, %v844
      %v846 = vpop.f32.mrb[0].mxu0
      %847 = vmatprep.mubr.bf16.mxu0 0
      %848 = vmatmul.mubr.bf16.gmra.mrb[0].mxu0 %v791
      %v849 = vpop.f32.mrb[0].mxu0
      %v850 = vadd.f32 0.0, %v849
      %v851 = vpop.f32.mrb[0].mxu0
      %v852 = vpop.f32.mrb[0].mxu0
      %v853 = vadd.f32 0.0, %v852
      %v854 = vpop.f32.mrb[0].mxu0
      %855 = vmatprep.mubr.bf16.mxu0 0
      %856 = vmatmul.mubr.bf16.gmra.mrb[0].mxu0 %v794
      %v857 = vpop.f32.mrb[0].mxu0
      %v858 = vadd.f32 0.0, %v857
      %v859 = vpop.f32.mrb[0].mxu0
      %v860 = vpop.f32.mrb[0].mxu0
      %v861 = vadd.f32 0.0, %v860
      %v862 = vpop.f32.mrb[0].mxu0
      %863 = vdwg.mxu0
      %v864 = vadd.f32 %v745, %v834
      %v865 = vadd.f32 %v746, %v837
      %v866 = vadd.f32 %v747, %v842
      %v867 = vadd.f32 %v748, %v845
      %v868 = vadd.f32 %v749, %v850
      %v869 = vadd.f32 %v750, %v853
      %v870 = vadd.f32 %v751, %v858
      %v871 = vadd.f32 %v752, %v861
      %v872 = vld [vmem:[%s753] sm:$0xf]
      %v873 = vld [vmem:[%s753 + $0x4] sm:$0x1]
      %v874 = vld [vmem:[%s753 + $0x8] sm:$0xf]
      %v875 = vld [vmem:[%s753 + $0xc] sm:$0x1]
      %v876 = vld [vmem:[%s753 + $0x10] sm:$0xf]
      %v877 = vld [vmem:[%s753 + $0x14] sm:$0x1]
      %v878 = vld [vmem:[%s753 + $0x18] sm:$0xf]
      %v879 = vld [vmem:[%s753 + $0x1c] sm:$0x1]
      %v880 = vld [vmem:[%s753 + $0x20] sm:$0xf]
      %v881 = vld [vmem:[%s753 + $0x24] sm:$0x1]
      %v882 = vld [vmem:[%s753 + $0x28] sm:$0xf]
      %v883 = vld [vmem:[%s753 + $0x2c] sm:$0x1]
      %v884 = vld [vmem:[%s753 + $0x30] sm:$0xf]
      %v885 = vld [vmem:[%s753 + $0x34] sm:$0x1]
      %v886 = vld [vmem:[%s753 + $0x38] sm:$0xf]
      %v887 = vld [vmem:[%s753 + $0x3c] sm:$0x1]
      %s888 = scalar_lea.vmem %s248, 16
      %v889 = vld [vmem:[%s888] sm:$0xf]
      %v891 = vshrl.u32 %v872, 16
      %v893 = vrot.slane %v891, 4
      %v894 = vshll.u32 %v872, 16
      %v896 = vrot.slane %v894, 5
      %v897 = vor.u32 %v893, %v896
      %v898 = vrot.slane %v897, 4
      %v900 = vshll.u32 %v873, 16
      %v902 = vrot.slane %v900, 5
      %v903 = vsel %vm285, %v898, %v902
      %v905 = vshrl.u32 %v874, 16
      %v907 = vrot.slane %v905, 4
      %v908 = vshll.u32 %v874, 16
      %v910 = vrot.slane %v908, 5
      %v911 = vor.u32 %v907, %v910
      %v912 = vrot.slane %v911, 4
      %v914 = vshll.u32 %v875, 16
      %v916 = vrot.slane %v914, 5
      %v917 = vsel %vm285, %v912, %v916
      %v919 = vshrl.u32 %v876, 16
      %v921 = vrot.slane %v919, 4
      %v922 = vshll.u32 %v876, 16
      %v924 = vrot.slane %v922, 5
      %v925 = vor.u32 %v921, %v924
      %v926 = vrot.slane %v925, 4
      %v928 = vshll.u32 %v877, 16
      %v930 = vrot.slane %v928, 5
      %v931 = vsel %vm285, %v926, %v930
      %v933 = vshrl.u32 %v878, 16
      %v935 = vrot.slane %v933, 4
      %v936 = vshll.u32 %v878, 16
      %v938 = vrot.slane %v936, 5
      %v939 = vor.u32 %v935, %v938
      %v940 = vrot.slane %v939, 4
      %v942 = vshll.u32 %v879, 16
      %v944 = vrot.slane %v942, 5
      %v945 = vsel %vm285, %v940, %v944
      %v947 = vshrl.u32 %v880, 16
      %v949 = vrot.slane %v947, 4
      %v950 = vshll.u32 %v880, 16
      %v952 = vrot.slane %v950, 5
      %v953 = vor.u32 %v949, %v952
      %v954 = vrot.slane %v953, 4
      %v956 = vshll.u32 %v881, 16
      %v958 = vrot.slane %v956, 5
      %v959 = vsel %vm285, %v954, %v958
      %v961 = vshrl.u32 %v882, 16
      %v963 = vrot.slane %v961, 4
      %v964 = vshll.u32 %v882, 16
      %v966 = vrot.slane %v964, 5
      %v967 = vor.u32 %v963, %v966
      %v968 = vrot.slane %v967, 4
      %v970 = vshll.u32 %v883, 16
      %v972 = vrot.slane %v970, 5
      %v973 = vsel %vm285, %v968, %v972
      %v975 = vshrl.u32 %v884, 16
      %v977 = vrot.slane %v975, 4
      %v978 = vshll.u32 %v884, 16
      %v980 = vrot.slane %v978, 5
      %v981 = vor.u32 %v977, %v980
      %v982 = vrot.slane %v981, 4
      %v984 = vshll.u32 %v885, 16
      %v986 = vrot.slane %v984, 5
      %v987 = vsel %vm285, %v982, %v986
      %v989 = vshrl.u32 %v886, 16
      %v991 = vrot.slane %v989, 4
      %v992 = vshll.u32 %v886, 16
      %v994 = vrot.slane %v992, 5
      %v995 = vor.u32 %v991, %v994
      %v996 = vrot.slane %v995, 4
      %v998 = vshll.u32 %v887, 16
      %v1000 = vrot.slane %v998, 5
      %v1001 = vsel %vm285, %v996, %v1000
      %v1002 = vunpack.c.l.b16 %v903
      %v1003 = vunpack.c.l.b16 %v917
      %v1004 = vunpack.c.l.b16 %v931
      %v1005 = vunpack.c.l.b16 %v945
      %v1006 = vunpack.c.l.b16 %v959
      %v1007 = vunpack.c.l.b16 %v973
      %v1008 = vunpack.c.l.b16 %v987
      %v1009 = vunpack.c.l.b16 %v1001
      %v1010 = vpack.c.b16 %v1003, %v1002
      %v1011 = vpack.c.b16 %v1005, %v1004
      %v1012 = vpack.c.b16 %v1007, %v1006
      %v1013 = vpack.c.b16 %v1009, %v1008
      %v1015 = vsel %vm410, %v1010, 0
      %v1018 = vsel %vm410, %v1011, 0
      %v1021 = vsel %vm410, %v1012, 0
      %v1024 = vsel %vm410, %v1013, 0
      %v1027 = vsel %vm423, %v889, 0
      %1029 = vmatprep.subr.bf16.mxu0 0
      %1030 = vmatpush1.bf16.msra.mxu0 %v1027
      %1031 = vmatprep.subr.bf16.mxu0 0
      %1032 = vmatpush1.bf16.msra.mxu0 0
      %1033 = vmatprep.subr.bf16.mxu0 0
      %1034 = vmatpush1.bf16.msra.mxu0 0
      %1035 = vmatprep.subr.bf16.mxu0 0
      %1036 = vmatpush1.bf16.msra.mxu0 0
      %1037 = vmatprep.subr.bf16.mxu0 0
      %1038 = vmatpush1.bf16.msra.mxu0 0
      %1039 = vmatprep.subr.bf16.mxu0 0
      %1040 = vmatpush1.bf16.msra.mxu0 0
      %1041 = vmatprep.subr.bf16.mxu0 0
      %1042 = vmatpush1.bf16.msra.mxu0 0
      %1043 = vmatprep.subr.bf16.mxu0 0
      %1044 = vmatpush1.bf16.msra.mxu0 0
      %1045 = vmatprep.subr.bf16.mxu0 0
      %1046 = vmatpush1.bf16.msra.mxu0 0
      %1047 = vmatprep.subr.bf16.mxu0 0
      %1048 = vmatpush1.bf16.msra.mxu0 0
      %1049 = vmatprep.subr.bf16.mxu0 0
      %1050 = vmatpush1.bf16.msra.mxu0 0
      %1051 = vmatprep.subr.bf16.mxu0 0
      %1052 = vmatpush1.bf16.msra.mxu0 0
      %1053 = vmatprep.subr.bf16.mxu0 0
      %1054 = vmatpush1.bf16.msra.mxu0 0
      %1055 = vmatprep.subr.bf16.mxu0 0
      %1056 = vmatpush1.bf16.msra.mxu0 0
      %1057 = vmatprep.subr.bf16.mxu0 0
      %1058 = vmatpush1.bf16.msra.mxu0 0
      %1059 = vmatprep.subr.bf16.mxu0 0
      %1060 = vmatpush1.bf16.msra.mxu0 0
      %1061 = vmatprep.mubr.bf16.mxu0 0
      %1062 = vmatmul.mubr.bf16.gmra.mrb[0].mxu0 %v1015
      %v1063 = vpop.f32.mrb[0].mxu0
      %v1064 = vadd.f32 0.0, %v1063
      %v1065 = vpop.f32.mrb[0].mxu0
      %v1066 = vpop.f32.mrb[0].mxu0
      %v1067 = vadd.f32 0.0, %v1066
      %v1068 = vpop.f32.mrb[0].mxu0
      %1069 = vmatprep.mubr.bf16.mxu0 0
      %1070 = vmatmul.mubr.bf16.gmra.mrb[0].mxu0 %v1018
      %v1071 = vpop.f32.mrb[0].mxu0
      %v1072 = vadd.f32 0.0, %v1071
      %v1073 = vpop.f32.mrb[0].mxu0
      %v1074 = vpop.f32.mrb[0].mxu0
      %v1075 = vadd.f32 0.0, %v1074
      %v1076 = vpop.f32.mrb[0].mxu0
      %1077 = vmatprep.mubr.bf16.mxu0 0
      %1078 = vmatmul.mubr.bf16.gmra.mrb[0].mxu0 %v1021
      %v1079 = vpop.f32.mrb[0].mxu0
      %v1080 = vadd.f32 0.0, %v1079
      %v1081 = vpop.f32.mrb[0].mxu0
      %v1082 = vpop.f32.mrb[0].mxu0
      %v1083 = vadd.f32 0.0, %v1082
      %v1084 = vpop.f32.mrb[0].mxu0
      %1085 = vmatprep.mubr.bf16.mxu0 0
      %1086 = vmatmul.mubr.bf16.gmra.mrb[0].mxu0 %v1024
      %v1087 = vpop.f32.mrb[0].mxu0
      %v1088 = vadd.f32 0.0, %v1087
      %v1089 = vpop.f32.mrb[0].mxu0
      %v1090 = vpop.f32.mrb[0].mxu0
      %v1091 = vadd.f32 0.0, %v1090
      %v1092 = vpop.f32.mrb[0].mxu0
      %1093 = vdwg.mxu0
      %v1094 = vadd.f32 %v864, %v1064
      %v1095 = vadd.f32 %v865, %v1067
      %v1096 = vadd.f32 %v866, %v1072
      %v1097 = vadd.f32 %v867, %v1075
      %v1098 = vadd.f32 %v868, %v1080
      %v1099 = vadd.f32 %v869, %v1083
      %v1100 = vadd.f32 %v870, %v1088
      %v1101 = vadd.f32 %v871, %v1091
      %v1102 = vld [vmem:[%s753] sm:$0xe]
      %v1103 = vld [vmem:[%s753 + $0x8] sm:$0xe]
      %v1104 = vld [vmem:[%s753 + $0x10] sm:$0xe]
      %v1105 = vld [vmem:[%s753 + $0x18] sm:$0xe]
      %v1106 = vld [vmem:[%s753 + $0x20] sm:$0xe]
      %v1107 = vld [vmem:[%s753 + $0x28] sm:$0xe]
      %v1108 = vld [vmem:[%s753 + $0x30] sm:$0xe]
      %v1109 = vld [vmem:[%s753 + $0x38] sm:$0xe]
      %s1110 = scalar_lea.vmem %s248, 20
      %v1111 = vld [vmem:[%s1110] sm:$0xf]
      %v1128 = vrot.slane %v1102, 5
      %v1129 = vrot.slane %v1128, 4
      %v1130 = vrot.slane %v873, 5
      %v1131 = vsel %vm620, %v1129, %v1130
      %v1132 = vrot.slane %v1103, 5
      %v1133 = vrot.slane %v1132, 4
      %v1134 = vrot.slane %v875, 5
      %v1135 = vsel %vm620, %v1133, %v1134
      %v1136 = vrot.slane %v1104, 5
      %v1137 = vrot.slane %v1136, 4
      %v1138 = vrot.slane %v877, 5
      %v1139 = vsel %vm620, %v1137, %v1138
      %v1140 = vrot.slane %v1105, 5
      %v1141 = vrot.slane %v1140, 4
      %v1142 = vrot.slane %v879, 5
      %v1143 = vsel %vm620, %v1141, %v1142
      %v1144 = vrot.slane %v1106, 5
      %v1145 = vrot.slane %v1144, 4
      %v1146 = vrot.slane %v881, 5
      %v1147 = vsel %vm620, %v1145, %v1146
      %v1148 = vrot.slane %v1107, 5
      %v1149 = vrot.slane %v1148, 4
      %v1150 = vrot.slane %v883, 5
      %v1151 = vsel %vm620, %v1149, %v1150
      %v1152 = vrot.slane %v1108, 5
      %v1153 = vrot.slane %v1152, 4
      %v1154 = vrot.slane %v885, 5
      %v1155 = vsel %vm620, %v1153, %v1154
      %v1156 = vrot.slane %v1109, 5
      %v1157 = vrot.slane %v1156, 4
      %v1158 = vrot.slane %v887, 5
      %v1159 = vsel %vm620, %v1157, %v1158
      %v1160 = vunpack.c.l.b16 %v1131
      %v1161 = vunpack.c.l.b16 %v1135
      %v1162 = vunpack.c.l.b16 %v1139
      %v1163 = vunpack.c.l.b16 %v1143
      %v1164 = vunpack.c.l.b16 %v1147
      %v1165 = vunpack.c.l.b16 %v1151
      %v1166 = vunpack.c.l.b16 %v1155
      %v1167 = vunpack.c.l.b16 %v1159
      %v1168 = vpack.c.b16 %v1161, %v1160
      %v1169 = vpack.c.b16 %v1163, %v1162
      %v1170 = vpack.c.b16 %v1165, %v1164
      %v1171 = vpack.c.b16 %v1167, %v1166
      %v1173 = vsel %vm410, %v1168, 0
      %v1176 = vsel %vm410, %v1169, 0
      %v1179 = vsel %vm410, %v1170, 0
      %v1182 = vsel %vm410, %v1171, 0
      %v1185 = vsel %vm423, %v1111, 0
      %1187 = vmatprep.subr.bf16.mxu0 0
      %1188 = vmatpush1.bf16.msra.mxu0 %v1185
      %1189 = vmatprep.subr.bf16.mxu0 0
      %1190 = vmatpush1.bf16.msra.mxu0 0
      %1191 = vmatprep.subr.bf16.mxu0 0
      %1192 = vmatpush1.bf16.msra.mxu0 0
      %1193 = vmatprep.subr.bf16.mxu0 0
      %1194 = vmatpush1.bf16.msra.mxu0 0
      %1195 = vmatprep.subr.bf16.mxu0 0
      %1196 = vmatpush1.bf16.msra.mxu0 0
      %1197 = vmatprep.subr.bf16.mxu0 0
      %1198 = vmatpush1.bf16.msra.mxu0 0
      %1199 = vmatprep.subr.bf16.mxu0 0
      %1200 = vmatpush1.bf16.msra.mxu0 0
      %1201 = vmatprep.subr.bf16.mxu0 0
      %1202 = vmatpush1.bf16.msra.mxu0 0
      %1203 = vmatprep.subr.bf16.mxu0 0
      %1204 = vmatpush1.bf16.msra.mxu0 0
      %1205 = vmatprep.subr.bf16.mxu0 0
      %1206 = vmatpush1.bf16.msra.mxu0 0
      %1207 = vmatprep.subr.bf16.mxu0 0
      %1208 = vmatpush1.bf16.msra.mxu0 0
      %1209 = vmatprep.subr.bf16.mxu0 0
      %1210 = vmatpush1.bf16.msra.mxu0 0
      %1211 = vmatprep.subr.bf16.mxu0 0
      %1212 = vmatpush1.bf16.msra.mxu0 0
      %1213 = vmatprep.subr.bf16.mxu0 0
      %1214 = vmatpush1.bf16.msra.mxu0 0
      %1215 = vmatprep.subr.bf16.mxu0 0
      %1216 = vmatpush1.bf16.msra.mxu0 0
      %1217 = vmatprep.subr.bf16.mxu0 0
      %1218 = vmatpush1.bf16.msra.mxu0 0
      %1219 = vmatprep.mubr.bf16.mxu0 0
      %1220 = vmatmul.mubr.bf16.gmra.mrb[0].mxu0 %v1173
      %v1221 = vpop.f32.mrb[0].mxu0
      %v1222 = vadd.f32 0.0, %v1221
      %v1223 = vpop.f32.mrb[0].mxu0
      %v1224 = vpop.f32.mrb[0].mxu0
      %v1225 = vadd.f32 0.0, %v1224
      %v1226 = vpop.f32.mrb[0].mxu0
      %1227 = vmatprep.mubr.bf16.mxu0 0
      %1228 = vmatmul.mubr.bf16.gmra.mrb[0].mxu0 %v1176
      %v1229 = vpop.f32.mrb[0].mxu0
      %v1230 = vadd.f32 0.0, %v1229
      %v1231 = vpop.f32.mrb[0].mxu0
      %v1232 = vpop.f32.mrb[0].mxu0
      %v1233 = vadd.f32 0.0, %v1232
      %v1234 = vpop.f32.mrb[0].mxu0
      %1235 = vmatprep.mubr.bf16.mxu0 0
      %1236 = vmatmul.mubr.bf16.gmra.mrb[0].mxu0 %v1179
      %v1237 = vpop.f32.mrb[0].mxu0
      %v1238 = vadd.f32 0.0, %v1237
      %v1239 = vpop.f32.mrb[0].mxu0
      %v1240 = vpop.f32.mrb[0].mxu0
      %v1241 = vadd.f32 0.0, %v1240
      %v1242 = vpop.f32.mrb[0].mxu0
      %1243 = vmatprep.mubr.bf16.mxu0 0
      %1244 = vmatmul.mubr.bf16.gmra.mrb[0].mxu0 %v1182
      %v1245 = vpop.f32.mrb[0].mxu0
      %v1246 = vadd.f32 0.0, %v1245
      %v1247 = vpop.f32.mrb[0].mxu0
      %v1248 = vpop.f32.mrb[0].mxu0
      %v1249 = vadd.f32 0.0, %v1248
      %v1250 = vpop.f32.mrb[0].mxu0
      %1251 = vdwg.mxu0
      %v1252 = vadd.f32 %v1094, %v1222
      %v1253 = vadd.f32 %v1095, %v1225
      %v1254 = vadd.f32 %v1096, %v1230
      %v1255 = vadd.f32 %v1097, %v1233
      %v1256 = vadd.f32 %v1098, %v1238
      %v1257 = vadd.f32 %v1099, %v1241
      %v1258 = vadd.f32 %v1100, %v1246
      %v1259 = vadd.f32 %v1101, %v1249
      %s1260 = scalar_lea.vmem %s244, 16
      %v1261 = vld [vmem:[%s1260] sm:$0xf]
      %v1262 = vld [vmem:[%s1260 + $0x8] sm:$0xf]
      %v1263 = vld [vmem:[%s1260 + $0x10] sm:$0xf]
      %v1264 = vld [vmem:[%s1260 + $0x18] sm:$0xf]
      %v1265 = vld [vmem:[%s1260 + $0x20] sm:$0xf]
      %v1266 = vld [vmem:[%s1260 + $0x28] sm:$0xf]
      %v1267 = vld [vmem:[%s1260 + $0x30] sm:$0xf]
      %v1268 = vld [vmem:[%s1260 + $0x38] sm:$0xf]
      %s1269 = scalar_lea.vmem %s248, 24
      %v1270 = vld [vmem:[%s1269] sm:$0xf]
      %v1279 = vunpack.c.l.b16 %v1261
      %v1280 = vunpack.c.l.b16 %v1262
      %v1281 = vunpack.c.l.b16 %v1263
      %v1282 = vunpack.c.l.b16 %v1264
      %v1283 = vunpack.c.l.b16 %v1265
      %v1284 = vunpack.c.l.b16 %v1266
      %v1285 = vunpack.c.l.b16 %v1267
      %v1286 = vunpack.c.l.b16 %v1268
      %v1287 = vpack.c.b16 %v1280, %v1279
      %v1288 = vpack.c.b16 %v1282, %v1281
      %v1289 = vpack.c.b16 %v1284, %v1283
      %v1290 = vpack.c.b16 %v1286, %v1285
      %v1292 = vsel %vm410, %v1287, 0
      %v1295 = vsel %vm410, %v1288, 0
      %v1298 = vsel %vm410, %v1289, 0
      %v1301 = vsel %vm410, %v1290, 0
      %v1304 = vsel %vm423, %v1270, 0
      %1306 = vmatprep.subr.bf16.mxu0 0
      %1307 = vmatpush1.bf16.msra.mxu0 %v1304
      %1308 = vmatprep.subr.bf16.mxu0 0
      %1309 = vmatpush1.bf16.msra.mxu0 0
      %1310 = vmatprep.subr.bf16.mxu0 0
      %1311 = vmatpush1.bf16.msra.mxu0 0
      %1312 = vmatprep.subr.bf16.mxu0 0
      %1313 = vmatpush1.bf16.msra.mxu0 0
      %1314 = vmatprep.subr.bf16.mxu0 0
      %1315 = vmatpush1.bf16.msra.mxu0 0
      %1316 = vmatprep.subr.bf16.mxu0 0
      %1317 = vmatpush1.bf16.msra.mxu0 0
      %1318 = vmatprep.subr.bf16.mxu0 0
      %1319 = vmatpush1.bf16.msra.mxu0 0
      %1320 = vmatprep.subr.bf16.mxu0 0
      %1321 = vmatpush1.bf16.msra.mxu0 0
      %1322 = vmatprep.subr.bf16.mxu0 0
      %1323 = vmatpush1.bf16.msra.mxu0 0
      %1324 = vmatprep.subr.bf16.mxu0 0
      %1325 = vmatpush1.bf16.msra.mxu0 0
      %1326 = vmatprep.subr.bf16.mxu0 0
      %1327 = vmatpush1.bf16.msra.mxu0 0
      %1328 = vmatprep.subr.bf16.mxu0 0
      %1329 = vmatpush1.bf16.msra.mxu0 0
      %1330 = vmatprep.subr.bf16.mxu0 0
      %1331 = vmatpush1.bf16.msra.mxu0 0
      %1332 = vmatprep.subr.bf16.mxu0 0
      %1333 = vmatpush1.bf16.msra.mxu0 0
      %1334 = vmatprep.subr.bf16.mxu0 0
      %1335 = vmatpush1.bf16.msra.mxu0 0
      %1336 = vmatprep.subr.bf16.mxu0 0
      %1337 = vmatpush1.bf16.msra.mxu0 0
      %1338 = vmatprep.mubr.bf16.mxu0 0
      %1339 = vmatmul.mubr.bf16.gmra.mrb[0].mxu0 %v1292
      %v1340 = vpop.f32.mrb[0].mxu0
      %v1341 = vadd.f32 0.0, %v1340
      %v1342 = vpop.f32.mrb[0].mxu0
      %v1343 = vpop.f32.mrb[0].mxu0
      %v1344 = vadd.f32 0.0, %v1343
      %v1345 = vpop.f32.mrb[0].mxu0
      %1346 = vmatprep.mubr.bf16.mxu0 0
      %1347 = vmatmul.mubr.bf16.gmra.mrb[0].mxu0 %v1295
      %v1348 = vpop.f32.mrb[0].mxu0
      %v1349 = vadd.f32 0.0, %v1348
      %v1350 = vpop.f32.mrb[0].mxu0
      %v1351 = vpop.f32.mrb[0].mxu0
      %v1352 = vadd.f32 0.0, %v1351
      %v1353 = vpop.f32.mrb[0].mxu0
      %1354 = vmatprep.mubr.bf16.mxu0 0
      %1355 = vmatmul.mubr.bf16.gmra.mrb[0].mxu0 %v1298
      %v1356 = vpop.f32.mrb[0].mxu0
      %v1357 = vadd.f32 0.0, %v1356
      %v1358 = vpop.f32.mrb[0].mxu0
      %v1359 = vpop.f32.mrb[0].mxu0
      %v1360 = vadd.f32 0.0, %v1359
      %v1361 = vpop.f32.mrb[0].mxu0
      %1362 = vmatprep.mubr.bf16.mxu0 0
      %1363 = vmatmul.mubr.bf16.gmra.mrb[0].mxu0 %v1301
      %v1364 = vpop.f32.mrb[0].mxu0
      %v1365 = vadd.f32 0.0, %v1364
      %v1366 = vpop.f32.mrb[0].mxu0
      %v1367 = vpop.f32.mrb[0].mxu0
      %v1368 = vadd.f32 0.0, %v1367
      %v1369 = vpop.f32.mrb[0].mxu0
      %1370 = vdwg.mxu0
      %v1371 = vadd.f32 %v1252, %v1341
      %v1372 = vadd.f32 %v1253, %v1344
      %v1373 = vadd.f32 %v1254, %v1349
      %v1374 = vadd.f32 %v1255, %v1352
      %v1375 = vadd.f32 %v1256, %v1357
      %v1376 = vadd.f32 %v1257, %v1360
      %v1377 = vadd.f32 %v1258, %v1365
      %v1378 = vadd.f32 %v1259, %v1368
      %v1379 = vld [vmem:[%s1260] sm:$0xf]
      %v1380 = vld [vmem:[%s1260 + $0x4] sm:$0x1]
      %v1381 = vld [vmem:[%s1260 + $0x8] sm:$0xf]
      %v1382 = vld [vmem:[%s1260 + $0xc] sm:$0x1]
      %v1383 = vld [vmem:[%s1260 + $0x10] sm:$0xf]
      %v1384 = vld [vmem:[%s1260 + $0x14] sm:$0x1]
      %v1385 = vld [vmem:[%s1260 + $0x18] sm:$0xf]
      %v1386 = vld [vmem:[%s1260 + $0x1c] sm:$0x1]
      %v1387 = vld [vmem:[%s1260 + $0x20] sm:$0xf]
      %v1388 = vld [vmem:[%s1260 + $0x24] sm:$0x1]
      %v1389 = vld [vmem:[%s1260 + $0x28] sm:$0xf]
      %v1390 = vld [vmem:[%s1260 + $0x2c] sm:$0x1]
      %v1391 = vld [vmem:[%s1260 + $0x30] sm:$0xf]
      %v1392 = vld [vmem:[%s1260 + $0x34] sm:$0x1]
      %v1393 = vld [vmem:[%s1260 + $0x38] sm:$0xf]
      %v1394 = vld [vmem:[%s1260 + $0x3c] sm:$0x1]
      %s1395 = scalar_lea.vmem %s248, 28
      %v1396 = vld [vmem:[%s1395] sm:$0xf]
      %v1398 = vshrl.u32 %v1379, 16
      %v1400 = vrot.slane %v1398, 4
      %v1401 = vshll.u32 %v1379, 16
      %v1403 = vrot.slane %v1401, 5
      %v1404 = vor.u32 %v1400, %v1403
      %v1405 = vrot.slane %v1404, 4
      %v1407 = vshll.u32 %v1380, 16
      %v1409 = vrot.slane %v1407, 5
      %v1410 = vsel %vm285, %v1405, %v1409
      %v1412 = vshrl.u32 %v1381, 16
      %v1414 = vrot.slane %v1412, 4
      %v1415 = vshll.u32 %v1381, 16
      %v1417 = vrot.slane %v1415, 5
      %v1418 = vor.u32 %v1414, %v1417
      %v1419 = vrot.slane %v1418, 4
      %v1421 = vshll.u32 %v1382, 16
      %v1423 = vrot.slane %v1421, 5
      %v1424 = vsel %vm285, %v1419, %v1423
      %v1426 = vshrl.u32 %v1383, 16
      %v1428 = vrot.slane %v1426, 4
      %v1429 = vshll.u32 %v1383, 16
      %v1431 = vrot.slane %v1429, 5
      %v1432 = vor.u32 %v1428, %v1431
      %v1433 = vrot.slane %v1432, 4
      %v1435 = vshll.u32 %v1384, 16
      %v1437 = vrot.slane %v1435, 5
      %v1438 = vsel %vm285, %v1433, %v1437
      %v1440 = vshrl.u32 %v1385, 16
      %v1442 = vrot.slane %v1440, 4
      %v1443 = vshll.u32 %v1385, 16
      %v1445 = vrot.slane %v1443, 5
      %v1446 = vor.u32 %v1442, %v1445
      %v1447 = vrot.slane %v1446, 4
      %v1449 = vshll.u32 %v1386, 16
      %v1451 = vrot.slane %v1449, 5
      %v1452 = vsel %vm285, %v1447, %v1451
      %v1454 = vshrl.u32 %v1387, 16
      %v1456 = vrot.slane %v1454, 4
      %v1457 = vshll.u32 %v1387, 16
      %v1459 = vrot.slane %v1457, 5
      %v1460 = vor.u32 %v1456, %v1459
      %v1461 = vrot.slane %v1460, 4
      %v1463 = vshll.u32 %v1388, 16
      %v1465 = vrot.slane %v1463, 5
      %v1466 = vsel %vm285, %v1461, %v1465
      %v1468 = vshrl.u32 %v1389, 16
      %v1470 = vrot.slane %v1468, 4
      %v1471 = vshll.u32 %v1389, 16
      %v1473 = vrot.slane %v1471, 5
      %v1474 = vor.u32 %v1470, %v1473
      %v1475 = vrot.slane %v1474, 4
      %v1477 = vshll.u32 %v1390, 16
      %v1479 = vrot.slane %v1477, 5
      %v1480 = vsel %vm285, %v1475, %v1479
      %v1482 = vshrl.u32 %v1391, 16
      %v1484 = vrot.slane %v1482, 4
      %v1485 = vshll.u32 %v1391, 16
      %v1487 = vrot.slane %v1485, 5
      %v1488 = vor.u32 %v1484, %v1487
      %v1489 = vrot.slane %v1488, 4
      %v1491 = vshll.u32 %v1392, 16
      %v1493 = vrot.slane %v1491, 5
      %v1494 = vsel %vm285, %v1489, %v1493
      %v1496 = vshrl.u32 %v1393, 16
      %v1498 = vrot.slane %v1496, 4
      %v1499 = vshll.u32 %v1393, 16
      %v1501 = vrot.slane %v1499, 5
      %v1502 = vor.u32 %v1498, %v1501
      %v1503 = vrot.slane %v1502, 4
      %v1505 = vshll.u32 %v1394, 16
      %v1507 = vrot.slane %v1505, 5
      %v1508 = vsel %vm285, %v1503, %v1507
      %v1509 = vunpack.c.l.b16 %v1410
      %v1510 = vunpack.c.l.b16 %v1424
      %v1511 = vunpack.c.l.b16 %v1438
      %v1512 = vunpack.c.l.b16 %v1452
      %v1513 = vunpack.c.l.b16 %v1466
      %v1514 = vunpack.c.l.b16 %v1480
      %v1515 = vunpack.c.l.b16 %v1494
      %v1516 = vunpack.c.l.b16 %v1508
      %v1517 = vpack.c.b16 %v1510, %v1509
      %v1518 = vpack.c.b16 %v1512, %v1511
      %v1519 = vpack.c.b16 %v1514, %v1513
      %v1520 = vpack.c.b16 %v1516, %v1515
      %v1522 = vsel %vm410, %v1517, 0
      %v1525 = vsel %vm410, %v1518, 0
      %v1528 = vsel %vm410, %v1519, 0
      %v1531 = vsel %vm410, %v1520, 0
      %v1534 = vsel %vm423, %v1396, 0
      %1536 = vmatprep.subr.bf16.mxu0 0
      %1537 = vmatpush1.bf16.msra.mxu0 %v1534
      %1538 = vmatprep.subr.bf16.mxu0 0
      %1539 = vmatpush1.bf16.msra.mxu0 0
      %1540 = vmatprep.subr.bf16.mxu0 0
      %1541 = vmatpush1.bf16.msra.mxu0 0
      %1542 = vmatprep.subr.bf16.mxu0 0
      %1543 = vmatpush1.bf16.msra.mxu0 0
      %1544 = vmatprep.subr.bf16.mxu0 0
      %1545 = vmatpush1.bf16.msra.mxu0 0
      %1546 = vmatprep.subr.bf16.mxu0 0
      %1547 = vmatpush1.bf16.msra.mxu0 0
      %1548 = vmatprep.subr.bf16.mxu0 0
      %1549 = vmatpush1.bf16.msra.mxu0 0
      %1550 = vmatprep.subr.bf16.mxu0 0
      %1551 = vmatpush1.bf16.msra.mxu0 0
      %1552 = vmatprep.subr.bf16.mxu0 0
      %1553 = vmatpush1.bf16.msra.mxu0 0
      %1554 = vmatprep.subr.bf16.mxu0 0
      %1555 = vmatpush1.bf16.msra.mxu0 0
      %1556 = vmatprep.subr.bf16.mxu0 0
      %1557 = vmatpush1.bf16.msra.mxu0 0
      %1558 = vmatprep.subr.bf16.mxu0 0
      %1559 = vmatpush1.bf16.msra.mxu0 0
      %1560 = vmatprep.subr.bf16.mxu0 0
      %1561 = vmatpush1.bf16.msra.mxu0 0
      %1562 = vmatprep.subr.bf16.mxu0 0
      %1563 = vmatpush1.bf16.msra.mxu0 0
      %1564 = vmatprep.subr.bf16.mxu0 0
      %1565 = vmatpush1.bf16.msra.mxu0 0
      %1566 = vmatprep.subr.bf16.mxu0 0
      %1567 = vmatpush1.bf16.msra.mxu0 0
      %1568 = vmatprep.mubr.bf16.mxu0 0
      %1569 = vmatmul.mubr.bf16.gmra.mrb[0].mxu0 %v1522
      %v1570 = vpop.f32.mrb[0].mxu0
      %v1571 = vadd.f32 0.0, %v1570
      %v1572 = vpop.f32.mrb[0].mxu0
      %v1573 = vpop.f32.mrb[0].mxu0
      %v1574 = vadd.f32 0.0, %v1573
      %v1575 = vpop.f32.mrb[0].mxu0
      %1576 = vmatprep.mubr.bf16.mxu0 0
      %1577 = vmatmul.mubr.bf16.gmra.mrb[0].mxu0 %v1525
      %v1578 = vpop.f32.mrb[0].mxu0
      %v1579 = vadd.f32 0.0, %v1578
      %v1580 = vpop.f32.mrb[0].mxu0
      %v1581 = vpop.f32.mrb[0].mxu0
      %v1582 = vadd.f32 0.0, %v1581
      %v1583 = vpop.f32.mrb[0].mxu0
      %1584 = vmatprep.mubr.bf16.mxu0 0
      %1585 = vmatmul.mubr.bf16.gmra.mrb[0].mxu0 %v1528
      %v1586 = vpop.f32.mrb[0].mxu0
      %v1587 = vadd.f32 0.0, %v1586
      %v1588 = vpop.f32.mrb[0].mxu0
      %v1589 = vpop.f32.mrb[0].mxu0
      %v1590 = vadd.f32 0.0, %v1589
      %v1591 = vpop.f32.mrb[0].mxu0
      %1592 = vmatprep.mubr.bf16.mxu0 0
      %1593 = vmatmul.mubr.bf16.gmra.mrb[0].mxu0 %v1531
      %v1594 = vpop.f32.mrb[0].mxu0
      %v1595 = vadd.f32 0.0, %v1594
      %v1596 = vpop.f32.mrb[0].mxu0
      %v1597 = vpop.f32.mrb[0].mxu0
      %v1598 = vadd.f32 0.0, %v1597
      %v1599 = vpop.f32.mrb[0].mxu0
      %1600 = vdwg.mxu0
      %v1601 = vadd.f32 %v1371, %v1571
      %v1602 = vadd.f32 %v1372, %v1574
      %v1603 = vadd.f32 %v1373, %v1579
      %v1604 = vadd.f32 %v1374, %v1582
      %v1605 = vadd.f32 %v1375, %v1587
      %v1606 = vadd.f32 %v1376, %v1590
      %v1607 = vadd.f32 %v1377, %v1595
      %v1608 = vadd.f32 %v1378, %v1598
      %v1609 = vld [vmem:[%s1260] sm:$0xe]
      %v1610 = vld [vmem:[%s1260 + $0x8] sm:$0xe]
      %v1611 = vld [vmem:[%s1260 + $0x10] sm:$0xe]
      %v1612 = vld [vmem:[%s1260 + $0x18] sm:$0xe]
      %v1613 = vld [vmem:[%s1260 + $0x20] sm:$0xe]
      %v1614 = vld [vmem:[%s1260 + $0x28] sm:$0xe]
      %v1615 = vld [vmem:[%s1260 + $0x30] sm:$0xe]
      %v1616 = vld [vmem:[%s1260 + $0x38] sm:$0xe]
      %s1617 = scalar_lea.vmem %s248, 32
      %v1618 = vld [vmem:[%s1617] sm:$0xf]
      %v1635 = vrot.slane %v1609, 5
      %v1636 = vrot.slane %v1635, 4
      %v1637 = vrot.slane %v1380, 5
      %v1638 = vsel %vm620, %v1636, %v1637
      %v1639 = vrot.slane %v1610, 5
      %v1640 = vrot.slane %v1639, 4
      %v1641 = vrot.slane %v1382, 5
      %v1642 = vsel %vm620, %v1640, %v1641
      %v1643 = vrot.slane %v1611, 5
      %v1644 = vrot.slane %v1643, 4
      %v1645 = vrot.slane %v1384, 5
      %v1646 = vsel %vm620, %v1644, %v1645
      %v1647 = vrot.slane %v1612, 5
      %v1648 = vrot.slane %v1647, 4
      %v1649 = vrot.slane %v1386, 5
      %v1650 = vsel %vm620, %v1648, %v1649
      %v1651 = vrot.slane %v1613, 5
      %v1652 = vrot.slane %v1651, 4
      %v1653 = vrot.slane %v1388, 5
      %v1654 = vsel %vm620, %v1652, %v1653
      %v1655 = vrot.slane %v1614, 5
      %v1656 = vrot.slane %v1655, 4
      %v1657 = vrot.slane %v1390, 5
      %v1658 = vsel %vm620, %v1656, %v1657
      %v1659 = vrot.slane %v1615, 5
      %v1660 = vrot.slane %v1659, 4
      %v1661 = vrot.slane %v1392, 5
      %v1662 = vsel %vm620, %v1660, %v1661
      %v1663 = vrot.slane %v1616, 5
      %v1664 = vrot.slane %v1663, 4
      %v1665 = vrot.slane %v1394, 5
      %v1666 = vsel %vm620, %v1664, %v1665
      %v1667 = vunpack.c.l.b16 %v1638
      %v1668 = vunpack.c.l.b16 %v1642
      %v1669 = vunpack.c.l.b16 %v1646
      %v1670 = vunpack.c.l.b16 %v1650
      %v1671 = vunpack.c.l.b16 %v1654
      %v1672 = vunpack.c.l.b16 %v1658
      %v1673 = vunpack.c.l.b16 %v1662
      %v1674 = vunpack.c.l.b16 %v1666
      %v1675 = vpack.c.b16 %v1668, %v1667
      %v1676 = vpack.c.b16 %v1670, %v1669
      %v1677 = vpack.c.b16 %v1672, %v1671
      %v1678 = vpack.c.b16 %v1674, %v1673
      %v1680 = vsel %vm410, %v1675, 0
      %v1683 = vsel %vm410, %v1676, 0
      %v1686 = vsel %vm410, %v1677, 0
      %v1689 = vsel %vm410, %v1678, 0
      %v1692 = vsel %vm423, %v1618, 0
      %1694 = vmatprep.subr.bf16.mxu0 0
      %1695 = vmatpush1.bf16.msra.mxu0 %v1692
      %1696 = vmatprep.subr.bf16.mxu0 0
      %1697 = vmatpush1.bf16.msra.mxu0 0
      %1698 = vmatprep.subr.bf16.mxu0 0
      %1699 = vmatpush1.bf16.msra.mxu0 0
      %1700 = vmatprep.subr.bf16.mxu0 0
      %1701 = vmatpush1.bf16.msra.mxu0 0
      %1702 = vmatprep.subr.bf16.mxu0 0
      %1703 = vmatpush1.bf16.msra.mxu0 0
      %1704 = vmatprep.subr.bf16.mxu0 0
      %1705 = vmatpush1.bf16.msra.mxu0 0
      %1706 = vmatprep.subr.bf16.mxu0 0
      %1707 = vmatpush1.bf16.msra.mxu0 0
      %1708 = vmatprep.subr.bf16.mxu0 0
      %1709 = vmatpush1.bf16.msra.mxu0 0
      %1710 = vmatprep.subr.bf16.mxu0 0
      %1711 = vmatpush1.bf16.msra.mxu0 0
      %1712 = vmatprep.subr.bf16.mxu0 0
      %1713 = vmatpush1.bf16.msra.mxu0 0
      %1714 = vmatprep.subr.bf16.mxu0 0
      %1715 = vmatpush1.bf16.msra.mxu0 0
      %1716 = vmatprep.subr.bf16.mxu0 0
      %1717 = vmatpush1.bf16.msra.mxu0 0
      %1718 = vmatprep.subr.bf16.mxu0 0
      %1719 = vmatpush1.bf16.msra.mxu0 0
      %1720 = vmatprep.subr.bf16.mxu0 0
      %1721 = vmatpush1.bf16.msra.mxu0 0
      %1722 = vmatprep.subr.bf16.mxu0 0
      %1723 = vmatpush1.bf16.msra.mxu0 0
      %1724 = vmatprep.subr.bf16.mxu0 0
      %1725 = vmatpush1.bf16.msra.mxu0 0
      %1726 = vmatprep.mubr.bf16.mxu0 0
      %1727 = vmatmul.mubr.bf16.gmra.mrb[0].mxu0 %v1680
      %v1728 = vpop.f32.mrb[0].mxu0
      %v1729 = vadd.f32 0.0, %v1728
      %v1730 = vpop.f32.mrb[0].mxu0
      %v1731 = vpop.f32.mrb[0].mxu0
      %v1732 = vadd.f32 0.0, %v1731
      %v1733 = vpop.f32.mrb[0].mxu0
      %1734 = vmatprep.mubr.bf16.mxu0 0
      %1735 = vmatmul.mubr.bf16.gmra.mrb[0].mxu0 %v1683
      %v1736 = vpop.f32.mrb[0].mxu0
      %v1737 = vadd.f32 0.0, %v1736
      %v1738 = vpop.f32.mrb[0].mxu0
      %v1739 = vpop.f32.mrb[0].mxu0
      %v1740 = vadd.f32 0.0, %v1739
      %v1741 = vpop.f32.mrb[0].mxu0
      %1742 = vmatprep.mubr.bf16.mxu0 0
      %1743 = vmatmul.mubr.bf16.gmra.mrb[0].mxu0 %v1686
      %v1744 = vpop.f32.mrb[0].mxu0
      %v1745 = vadd.f32 0.0, %v1744
      %v1746 = vpop.f32.mrb[0].mxu0
      %v1747 = vpop.f32.mrb[0].mxu0
      %v1748 = vadd.f32 0.0, %v1747
      %v1749 = vpop.f32.mrb[0].mxu0
      %1750 = vmatprep.mubr.bf16.mxu0 0
      %1751 = vmatmul.mubr.bf16.gmra.mrb[0].mxu0 %v1689
      %v1752 = vpop.f32.mrb[0].mxu0
      %v1753 = vadd.f32 0.0, %v1752
      %v1754 = vpop.f32.mrb[0].mxu0
      %v1755 = vpop.f32.mrb[0].mxu0
      %v1756 = vadd.f32 0.0, %v1755
      %v1757 = vpop.f32.mrb[0].mxu0
      %1758 = vdwg.mxu0
      %v1759 = vadd.f32 %v1601, %v1729
      %v1760 = vadd.f32 %v1602, %v1732
      %v1761 = vadd.f32 %v1603, %v1737
      %v1762 = vadd.f32 %v1604, %v1740
      %v1763 = vadd.f32 %v1605, %v1745
      %v1764 = vadd.f32 %v1606, %v1748
      %v1765 = vadd.f32 %v1607, %v1753
      %v1766 = vadd.f32 %v1608, %v1756
      %v1767 = vld [vmem:[%s251] sm:$0x1]
      %v1769 = vlaneseq
      %v1770 = vshrl.u32 %v1769, 7
      %v1771 = vsub.s32 0, %v1770
      %v1772 = vrot.slane %v1767, %v1771
      %v1774 = vadd.f32 %v1759, %v1772
      %v1775 = vadd.f32 %v1760, %v1772
      %v1776 = vadd.f32 %v1761, %v1772
      %v1777 = vadd.f32 %v1762, %v1772
      %v1778 = vadd.f32 %v1763, %v1772
      %v1779 = vadd.f32 %v1764, %v1772
      %v1780 = vadd.f32 %v1765, %v1772
      %v1781 = vadd.f32 %v1766, %v1772
      %vm1782 = vcmp.gt.f32.partialorder %v1774, 0.0
      %vm1783 = vcmp.gt.f32.partialorder %v1775, 0.0
      %vm1784 = vcmp.gt.f32.partialorder %v1776, 0.0
      %vm1785 = vcmp.gt.f32.partialorder %v1777, 0.0
      %vm1786 = vcmp.gt.f32.partialorder %v1778, 0.0
      %vm1787 = vcmp.gt.f32.partialorder %v1779, 0.0
      %vm1788 = vcmp.gt.f32.partialorder %v1780, 0.0
      %vm1789 = vcmp.gt.f32.partialorder %v1781, 0.0
      %v1790 = vld [vmem:[%s254] sm:$0x1]
      %v1792 = vlaneseq
      %v1793 = vshrl.u32 %v1792, 7
      %v1794 = vsub.s32 0, %v1793
      %v1795 = vrot.slane %v1790, %v1794
      %v1797 = vmul.f32 %v1795, %v1774
      %v1798 = vmul.f32 %v1795, %v1775
      %v1799 = vmul.f32 %v1795, %v1776
      %v1800 = vmul.f32 %v1795, %v1777
      %v1801 = vmul.f32 %v1795, %v1778
      %v1802 = vmul.f32 %v1795, %v1779
      %v1803 = vmul.f32 %v1795, %v1780
      %v1804 = vmul.f32 %v1795, %v1781
      %v1805 = vsel %vm1782, %v1774, %v1797
      %v1806 = vsel %vm1783, %v1775, %v1798
      %v1807 = vsel %vm1784, %v1776, %v1799
      %v1808 = vsel %vm1785, %v1777, %v1800
      %v1809 = vsel %vm1786, %v1778, %v1801
      %v1810 = vsel %vm1787, %v1779, %v1802
      %v1811 = vsel %vm1788, %v1780, %v1803
      %v1812 = vsel %vm1789, %v1781, %v1804
      %1813 = vst.msk [vmem:[%s262] sm:$0xff] %vm410, %v1805
      %1814 = vst.msk [vmem:[%s262 + $0x8] sm:$0xff] %vm410, %v1806
      %1815 = vst.msk [vmem:[%s262 + $0x10] sm:$0xff] %vm410, %v1807
      %1816 = vst.msk [vmem:[%s262 + $0x18] sm:$0xff] %vm410, %v1808
      %1817 = vst.msk [vmem:[%s262 + $0x20] sm:$0xff] %vm410, %v1809
      %1818 = vst.msk [vmem:[%s262 + $0x28] sm:$0xff] %vm410, %v1810
      %1819 = vst.msk [vmem:[%s262 + $0x30] sm:$0xff] %vm410, %v1811
      %1820 = vst.msk [vmem:[%s262 + $0x38] sm:$0xff] %vm410, %v1812
      %p1821 = scmp.lt.s32.totalorder %s19, 1
      %s1822 = scalar_select %p1821, %s19, 1
      %p1823 = scmp.lt.s32.totalorder %s20, 0
      %s1824 = scalar_select %p1823, %s20, 0
      %s1825 = smul.addr %s1822, 8
      %s1826 = sadd.s32 %s1824, %s1825
      %s1827 = smul.addr %s1826, 8
      %s1828 = scalar_lea.vmem %s4, %s1827
      // Predicated region
      $region37: #{conv2_forward.3} parent=35 // pred_check
        %p1829 = pneg %p151
      $region38: #{conv2_forward.3} parent=35 // pred_check_branch
        %1831 = sbr.rel (%p1829) target = $region40
      $region39: #{conv2_forward.3} parent=35 // pred_region
        _
      $region40: #{conv2_forward.3} parent=35 // pred_fallthru
        _
    $region36: #{conv2_forward.3} parent=5 // pred_fallthru
      _
    %p1832 = scmp.le.s32.totalorder 2, %s10
    // Predicated region
    $region41: #{conv2_forward.3} parent=5 // pred_check
      %p1833 = pneg %p1832
    $region42: #{conv2_forward.3} parent=5 // pred_check_branch
      %1835 = sbr.rel (%p1833) target = $region44
    $region43: #{conv2_forward.3} parent=5 // pred_region
      %s1836 = ssub.s32 %s10, 2
      // Predicated region
      $region45: #{conv2_forward.3} parent=43 // pred_check
        %p1837 = pneg %p157
      $region46: #{conv2_forward.3} parent=43 // pred_check_branch
        %1839 = sbr.rel (%p1837) target = $region48
      $region47: #{conv2_forward.3} parent=43 // pred_region
        %p1840 = scmp.lt.s32.totalorder %s21, 1
        %s1841 = scalar_select %p1840, %s21, 1
        %p1842 = scmp.lt.s32.totalorder %s22, 0
        %s1843 = scalar_select %p1842, %s22, 0
        %s1844 = smul.addr %s1841, 8
        %s1845 = sadd.s32 %s1843, %s1844
        %s1846 = smul.addr %s1845, 8
        %s1847 = scalar_lea.vmem %s4, %s1846
      $region48: #{conv2_forward.3} parent=43 // pred_fallthru
        _
    $region44: #{conv2_forward.3} parent=5 // pred_fallthru
      _
  $region6: #{conv2_forward.3} parent=0 // loop_footer
    %s14 = sadd.s32 1, %s10
  $region7: #{conv2_forward.3} parent=0 // loop_footer_branch
    %9 = sbr.rel target = $region3
  $region8: #{conv2_forward.3} parent=0 // loop_exit
    _

// kernel: conv2_forward.2
$region0: #{conv2_forward.2}
  #allocation0 [shape = 'u32[]', space=smem, size = 0x4, offset = 0x4, fixed_abs, tag = 'smem constant byte address 0x4 - core index']
  #allocation1 [shape = 'u32[144,128]{1,0:T(1,128)}', space=vmem, size = 0x12000, scoped, tag = 'internal scratch']
  %s0 = inlined_call_operand.vmem [shape: bf16[2,11,11,16], index: 0, kind: input, shape index: {}]
  %s1 = inlined_call_operand.vmem [shape: bf16[4,16,8], index: 1, kind: input, shape index: {}]
  %s2 = inlined_call_operand.vmem [shape: f32[1,8], index: 2, kind: input, shape index: {}]
  %s3 = inlined_call_operand.vmem [shape: f32[1,8], index: 3, kind: input, shape index: {}]
  %s4 = inlined_call_operand.vmem [shape: bf16[2,10,10,8], index: 4, kind: output, shape index: {}]
  %s5 = sld [smem:[#allocation0]]
  $region49: #{conv2_forward.2} parent=0
    _
  %s7 = ssub.s32 1, %s5
  %s8 = scalar_select 0, %s7, %s5
  loop: start=0, step=1, limit=4
  $region2: #{conv2_forward.2} parent=0 // loop_pre_header
    _
  $region3: #{conv2_forward.2} parent=0 // loop_header
    %s10 = sphi 0, %s14
    %p11 = scmp.ge.s32.totalorder %s10, 4
    %s17 = sphi 0, %s29
    %s18 = sphi 0, %s25
    %s19 = sphi 0, %s17
    %s20 = sphi 0, %s18
    %s21 = sphi 0, %s19
    %s22 = sphi 0, %s20
    %s32 = sphi 0, %s34
    %s35 = sphi 0, %s32
    %s36 = sphi 0, %s35
    %s52 = sphi 0, %s36
    %s58 = sphi 0, %s60
    %s61 = sphi 0, %s58
    %s62 = sphi 0, %s61
    %s78 = sphi 0, %s62
    %s84 = sphi 0, %s86
    %s87 = sphi 0, %s84
    %s88 = sphi 0, %s87
    %s104 = sphi 0, %s88
    %s110 = sphi 0, %s112
    %s113 = sphi 0, %s110
    %s114 = sphi 0, %s113
    %s130 = sphi 0, %s114
    %s138 = sphi 0, %s140
    %s141 = sphi 0, %s138
    %s142 = sphi 0, %s141
    %s158 = sphi 0, %s142
  $region4: #{conv2_forward.2} parent=0 // loop_header_branch
    %13 = sbr.rel (%p11) target = $region8
  $region5: #{conv2_forward.2} parent=0 // loop_body
    %s15 = ssub.s32 %s10, 1
    %s16 = ssub.s32 %s10, 2
    %s23 = sadd.s32 1, %s18
    %p24 = scmp.ge.s32.totalorder %s23, 1
    %s25 = scalar_select %p24, 0, %s23
    %s26 = sadd.s32 1, %s17
    %s27 = scalar_select %p24, %s26, %s17
    %p28 = scmp.ge.s32.totalorder %s27, 2
    %s29 = scalar_select %p28, 0, %s27
    %s30 = ssub.s32 %s17, %s29
    %p31 = scmp.eq.s32.totalorder %s30, 0
    %s33 = sadd.s32 %s32, 1
    %s34 = scalar_select %p31, %s32, %s33
    %p37 = pneg %p31
    %p38 = scmp.eq.s32.totalorder %s10, 1
    %p39 = por %p37, %p38
    %p40 = scmp.ne.s32.totalorder %s32, %s35
    %p41 = scmp.eq.s32.totalorder %s10, 0
    %p42 = por %p40, %p41
    %p43 = scmp.ne.s32.totalorder %s32, %s35
    %p44 = scmp.eq.s32.totalorder %s15, 1
    %p45 = por %p43, %p44
    %p46 = scmp.ne.s32.totalorder %s35, %s36
    %p47 = scmp.eq.s32.totalorder %s15, 0
    %p48 = por %p46, %p47
    %p49 = scmp.ne.s32.totalorder %s35, %s36
    %p50 = scmp.eq.s32.totalorder %s16, 1
    %p51 = por %p49, %p50
    %p53 = scmp.ne.s32.totalorder %s36, %s52
    %p54 = scmp.eq.s32.totalorder %s16, 0
    %p55 = por %p53, %p54
    %s56 = ssub.s32 %s18, %s25
    %p57 = scmp.eq.s32.totalorder %s56, 0
    %s59 = sadd.s32 %s58, 1
    %s60 = scalar_select %p57, %s58, %s59
    %p63 = pneg %p57
    %p64 = scmp.eq.s32.totalorder %s10, 1
    %p65 = por %p63, %p64
    %p66 = scmp.ne.s32.totalorder %s58, %s61
    %p67 = scmp.eq.s32.totalorder %s10, 0
    %p68 = por %p66, %p67
    %p69 = scmp.ne.s32.totalorder %s58, %s61
    %p70 = scmp.eq.s32.totalorder %s15, 1
    %p71 = por %p69, %p70
    %p72 = scmp.ne.s32.totalorder %s61, %s62
    %p73 = scmp.eq.s32.totalorder %s15, 0
    %p74 = por %p72, %p73
    %p75 = scmp.ne.s32.totalorder %s61, %s62
    %p76 = scmp.eq.s32.totalorder %s16, 1
    %p77 = por %p75, %p76
    %p79 = scmp.ne.s32.totalorder %s62, %s78
    %p80 = scmp.eq.s32.totalorder %s16, 0
    %p81 = por %p79, %p80
    %s82 = ssub.s32 %s18, %s25
    %p83 = scmp.eq.s32.totalorder %s82, 0
    %s85 = sadd.s32 %s84, 1
    %s86 = scalar_select %p83, %s84, %s85
    %p89 = pneg %p83
    %p90 = scmp.eq.s32.totalorder %s10, 1
    %p91 = por %p89, %p90
    %p92 = scmp.ne.s32.totalorder %s84, %s87
    %p93 = scmp.eq.s32.totalorder %s10, 0
    %p94 = por %p92, %p93
    %p95 = scmp.ne.s32.totalorder %s84, %s87
    %p96 = scmp.eq.s32.totalorder %s15, 1
    %p97 = por %p95, %p96
    %p98 = scmp.ne.s32.totalorder %s87, %s88
    %p99 = scmp.eq.s32.totalorder %s15, 0
    %p100 = por %p98, %p99
    %p101 = scmp.ne.s32.totalorder %s87, %s88
    %p102 = scmp.eq.s32.totalorder %s16, 1
    %p103 = por %p101, %p102
    %p105 = scmp.ne.s32.totalorder %s88, %s104
    %p106 = scmp.eq.s32.totalorder %s16, 0
    %p107 = por %p105, %p106
    %s108 = ssub.s32 %s18, %s25
    %p109 = scmp.eq.s32.totalorder %s108, 0
    %s111 = sadd.s32 %s110, 1
    %s112 = scalar_select %p109, %s110, %s111
    %p115 = pneg %p109
    %p116 = scmp.eq.s32.totalorder %s10, 1
    %p117 = por %p115, %p116
    %p118 = scmp.ne.s32.totalorder %s110, %s113
    %p119 = scmp.eq.s32.totalorder %s10, 0
    %p120 = por %p118, %p119
    %p121 = scmp.ne.s32.totalorder %s110, %s113
    %p122 = scmp.eq.s32.totalorder %s15, 1
    %p123 = por %p121, %p122
    %p124 = scmp.ne.s32.totalorder %s113, %s114
    %p125 = scmp.eq.s32.totalorder %s15, 0
    %p126 = por %p124, %p125
    %p127 = scmp.ne.s32.totalorder %s113, %s114
    %p128 = scmp.eq.s32.totalorder %s16, 1
    %p129 = por %p127, %p128
    %p131 = scmp.ne.s32.totalorder %s114, %s130
    %p132 = scmp.eq.s32.totalorder %s16, 0
    %p133 = por %p131, %p132
    %s134 = ssub.s32 %s17, %s29
    %s135 = ssub.s32 %s18, %s25
    %s136 = sor.u32 %s134, %s135
    %p137 = scmp.eq.s32.totalorder %s136, 0
    %s139 = sadd.s32 %s138, 1
    %s140 = scalar_select %p137, %s138, %s139
    %p143 = pneg %p137
    %p144 = scmp.eq.s32.totalorder %s10, 1
    %p145 = por %p143, %p144
    %p146 = scmp.ne.s32.totalorder %s138, %s141
    %p147 = scmp.eq.s32.totalorder %s10, 0
    %p148 = por %p146, %p147
    %p149 = scmp.ne.s32.totalorder %s138, %s141
    %p150 = scmp.eq.s32.totalorder %s15, 1
    %p151 = por %p149, %p150
    %p152 = scmp.ne.s32.totalorder %s141, %s142
    %p153 = scmp.eq.s32.totalorder %s15, 0
    %p154 = por %p152, %p153
    %p155 = scmp.ne.s32.totalorder %s141, %s142
    %p156 = scmp.eq.s32.totalorder %s16, 1
    %p157 = por %p155, %p156
    %p159 = scmp.ne.s32.totalorder %s142, %s158
    %p160 = scmp.eq.s32.totalorder %s16, 0
    %p161 = por %p159, %p160
    %p162 = scmp.le.s32.totalorder 1, %s10
    %p163 = scmp.lt.s32.totalorder %s10, 3
    %p164 = pnand %p162, %p163
    %p165 = pneg %p164
    // Predicated region
    $region9: #{conv2_forward.2} parent=5 // pred_check
      _
    $region10: #{conv2_forward.2} parent=5 // pred_check_branch
      %167 = sbr.rel (%p164) target = $region12
    $region11: #{conv2_forward.2} parent=5 // pred_region
      %s168 = ssub.s32 %s10, 1
      // Predicated region
      $region13: #{conv2_forward.2} parent=11 // pred_check
        %p169 = pneg %p74
      $region14: #{conv2_forward.2} parent=11 // pred_check_branch
        %171 = sbr.rel (%p169) target = $region16
      $region15: #{conv2_forward.2} parent=11 // pred_region
        %p172 = scmp.lt.s32.totalorder %s20, 0
        %s173 = scalar_select %p172, %s20, 0
        %s174 = smul.addr %s173, 4
        %s175 = scalar_lea.vmem %s1, %s174
      $region16: #{conv2_forward.2} parent=11 // pred_fallthru
        _
      // Predicated region
      $region17: #{conv2_forward.2} parent=11 // pred_check
        %p176 = pneg %p100
      $region18: #{conv2_forward.2} parent=11 // pred_check_branch
        %178 = sbr.rel (%p176) target = $region20
      $region19: #{conv2_forward.2} parent=11 // pred_region
        %p179 = scmp.lt.s32.totalorder %s20, 0
        %s180 = scalar_select %p179, %s20, 0
        %s181 = scalar_lea.vmem %s2, %s180
      $region20: #{conv2_forward.2} parent=11 // pred_fallthru
        _
      // Predicated region
      $region21: #{conv2_forward.2} parent=11 // pred_check
        %p182 = pneg %p126
      $region22: #{conv2_forward.2} parent=11 // pred_check_branch
        %184 = sbr.rel (%p182) target = $region24
      $region23: #{conv2_forward.2} parent=11 // pred_region
        %p185 = scmp.lt.s32.totalorder %s20, 0
        %s186 = scalar_select %p185, %s20, 0
        %s187 = scalar_lea.vmem %s3, %s186
      $region24: #{conv2_forward.2} parent=11 // pred_fallthru
        _
    $region12: #{conv2_forward.2} parent=5 // pred_fallthru
      _
    %p188 = scmp.lt.s32.totalorder %s10, 2
    // Predicated region
    $region25: #{conv2_forward.2} parent=5 // pred_check
      %p189 = pneg %p188
    $region26: #{conv2_forward.2} parent=5 // pred_check_branch
      %191 = sbr.rel (%p189) target = $region28
    $region27: #{conv2_forward.2} parent=5 // pred_region
      // Predicated region
      $region29: #{conv2_forward.2} parent=27 // pred_check
        %p192 = pneg %p42
      $region30: #{conv2_forward.2} parent=27 // pred_check_branch
        %194 = sbr.rel (%p192) target = $region32
      $region31: #{conv2_forward.2} parent=27 // pred_region
        %p195 = scmp.lt.s32.totalorder %s17, 1
        %s196 = scalar_select %p195, %s17, 1
        %s197 = smul.addr %s196, 22
        %s198 = smul.addr %s197, 4
        %s199 = scalar_lea.vmem %s0, %s198
      $region32: #{conv2_forward.2} parent=27 // pred_fallthru
        _
    $region28: #{conv2_forward.2} parent=5 // pred_fallthru
      _
    %p200 = scmp.le.s32.totalorder 1, %s10
    %p201 = scmp.lt.s32.totalorder %s10, 3
    %p202 = pnand %p200, %p201
    %p203 = pneg %p202
    // Predicated region
    $region33: #{conv2_forward.2} parent=5 // pred_check
      _
    $region34: #{conv2_forward.2} parent=5 // pred_check_branch
      %205 = sbr.rel (%p202) target = $region36
    $region35: #{conv2_forward.2} parent=5 // pred_region
      %s206 = ssub.s32 %s10, 1
      %p207 = scmp.lt.s32.totalorder %s19, 1
      %s208 = scalar_select %p207, %s19, 1
      %s209 = smul.addr %s208, 22
      %s210 = smul.addr %s209, 4
      %s211 = scalar_lea.vmem %s0, %s210
      %p212 = pneg %p48
      %p213 = pneg %p45
      %p214 = scmp.lt.s32.totalorder %s20, 0
      %s215 = scalar_select %p214, %s20, 0
      %s216 = smul.addr %s215, 4
      %s217 = scalar_lea.vmem %s1, %s216
      %p218 = pneg %p74
      %p219 = pneg %p71
      %p220 = scmp.lt.s32.totalorder %s20, 0
      %s221 = scalar_select %p220, %s20, 0
      %s222 = scalar_lea.vmem %s2, %s221
      %p223 = pneg %p100
      %p224 = pneg %p97
      %p225 = scmp.lt.s32.totalorder %s20, 0
      %s226 = scalar_select %p225, %s20, 0
      %s227 = scalar_lea.vmem %s3, %s226
      %p228 = pneg %p126
      %p229 = pneg %p123
      %p230 = pneg %p154
      %p231 = pneg %p151
      %p232 = scmp.lt.s32.totalorder %s19, 1
      %s233 = scalar_select %p232, %s19, 1
      %p234 = scmp.lt.s32.totalorder %s20, 0
      %s235 = scalar_select %p234, %s20, 0
      %s236 = smul.addr %s233, 20
      %s237 = sadd.s32 %s235, %s236
      %s238 = smul.addr %s237, 4
      %s239 = scalar_lea.vmem %s4, %s238
      %p240 = scmp.lt.s32.totalorder %s19, 1
      %s241 = scalar_select %p240, %s19, 1
      %s242 = smul.addr %s241, 22
      %s243 = smul.addr %s242, 4
      %s244 = scalar_lea.vmem %s0, %s243
      %p245 = scmp.lt.s32.totalorder %s20, 0
      %s246 = scalar_select %p245, %s20, 0
      %s247 = smul.addr %s246, 4
      %s248 = scalar_lea.vmem %s1, %s247
      %p249 = scmp.lt.s32.totalorder %s20, 0
      %s250 = scalar_select %p249, %s20, 0
      %s251 = scalar_lea.vmem %s2, %s250
      %p252 = scmp.lt.s32.totalorder %s20, 0
      %s253 = scalar_select %p252, %s20, 0
      %s254 = scalar_lea.vmem %s3, %s253
      %p255 = scmp.lt.s32.totalorder %s19, 1
      %s256 = scalar_select %p255, %s19, 1
      %p257 = scmp.lt.s32.totalorder %s20, 0
      %s258 = scalar_select %p257, %s20, 0
      %s259 = smul.addr %s256, 20
      %s260 = sadd.s32 %s258, %s259
      %s261 = smul.addr %s260, 4
      %s262 = scalar_lea.vmem %s4, %s261
      %v264 = vld [vmem:[%s244] sm:$0xf]
      %v265 = vld [vmem:[%s244 + $0x4] sm:$0x1]
      %v266 = vld [vmem:[%s244 + $0x8] sm:$0xf]
      %v267 = vld [vmem:[%s244 + $0xc] sm:$0x1]
      %v268 = vld [vmem:[%s244 + $0x10] sm:$0xf]
      %v269 = vld [vmem:[%s244 + $0x14] sm:$0x1]
      %v270 = vld [vmem:[%s244 + $0x18] sm:$0xf]
      %v271 = vld [vmem:[%s244 + $0x1c] sm:$0x1]
      %v272 = vld [vmem:[%s244 + $0x20] sm:$0xf]
      %v273 = vld [vmem:[%s244 + $0x24] sm:$0x1]
      %v274 = vld [vmem:[%s244 + $0x28] sm:$0xf]
      %v275 = vld [vmem:[%s244 + $0x2c] sm:$0x1]
      %v276 = vld [vmem:[%s244 + $0x30] sm:$0xf]
      %v277 = vld [vmem:[%s244 + $0x34] sm:$0x1]
      %v278 = vld [vmem:[%s244 + $0x38] sm:$0xf]
      %v279 = vld [vmem:[%s244 + $0x3c] sm:$0x1]
      %v280 = vld [vmem:[%s244 + $0x40] sm:$0xf]
      %v281 = vld [vmem:[%s244 + $0x44] sm:$0x1]
      %v282 = vld [vmem:[%s244 + $0x48] sm:$0xf]
      %v283 = vld [vmem:[%s244 + $0x4c] sm:$0x1]
      %v284 = vld [vmem:[%s248] sm:$0xf]
      %v285 = vld [vmem:[%s248 + $0x4] sm:$0xf]
      %v307 = vunpack.c.l.s4 1966171168
      %v308 = vunpack.c.0.s8 %v307
      %v309 = vlaneseq
      %v310 = vshrl.u32 %v309, 7
      %v311 = vsub.s32 %v308, %v310
      %v312 = vrot.slane %v264, %v311
      %v313 = vcombine.high %v312, %v312
      %v315 = vunpack.c.l.s4 1966171168
      %v316 = vunpack.c.0.s8 %v315
      %v317 = vlaneseq
      %v318 = vshrl.u32 %v317, 7
      %v319 = vsub.s32 %v316, %v318
      %v320 = vrot.slane %v312, %v319
      %v322 = vunpack.c.l.s4 1966171168
      %v323 = vunpack.c.0.s8 %v322
      %v324 = vlaneseq
      %v325 = vshrl.u32 %v324, 7
      %v326 = vsub.s32 %v323, %v325
      %v327 = vrot.slane %v313, %v326
      %v328 = vcombine.high %v320, %v320
      %v329 = vcombine.high %v327, %v327
      %v331 = vunpack.c.l.s4 1966171168
      %v332 = vunpack.c.0.s8 %v331
      %v333 = vlaneseq
      %v334 = vshrl.u32 %v333, 7
      %v335 = vsub.s32 %v332, %v334
      %v336 = vrot.slane %v265, %v335
      %v338 = vunpack.c.l.s4 1966171168
      %v339 = vunpack.c.0.s8 %v338
      %v340 = vlaneseq
      %v341 = vshrl.u32 %v340, 7
      %v342 = vsub.s32 %v339, %v341
      %v343 = vrot.slane %v336, %v342
      %v345 = vunpack.c.l.s4 1966171168
      %v346 = vunpack.c.0.s8 %v345
      %v347 = vlaneseq
      %v348 = vshrl.u32 %v347, 7
      %v349 = vsub.s32 %v346, %v348
      %v350 = vrot.slane %v266, %v349
      %v351 = vcombine.high %v350, %v350
      %v353 = vunpack.c.l.s4 1966171168
      %v354 = vunpack.c.0.s8 %v353
      %v355 = vlaneseq
      %v356 = vshrl.u32 %v355, 7
      %v357 = vsub.s32 %v354, %v356
      %v358 = vrot.slane %v350, %v357
      %v360 = vunpack.c.l.s4 1966171168
      %v361 = vunpack.c.0.s8 %v360
      %v362 = vlaneseq
      %v363 = vshrl.u32 %v362, 7
      %v364 = vsub.s32 %v361, %v363
      %v365 = vrot.slane %v351, %v364
      %v366 = vcombine.high %v358, %v358
      %v367 = vcombine.high %v365, %v365
      %v369 = vunpack.c.l.s4 1966171168
      %v370 = vunpack.c.0.s8 %v369
      %v371 = vlaneseq
      %v372 = vshrl.u32 %v371, 7
      %v373 = vsub.s32 %v370, %v372
      %v374 = vrot.slane %v267, %v373
      %v376 = vunpack.c.l.s4 1966171168
      %v377 = vunpack.c.0.s8 %v376
      %v378 = vlaneseq
      %v379 = vshrl.u32 %v378, 7
      %v380 = vsub.s32 %v377, %v379
      %v381 = vrot.slane %v374, %v380
      %v383 = vunpack.c.l.s4 1966171168
      %v384 = vunpack.c.0.s8 %v383
      %v385 = vlaneseq
      %v386 = vshrl.u32 %v385, 7
      %v387 = vsub.s32 %v384, %v386
      %v388 = vrot.slane %v268, %v387
      %v389 = vcombine.high %v388, %v388
      %v391 = vunpack.c.l.s4 1966171168
      %v392 = vunpack.c.0.s8 %v391
      %v393 = vlaneseq
      %v394 = vshrl.u32 %v393, 7
      %v395 = vsub.s32 %v392, %v394
      %v396 = vrot.slane %v388, %v395
      %v398 = vunpack.c.l.s4 1966171168
      %v399 = vunpack.c.0.s8 %v398
      %v400 = vlaneseq
      %v401 = vshrl.u32 %v400, 7
      %v402 = vsub.s32 %v399, %v401
      %v403 = vrot.slane %v389, %v402
      %v404 = vcombine.high %v396, %v396
      %v405 = vcombine.high %v403, %v403
      %v407 = vunpack.c.l.s4 1966171168
      %v408 = vunpack.c.0.s8 %v407
      %v409 = vlaneseq
      %v410 = vshrl.u32 %v409, 7
      %v411 = vsub.s32 %v408, %v410
      %v412 = vrot.slane %v269, %v411
      %v414 = vunpack.c.l.s4 1966171168
      %v415 = vunpack.c.0.s8 %v414
      %v416 = vlaneseq
      %v417 = vshrl.u32 %v416, 7
      %v418 = vsub.s32 %v415, %v417
      %v419 = vrot.slane %v412, %v418
      %v421 = vunpack.c.l.s4 1966171168
      %v422 = vunpack.c.0.s8 %v421
      %v423 = vlaneseq
      %v424 = vshrl.u32 %v423, 7
      %v425 = vsub.s32 %v422, %v424
      %v426 = vrot.slane %v270, %v425
      %v427 = vcombine.high %v426, %v426
      %v429 = vunpack.c.l.s4 1966171168
      %v430 = vunpack.c.0.s8 %v429
      %v431 = vlaneseq
      %v432 = vshrl.u32 %v431, 7
      %v433 = vsub.s32 %v430, %v432
      %v434 = vrot.slane %v426, %v433
      %v436 = vunpack.c.l.s4 1966171168
      %v437 = vunpack.c.0.s8 %v436
      %v438 = vlaneseq
      %v439 = vshrl.u32 %v438, 7
      %v440 = vsub.s32 %v437, %v439
      %v441 = vrot.slane %v427, %v440
      %v442 = vcombine.high %v434, %v434
      %v443 = vcombine.high %v441, %v441
      %v445 = vunpack.c.l.s4 1966171168
      %v446 = vunpack.c.0.s8 %v445
      %v447 = vlaneseq
      %v448 = vshrl.u32 %v447, 7
      %v449 = vsub.s32 %v446, %v448
      %v450 = vrot.slane %v271, %v449
      %v452 = vunpack.c.l.s4 1966171168
      %v453 = vunpack.c.0.s8 %v452
      %v454 = vlaneseq
      %v455 = vshrl.u32 %v454, 7
      %v456 = vsub.s32 %v453, %v455
      %v457 = vrot.slane %v450, %v456
      %v459 = vunpack.c.l.s4 1966171168
      %v460 = vunpack.c.0.s8 %v459
      %v461 = vlaneseq
      %v462 = vshrl.u32 %v461, 7
      %v463 = vsub.s32 %v460, %v462
      %v464 = vrot.slane %v272, %v463
      %v465 = vcombine.high %v464, %v464
      %v467 = vunpack.c.l.s4 1966171168
      %v468 = vunpack.c.0.s8 %v467
      %v469 = vlaneseq
      %v470 = vshrl.u32 %v469, 7
      %v471 = vsub.s32 %v468, %v470
      %v472 = vrot.slane %v464, %v471
      %v474 = vunpack.c.l.s4 1966171168
      %v475 = vunpack.c.0.s8 %v474
      %v476 = vlaneseq
      %v477 = vshrl.u32 %v476, 7
      %v478 = vsub.s32 %v475, %v477
      %v479 = vrot.slane %v465, %v478
      %v480 = vcombine.high %v472, %v472
      %v481 = vcombine.high %v479, %v479
      %v483 = vunpack.c.l.s4 1966171168
      %v484 = vunpack.c.0.s8 %v483
      %v485 = vlaneseq
      %v486 = vshrl.u32 %v485, 7
      %v487 = vsub.s32 %v484, %v486
      %v488 = vrot.slane %v273, %v487
      %v490 = vunpack.c.l.s4 1966171168
      %v491 = vunpack.c.0.s8 %v490
      %v492 = vlaneseq
      %v493 = vshrl.u32 %v492, 7
      %v494 = vsub.s32 %v491, %v493
      %v495 = vrot.slane %v488, %v494
      %v497 = vunpack.c.l.s4 1966171168
      %v498 = vunpack.c.0.s8 %v497
      %v499 = vlaneseq
      %v500 = vshrl.u32 %v499, 7
      %v501 = vsub.s32 %v498, %v500
      %v502 = vrot.slane %v274, %v501
      %v503 = vcombine.high %v502, %v502
      %v505 = vunpack.c.l.s4 1966171168
      %v506 = vunpack.c.0.s8 %v505
      %v507 = vlaneseq
      %v508 = vshrl.u32 %v507, 7
      %v509 = vsub.s32 %v506, %v508
      %v510 = vrot.slane %v502, %v509
      %v512 = vunpack.c.l.s4 1966171168
      %v513 = vunpack.c.0.s8 %v512
      %v514 = vlaneseq
      %v515 = vshrl.u32 %v514, 7
      %v516 = vsub.s32 %v513, %v515
      %v517 = vrot.slane %v503, %v516
      %v518 = vcombine.high %v510, %v510
      %v519 = vcombine.high %v517, %v517
      %v521 = vunpack.c.l.s4 1966171168
      %v522 = vunpack.c.0.s8 %v521
      %v523 = vlaneseq
      %v524 = vshrl.u32 %v523, 7
      %v525 = vsub.s32 %v522, %v524
      %v526 = vrot.slane %v275, %v525
      %v528 = vunpack.c.l.s4 1966171168
      %v529 = vunpack.c.0.s8 %v528
      %v530 = vlaneseq
      %v531 = vshrl.u32 %v530, 7
      %v532 = vsub.s32 %v529, %v531
      %v533 = vrot.slane %v526, %v532
      %v535 = vunpack.c.l.s4 1966171168
      %v536 = vunpack.c.0.s8 %v535
      %v537 = vlaneseq
      %v538 = vshrl.u32 %v537, 7
      %v539 = vsub.s32 %v536, %v538
      %v540 = vrot.slane %v276, %v539
      %v541 = vcombine.high %v540, %v540
      %v543 = vunpack.c.l.s4 1966171168
      %v544 = vunpack.c.0.s8 %v543
      %v545 = vlaneseq
      %v546 = vshrl.u32 %v545, 7
      %v547 = vsub.s32 %v544, %v546
      %v548 = vrot.slane %v540, %v547
      %v550 = vunpack.c.l.s4 1966171168
      %v551 = vunpack.c.0.s8 %v550
      %v552 = vlaneseq
      %v553 = vshrl.u32 %v552, 7
      %v554 = vsub.s32 %v551, %v553
      %v555 = vrot.slane %v541, %v554
      %v556 = vcombine.high %v548, %v548
      %v557 = vcombine.high %v555, %v555
      %v559 = vunpack.c.l.s4 1966171168
      %v560 = vunpack.c.0.s8 %v559
      %v561 = vlaneseq
      %v562 = vshrl.u32 %v561, 7
      %v563 = vsub.s32 %v560, %v562
      %v564 = vrot.slane %v277, %v563
      %v566 = vunpack.c.l.s4 1966171168
      %v567 = vunpack.c.0.s8 %v566
      %v568 = vlaneseq
      %v569 = vshrl.u32 %v568, 7
      %v570 = vsub.s32 %v567, %v569
      %v571 = vrot.slane %v564, %v570
      %v573 = vunpack.c.l.s4 1966171168
      %v574 = vunpack.c.0.s8 %v573
      %v575 = vlaneseq
      %v576 = vshrl.u32 %v575, 7
      %v577 = vsub.s32 %v574, %v576
      %v578 = vrot.slane %v278, %v577
      %v579 = vcombine.high %v578, %v578
      %v581 = vunpack.c.l.s4 1966171168
      %v582 = vunpack.c.0.s8 %v581
      %v583 = vlaneseq
      %v584 = vshrl.u32 %v583, 7
      %v585 = vsub.s32 %v582, %v584
      %v586 = vrot.slane %v578, %v585
      %v588 = vunpack.c.l.s4 1966171168
      %v589 = vunpack.c.0.s8 %v588
      %v590 = vlaneseq
      %v591 = vshrl.u32 %v590, 7
      %v592 = vsub.s32 %v589, %v591
      %v593 = vrot.slane %v579, %v592
      %v594 = vcombine.high %v586, %v586
      %v595 = vcombine.high %v593, %v593
      %v597 = vunpack.c.l.s4 1966171168
      %v598 = vunpack.c.0.s8 %v597
      %v599 = vlaneseq
      %v600 = vshrl.u32 %v599, 7
      %v601 = vsub.s32 %v598, %v600
      %v602 = vrot.slane %v279, %v601
      %v604 = vunpack.c.l.s4 1966171168
      %v605 = vunpack.c.0.s8 %v604
      %v606 = vlaneseq
      %v607 = vshrl.u32 %v606, 7
      %v608 = vsub.s32 %v605, %v607
      %v609 = vrot.slane %v602, %v608
      %v611 = vunpack.c.l.s4 1966171168
      %v612 = vunpack.c.0.s8 %v611
      %v613 = vlaneseq
      %v614 = vshrl.u32 %v613, 7
      %v615 = vsub.s32 %v612, %v614
      %v616 = vrot.slane %v280, %v615
      %v617 = vcombine.high %v616, %v616
      %v619 = vunpack.c.l.s4 1966171168
      %v620 = vunpack.c.0.s8 %v619
      %v621 = vlaneseq
      %v622 = vshrl.u32 %v621, 7
      %v623 = vsub.s32 %v620, %v622
      %v624 = vrot.slane %v616, %v623
      %v626 = vunpack.c.l.s4 1966171168
      %v627 = vunpack.c.0.s8 %v626
      %v628 = vlaneseq
      %v629 = vshrl.u32 %v628, 7
      %v630 = vsub.s32 %v627, %v629
      %v631 = vrot.slane %v617, %v630
      %v632 = vcombine.high %v624, %v624
      %v633 = vcombine.high %v631, %v631
      %v635 = vunpack.c.l.s4 1966171168
      %v636 = vunpack.c.0.s8 %v635
      %v637 = vlaneseq
      %v638 = vshrl.u32 %v637, 7
      %v639 = vsub.s32 %v636, %v638
      %v640 = vrot.slane %v281, %v639
      %v642 = vunpack.c.l.s4 1966171168
      %v643 = vunpack.c.0.s8 %v642
      %v644 = vlaneseq
      %v645 = vshrl.u32 %v644, 7
      %v646 = vsub.s32 %v643, %v645
      %v647 = vrot.slane %v640, %v646
      %v649 = vunpack.c.l.s4 1966171168
      %v650 = vunpack.c.0.s8 %v649
      %v651 = vlaneseq
      %v652 = vshrl.u32 %v651, 7
      %v653 = vsub.s32 %v650, %v652
      %v654 = vrot.slane %v282, %v653
      %v655 = vcombine.high %v654, %v654
      %v657 = vunpack.c.l.s4 1966171168
      %v658 = vunpack.c.0.s8 %v657
      %v659 = vlaneseq
      %v660 = vshrl.u32 %v659, 7
      %v661 = vsub.s32 %v658, %v660
      %v662 = vrot.slane %v654, %v661
      %v664 = vunpack.c.l.s4 1966171168
      %v665 = vunpack.c.0.s8 %v664
      %v666 = vlaneseq
      %v667 = vshrl.u32 %v666, 7
      %v668 = vsub.s32 %v665, %v667
      %v669 = vrot.slane %v655, %v668
      %v670 = vcombine.high %v662, %v662
      %v671 = vcombine.high %v669, %v669
      %v673 = vunpack.c.l.s4 1966171168
      %v674 = vunpack.c.0.s8 %v673
      %v675 = vlaneseq
      %v676 = vshrl.u32 %v675, 7
      %v677 = vsub.s32 %v674, %v676
      %v678 = vrot.slane %v283, %v677
      %v680 = vunpack.c.l.s4 1966171168
      %v681 = vunpack.c.0.s8 %v680
      %v682 = vlaneseq
      %v683 = vshrl.u32 %v682, 7
      %v684 = vsub.s32 %v681, %v683
      %v685 = vrot.slane %v678, %v684
      %v686 = vld [vmem:[%s244 + $0x4] sm:$0x3]
      %v687 = vld [vmem:[%s244 + $0xc] sm:$0x3]
      %v688 = vld [vmem:[%s244 + $0x14] sm:$0x3]
      %v689 = vld [vmem:[%s244 + $0x1c] sm:$0x3]
      %v690 = vld [vmem:[%s244 + $0x24] sm:$0x3]
      %v691 = vld [vmem:[%s244 + $0x2c] sm:$0x3]
      %v692 = vld [vmem:[%s244 + $0x34] sm:$0x3]
      %v693 = vld [vmem:[%s244 + $0x3c] sm:$0x3]
      %v694 = vld [vmem:[%s244 + $0x44] sm:$0x3]
      %v695 = vld [vmem:[%s244 + $0x4c] sm:$0x3]
      %s696 = scalar_lea.vmem %s248, 8
      %v697 = vld [vmem:[%s696] sm:$0xf]
      %v698 = vld [vmem:[%s696 + $0x4] sm:$0xf]
      %v710 = vunpack.c.l.s4 1966171168
      %v711 = vunpack.c.0.s8 %v710
      %v712 = vlaneseq
      %v713 = vshrl.u32 %v712, 7
      %v714 = vsub.s32 %v711, %v713
      %v715 = vrot.slane %v686, %v714
      %v716 = vcombine.high %v715, %v715
      %v718 = vunpack.c.l.s4 1966171168
      %v719 = vunpack.c.0.s8 %v718
      %v720 = vlaneseq
      %v721 = vshrl.u32 %v720, 7
      %v722 = vsub.s32 %v719, %v721
      %v723 = vrot.slane %v715, %v722
      %v725 = vunpack.c.l.s4 1966171168
      %v726 = vunpack.c.0.s8 %v725
      %v727 = vlaneseq
      %v728 = vshrl.u32 %v727, 7
      %v729 = vsub.s32 %v726, %v728
      %v730 = vrot.slane %v716, %v729
      %v732 = vunpack.c.l.s4 1966171168
      %v733 = vunpack.c.0.s8 %v732
      %v734 = vlaneseq
      %v735 = vshrl.u32 %v734, 7
      %v736 = vsub.s32 %v733, %v735
      %v737 = vrot.slane %v687, %v736
      %v738 = vcombine.high %v737, %v737
      %v740 = vunpack.c.l.s4 1966171168
      %v741 = vunpack.c.0.s8 %v740
      %v742 = vlaneseq
      %v743 = vshrl.u32 %v742, 7
      %v744 = vsub.s32 %v741, %v743
      %v745 = vrot.slane %v737, %v744
      %v747 = vunpack.c.l.s4 1966171168
      %v748 = vunpack.c.0.s8 %v747
      %v749 = vlaneseq
      %v750 = vshrl.u32 %v749, 7
      %v751 = vsub.s32 %v748, %v750
      %v752 = vrot.slane %v738, %v751
      %v754 = vunpack.c.l.s4 1966171168
      %v755 = vunpack.c.0.s8 %v754
      %v756 = vlaneseq
      %v757 = vshrl.u32 %v756, 7
      %v758 = vsub.s32 %v755, %v757
      %v759 = vrot.slane %v688, %v758
      %v760 = vcombine.high %v759, %v759
      %v762 = vunpack.c.l.s4 1966171168
      %v763 = vunpack.c.0.s8 %v762
      %v764 = vlaneseq
      %v765 = vshrl.u32 %v764, 7
      %v766 = vsub.s32 %v763, %v765
      %v767 = vrot.slane %v759, %v766
      %v769 = vunpack.c.l.s4 1966171168
      %v770 = vunpack.c.0.s8 %v769
      %v771 = vlaneseq
      %v772 = vshrl.u32 %v771, 7
      %v773 = vsub.s32 %v770, %v772
      %v774 = vrot.slane %v760, %v773
      %v776 = vunpack.c.l.s4 1966171168
      %v777 = vunpack.c.0.s8 %v776
      %v778 = vlaneseq
      %v779 = vshrl.u32 %v778, 7
      %v780 = vsub.s32 %v777, %v779
      %v781 = vrot.slane %v689, %v780
      %v782 = vcombine.high %v781, %v781
      %v784 = vunpack.c.l.s4 1966171168
      %v785 = vunpack.c.0.s8 %v784
      %v786 = vlaneseq
      %v787 = vshrl.u32 %v786, 7
      %v788 = vsub.s32 %v785, %v787
      %v789 = vrot.slane %v781, %v788
      %v791 = vunpack.c.l.s4 1966171168
      %v792 = vunpack.c.0.s8 %v791
      %v793 = vlaneseq
      %v794 = vshrl.u32 %v793, 7
      %v795 = vsub.s32 %v792, %v794
      %v796 = vrot.slane %v782, %v795
      %v798 = vunpack.c.l.s4 1966171168
      %v799 = vunpack.c.0.s8 %v798
      %v800 = vlaneseq
      %v801 = vshrl.u32 %v800, 7
      %v802 = vsub.s32 %v799, %v801
      %v803 = vrot.slane %v690, %v802
      %v804 = vcombine.high %v803, %v803
      %v806 = vunpack.c.l.s4 1966171168
      %v807 = vunpack.c.0.s8 %v806
      %v808 = vlaneseq
      %v809 = vshrl.u32 %v808, 7
      %v810 = vsub.s32 %v807, %v809
      %v811 = vrot.slane %v803, %v810
      %v813 = vunpack.c.l.s4 1966171168
      %v814 = vunpack.c.0.s8 %v813
      %v815 = vlaneseq
      %v816 = vshrl.u32 %v815, 7
      %v817 = vsub.s32 %v814, %v816
      %v818 = vrot.slane %v804, %v817
      %v820 = vunpack.c.l.s4 1966171168
      %v821 = vunpack.c.0.s8 %v820
      %v822 = vlaneseq
      %v823 = vshrl.u32 %v822, 7
      %v824 = vsub.s32 %v821, %v823
      %v825 = vrot.slane %v691, %v824
      %v826 = vcombine.high %v825, %v825
      %v828 = vunpack.c.l.s4 1966171168
      %v829 = vunpack.c.0.s8 %v828
      %v830 = vlaneseq
      %v831 = vshrl.u32 %v830, 7
      %v832 = vsub.s32 %v829, %v831
      %v833 = vrot.slane %v825, %v832
      %v835 = vunpack.c.l.s4 1966171168
      %v836 = vunpack.c.0.s8 %v835
      %v837 = vlaneseq
      %v838 = vshrl.u32 %v837, 7
      %v839 = vsub.s32 %v836, %v838
      %v840 = vrot.slane %v826, %v839
      %v842 = vunpack.c.l.s4 1966171168
      %v843 = vunpack.c.0.s8 %v842
      %v844 = vlaneseq
      %v845 = vshrl.u32 %v844, 7
      %v846 = vsub.s32 %v843, %v845
      %v847 = vrot.slane %v692, %v846
      %v848 = vcombine.high %v847, %v847
      %v850 = vunpack.c.l.s4 1966171168
      %v851 = vunpack.c.0.s8 %v850
      %v852 = vlaneseq
      %v853 = vshrl.u32 %v852, 7
      %v854 = vsub.s32 %v851, %v853
      %v855 = vrot.slane %v847, %v854
      %v857 = vunpack.c.l.s4 1966171168
      %v858 = vunpack.c.0.s8 %v857
      %v859 = vlaneseq
      %v860 = vshrl.u32 %v859, 7
      %v861 = vsub.s32 %v858, %v860
      %v862 = vrot.slane %v848, %v861
      %v864 = vunpack.c.l.s4 1966171168
      %v865 = vunpack.c.0.s8 %v864
      %v866 = vlaneseq
      %v867 = vshrl.u32 %v866, 7
      %v868 = vsub.s32 %v865, %v867
      %v869 = vrot.slane %v693, %v868
      %v870 = vcombine.high %v869, %v869
      %v872 = vunpack.c.l.s4 1966171168
      %v873 = vunpack.c.0.s8 %v872
      %v874 = vlaneseq
      %v875 = vshrl.u32 %v874, 7
      %v876 = vsub.s32 %v873, %v875
      %v877 = vrot.slane %v869, %v876
      %v879 = vunpack.c.l.s4 1966171168
      %v880 = vunpack.c.0.s8 %v879
      %v881 = vlaneseq
      %v882 = vshrl.u32 %v881, 7
      %v883 = vsub.s32 %v880, %v882
      %v884 = vrot.slane %v870, %v883
      %v886 = vunpack.c.l.s4 1966171168
      %v887 = vunpack.c.0.s8 %v886
      %v888 = vlaneseq
      %v889 = vshrl.u32 %v888, 7
      %v890 = vsub.s32 %v887, %v889
      %v891 = vrot.slane %v694, %v890
      %v892 = vcombine.high %v891, %v891
      %v894 = vunpack.c.l.s4 1966171168
      %v895 = vunpack.c.0.s8 %v894
      %v896 = vlaneseq
      %v897 = vshrl.u32 %v896, 7
      %v898 = vsub.s32 %v895, %v897
      %v899 = vrot.slane %v891, %v898
      %v901 = vunpack.c.l.s4 1966171168
      %v902 = vunpack.c.0.s8 %v901
      %v903 = vlaneseq
      %v904 = vshrl.u32 %v903, 7
      %v905 = vsub.s32 %v902, %v904
      %v906 = vrot.slane %v892, %v905
      %v908 = vunpack.c.l.s4 1966171168
      %v909 = vunpack.c.0.s8 %v908
      %v910 = vlaneseq
      %v911 = vshrl.u32 %v910, 7
      %v912 = vsub.s32 %v909, %v911
      %v913 = vrot.slane %v695, %v912
      %v914 = vcombine.high %v913, %v913
      %v916 = vunpack.c.l.s4 1966171168
      %v917 = vunpack.c.0.s8 %v916
      %v918 = vlaneseq
      %v919 = vshrl.u32 %v918, 7
      %v920 = vsub.s32 %v917, %v919
      %v921 = vrot.slane %v913, %v920
      %v923 = vunpack.c.l.s4 1966171168
      %v924 = vunpack.c.0.s8 %v923
      %v925 = vlaneseq
      %v926 = vshrl.u32 %v925, 7
      %v927 = vsub.s32 %v924, %v926
      %v928 = vrot.slane %v914, %v927
      %vm929 = vsmask.f32 256
      %vm930 = vsmask.f32 1284
      %vm931 = vmor %vm929, %vm930
      %vm932 = vsmask.f32 2312
      %vm933 = vmor %vm931, %vm932
      %vm934 = vsmask.f32 3340
      %vm935 = vmor %vm933, %vm934
      %vm936 = vsmask.f32 4368
      %vm937 = vmor %vm935, %vm936
      %vm938 = vsmask.f32 5396
      %vm939 = vmor %vm937, %vm938
      %vm940 = vsmask.f32 6424
      %vm941 = vmor %vm939, %vm940
      %vm942 = vsmask.f32 7452
      %vm943 = vmor %vm941, %vm942
      %v945 = vshrl.u32 %v320, 16
      %v947 = vrot.slane %v945, 7
      %v948 = vrot.slane %v947, 1
      %v950 = vshll.u32 %v327, 16
      %v952 = vsel %vm943, %v948, %v950
      %v953 = vshrl.u32 %v327, 16
      %v955 = vrot.slane %v953, 7
      %v956 = vrot.slane %v955, 1
      %v958 = vshll.u32 %v328, 16
      %v960 = vsel %vm943, %v956, %v958
      %v961 = vshrl.u32 %v328, 16
      %v963 = vrot.slane %v961, 7
      %v964 = vrot.slane %v963, 1
      %v966 = vshll.u32 %v329, 16
      %v968 = vsel %vm943, %v964, %v966
      %v969 = vshrl.u32 %v329, 16
      %v971 = vrot.slane %v969, 7
      %v972 = vrot.slane %v971, 1
      %v974 = vshll.u32 %v723, 16
      %v976 = vsel %vm943, %v972, %v974
      %v977 = vshrl.u32 %v723, 16
      %v979 = vrot.slane %v977, 7
      %v980 = vrot.slane %v979, 1
      %v982 = vshll.u32 %v730, 16
      %v984 = vsel %vm943, %v980, %v982
      %v986 = vshrl.u32 %v358, 16
      %v988 = vrot.slane %v986, 7
      %v989 = vrot.slane %v988, 1
      %v991 = vshll.u32 %v365, 16
      %v993 = vsel %vm943, %v989, %v991
      %v994 = vshrl.u32 %v365, 16
      %v996 = vrot.slane %v994, 7
      %v997 = vrot.slane %v996, 1
      %v999 = vshll.u32 %v366, 16
      %v1001 = vsel %vm943, %v997, %v999
      %v1002 = vshrl.u32 %v366, 16
      %v1004 = vrot.slane %v1002, 7
      %v1005 = vrot.slane %v1004, 1
      %v1007 = vshll.u32 %v367, 16
      %v1009 = vsel %vm943, %v1005, %v1007
      %v1010 = vshrl.u32 %v367, 16
      %v1012 = vrot.slane %v1010, 7
      %v1013 = vrot.slane %v1012, 1
      %v1015 = vshll.u32 %v745, 16
      %v1017 = vsel %vm943, %v1013, %v1015
      %v1018 = vshrl.u32 %v745, 16
      %v1020 = vrot.slane %v1018, 7
      %v1021 = vrot.slane %v1020, 1
      %v1023 = vshll.u32 %v752, 16
      %v1025 = vsel %vm943, %v1021, %v1023
      %v1027 = vshrl.u32 %v396, 16
      %v1029 = vrot.slane %v1027, 7
      %v1030 = vrot.slane %v1029, 1
      %v1032 = vshll.u32 %v403, 16
      %v1034 = vsel %vm943, %v1030, %v1032
      %v1035 = vshrl.u32 %v403, 16
      %v1037 = vrot.slane %v1035, 7
      %v1038 = vrot.slane %v1037, 1
      %v1040 = vshll.u32 %v404, 16
      %v1042 = vsel %vm943, %v1038, %v1040
      %v1043 = vshrl.u32 %v404, 16
      %v1045 = vrot.slane %v1043, 7
      %v1046 = vrot.slane %v1045, 1
      %v1048 = vshll.u32 %v405, 16
      %v1050 = vsel %vm943, %v1046, %v1048
      %v1051 = vshrl.u32 %v405, 16
      %v1053 = vrot.slane %v1051, 7
      %v1054 = vrot.slane %v1053, 1
      %v1056 = vshll.u32 %v767, 16
      %v1058 = vsel %vm943, %v1054, %v1056
      %v1059 = vshrl.u32 %v767, 16
      %v1061 = vrot.slane %v1059, 7
      %v1062 = vrot.slane %v1061, 1
      %v1064 = vshll.u32 %v774, 16
      %v1066 = vsel %vm943, %v1062, %v1064
      %v1068 = vshrl.u32 %v434, 16
      %v1070 = vrot.slane %v1068, 7
      %v1071 = vrot.slane %v1070, 1
      %v1073 = vshll.u32 %v441, 16
      %v1075 = vsel %vm943, %v1071, %v1073
      %v1076 = vshrl.u32 %v441, 16
      %v1078 = vrot.slane %v1076, 7
      %v1079 = vrot.slane %v1078, 1
      %v1081 = vshll.u32 %v442, 16
      %v1083 = vsel %vm943, %v1079, %v1081
      %v1084 = vshrl.u32 %v442, 16
      %v1086 = vrot.slane %v1084, 7
      %v1087 = vrot.slane %v1086, 1
      %v1089 = vshll.u32 %v443, 16
      %v1091 = vsel %vm943, %v1087, %v1089
      %v1092 = vshrl.u32 %v443, 16
      %v1094 = vrot.slane %v1092, 7
      %v1095 = vrot.slane %v1094, 1
      %v1097 = vshll.u32 %v789, 16
      %v1099 = vsel %vm943, %v1095, %v1097
      %v1100 = vshrl.u32 %v789, 16
      %v1102 = vrot.slane %v1100, 7
      %v1103 = vrot.slane %v1102, 1
      %v1105 = vshll.u32 %v796, 16
      %v1107 = vsel %vm943, %v1103, %v1105
      %v1109 = vshrl.u32 %v472, 16
      %v1111 = vrot.slane %v1109, 7
      %v1112 = vrot.slane %v1111, 1
      %v1114 = vshll.u32 %v479, 16
      %v1116 = vsel %vm943, %v1112, %v1114
      %v1117 = vshrl.u32 %v479, 16
      %v1119 = vrot.slane %v1117, 7
      %v1120 = vrot.slane %v1119, 1
      %v1122 = vshll.u32 %v480, 16
      %v1124 = vsel %vm943, %v1120, %v1122
      %v1125 = vshrl.u32 %v480, 16
      %v1127 = vrot.slane %v1125, 7
      %v1128 = vrot.slane %v1127, 1
      %v1130 = vshll.u32 %v481, 16
      %v1132 = vsel %vm943, %v1128, %v1130
      %v1133 = vshrl.u32 %v481, 16
      %v1135 = vrot.slane %v1133, 7
      %v1136 = vrot.slane %v1135, 1
      %v1138 = vshll.u32 %v811, 16
      %v1140 = vsel %vm943, %v1136, %v1138
      %v1141 = vshrl.u32 %v811, 16
      %v1143 = vrot.slane %v1141, 7
      %v1144 = vrot.slane %v1143, 1
      %v1146 = vshll.u32 %v818, 16
      %v1148 = vsel %vm943, %v1144, %v1146
      %v1150 = vshrl.u32 %v510, 16
      %v1152 = vrot.slane %v1150, 7
      %v1153 = vrot.slane %v1152, 1
      %v1155 = vshll.u32 %v517, 16
      %v1157 = vsel %vm943, %v1153, %v1155
      %v1158 = vshrl.u32 %v517, 16
      %v1160 = vrot.slane %v1158, 7
      %v1161 = vrot.slane %v1160, 1
      %v1163 = vshll.u32 %v518, 16
      %v1165 = vsel %vm943, %v1161, %v1163
      %v1166 = vshrl.u32 %v518, 16
      %v1168 = vrot.slane %v1166, 7
      %v1169 = vrot.slane %v1168, 1
      %v1171 = vshll.u32 %v519, 16
      %v1173 = vsel %vm943, %v1169, %v1171
      %v1174 = vshrl.u32 %v519, 16
      %v1176 = vrot.slane %v1174, 7
      %v1177 = vrot.slane %v1176, 1
      %v1179 = vshll.u32 %v833, 16
      %v1181 = vsel %vm943, %v1177, %v1179
      %v1182 = vshrl.u32 %v833, 16
      %v1184 = vrot.slane %v1182, 7
      %v1185 = vrot.slane %v1184, 1
      %v1187 = vshll.u32 %v840, 16
      %v1189 = vsel %vm943, %v1185, %v1187
      %v1191 = vshrl.u32 %v548, 16
      %v1193 = vrot.slane %v1191, 7
      %v1194 = vrot.slane %v1193, 1
      %v1196 = vshll.u32 %v555, 16
      %v1198 = vsel %vm943, %v1194, %v1196
      %v1199 = vshrl.u32 %v555, 16
      %v1201 = vrot.slane %v1199, 7
      %v1202 = vrot.slane %v1201, 1
      %v1204 = vshll.u32 %v556, 16
      %v1206 = vsel %vm943, %v1202, %v1204
      %v1207 = vshrl.u32 %v556, 16
      %v1209 = vrot.slane %v1207, 7
      %v1210 = vrot.slane %v1209, 1
      %v1212 = vshll.u32 %v557, 16
      %v1214 = vsel %vm943, %v1210, %v1212
      %v1215 = vshrl.u32 %v557, 16
      %v1217 = vrot.slane %v1215, 7
      %v1218 = vrot.slane %v1217, 1
      %v1220 = vshll.u32 %v855, 16
      %v1222 = vsel %vm943, %v1218, %v1220
      %v1223 = vshrl.u32 %v855, 16
      %v1225 = vrot.slane %v1223, 7
      %v1226 = vrot.slane %v1225, 1
      %v1228 = vshll.u32 %v862, 16
      %v1230 = vsel %vm943, %v1226, %v1228
      %v1232 = vshrl.u32 %v586, 16
      %v1234 = vrot.slane %v1232, 7
      %v1235 = vrot.slane %v1234, 1
      %v1237 = vshll.u32 %v593, 16
      %v1239 = vsel %vm943, %v1235, %v1237
      %v1240 = vshrl.u32 %v593, 16
      %v1242 = vrot.slane %v1240, 7
      %v1243 = vrot.slane %v1242, 1
      %v1245 = vshll.u32 %v594, 16
      %v1247 = vsel %vm943, %v1243, %v1245
      %v1248 = vshrl.u32 %v594, 16
      %v1250 = vrot.slane %v1248, 7
      %v1251 = vrot.slane %v1250, 1
      %v1253 = vshll.u32 %v595, 16
      %v1255 = vsel %vm943, %v1251, %v1253
      %v1256 = vshrl.u32 %v595, 16
      %v1258 = vrot.slane %v1256, 7
      %v1259 = vrot.slane %v1258, 1
      %v1261 = vshll.u32 %v877, 16
      %v1263 = vsel %vm943, %v1259, %v1261
      %v1264 = vshrl.u32 %v877, 16
      %v1266 = vrot.slane %v1264, 7
      %v1267 = vrot.slane %v1266, 1
      %v1269 = vshll.u32 %v884, 16
      %v1271 = vsel %vm943, %v1267, %v1269
      %v1273 = vshrl.u32 %v624, 16
      %v1275 = vrot.slane %v1273, 7
      %v1276 = vrot.slane %v1275, 1
      %v1278 = vshll.u32 %v631, 16
      %v1280 = vsel %vm943, %v1276, %v1278
      %v1281 = vshrl.u32 %v631, 16
      %v1283 = vrot.slane %v1281, 7
      %v1284 = vrot.slane %v1283, 1
      %v1286 = vshll.u32 %v632, 16
      %v1288 = vsel %vm943, %v1284, %v1286
      %v1289 = vshrl.u32 %v632, 16
      %v1291 = vrot.slane %v1289, 7
      %v1292 = vrot.slane %v1291, 1
      %v1294 = vshll.u32 %v633, 16
      %v1296 = vsel %vm943, %v1292, %v1294
      %v1297 = vshrl.u32 %v633, 16
      %v1299 = vrot.slane %v1297, 7
      %v1300 = vrot.slane %v1299, 1
      %v1302 = vshll.u32 %v899, 16
      %v1304 = vsel %vm943, %v1300, %v1302
      %v1305 = vshrl.u32 %v899, 16
      %v1307 = vrot.slane %v1305, 7
      %v1308 = vrot.slane %v1307, 1
      %v1310 = vshll.u32 %v906, 16
      %v1312 = vsel %vm943, %v1308, %v1310
      %v1314 = vshrl.u32 %v662, 16
      %v1316 = vrot.slane %v1314, 7
      %v1317 = vrot.slane %v1316, 1
      %v1319 = vshll.u32 %v669, 16
      %v1321 = vsel %vm943, %v1317, %v1319
      %v1322 = vshrl.u32 %v669, 16
      %v1324 = vrot.slane %v1322, 7
      %v1325 = vrot.slane %v1324, 1
      %v1327 = vshll.u32 %v670, 16
      %v1329 = vsel %vm943, %v1325, %v1327
      %v1330 = vshrl.u32 %v670, 16
      %v1332 = vrot.slane %v1330, 7
      %v1333 = vrot.slane %v1332, 1
      %v1335 = vshll.u32 %v671, 16
      %v1337 = vsel %vm943, %v1333, %v1335
      %v1338 = vshrl.u32 %v671, 16
      %v1340 = vrot.slane %v1338, 7
      %v1341 = vrot.slane %v1340, 1
      %v1343 = vshll.u32 %v921, 16
      %v1345 = vsel %vm943, %v1341, %v1343
      %v1346 = vshrl.u32 %v921, 16
      %v1348 = vrot.slane %v1346, 7
      %v1349 = vrot.slane %v1348, 1
      %v1351 = vshll.u32 %v928, 16
      %v1353 = vsel %vm943, %v1349, %v1351
      %v1354 = vcombine.low %v952, %v960
      %v1355 = vcombine.low %v968, %v976
      %v1356 = vcombine.low %v984, %v993
      %v1357 = vcombine.low %v1001, %v1009
      %v1359 = vunpack.c.l.s4 1966171168
      %v1360 = vunpack.c.0.s8 %v1359
      %v1361 = vlaneseq
      %v1362 = vshrl.u32 %v1361, 7
      %v1363 = vsub.s32 %v1360, %v1362
      %v1364 = vrot.slane %v1354, %v1363
      %v1366 = vunpack.c.l.s4 1966171168
      %v1367 = vunpack.c.0.s8 %v1366
      %v1368 = vlaneseq
      %v1369 = vshrl.u32 %v1368, 7
      %v1370 = vsub.s32 %v1367, %v1369
      %v1371 = vrot.slane %v1355, %v1370
      %v1373 = vunpack.c.l.s4 1966171168
      %v1374 = vunpack.c.0.s8 %v1373
      %v1375 = vlaneseq
      %v1376 = vshrl.u32 %v1375, 7
      %v1377 = vsub.s32 %v1374, %v1376
      %v1378 = vrot.slane %v1356, %v1377
      %v1380 = vunpack.c.l.s4 1966171168
      %v1381 = vunpack.c.0.s8 %v1380
      %v1382 = vlaneseq
      %v1383 = vshrl.u32 %v1382, 7
      %v1384 = vsub.s32 %v1381, %v1383
      %v1385 = vrot.slane %v1357, %v1384
      %v1386 = vcombine.low %v1364, %v1371
      %v1387 = vcombine.low %v1378, %v1385
      %v1389 = vunpack.c.l.s4 1966171168
      %v1390 = vunpack.c.0.s8 %v1389
      %v1391 = vlaneseq
      %v1392 = vshrl.u32 %v1391, 7
      %v1393 = vsub.s32 %v1390, %v1392
      %v1394 = vrot.slane %v1386, %v1393
      %v1396 = vunpack.c.l.s4 1966171168
      %v1397 = vunpack.c.0.s8 %v1396
      %v1398 = vlaneseq
      %v1399 = vshrl.u32 %v1398, 7
      %v1400 = vsub.s32 %v1397, %v1399
      %v1401 = vrot.slane %v1387, %v1400
      %v1402 = vcombine.low %v1394, %v1401
      %v1403 = vcombine.low %v1017, %v1025
      %v1404 = vcombine.low %v1034, %v1042
      %v1405 = vcombine.low %v1050, %v1058
      %v1406 = vcombine.low %v1066, %v1075
      %v1408 = vunpack.c.l.s4 1966171168
      %v1409 = vunpack.c.0.s8 %v1408
      %v1410 = vlaneseq
      %v1411 = vshrl.u32 %v1410, 7
      %v1412 = vsub.s32 %v1409, %v1411
      %v1413 = vrot.slane %v1403, %v1412
      %v1415 = vunpack.c.l.s4 1966171168
      %v1416 = vunpack.c.0.s8 %v1415
      %v1417 = vlaneseq
      %v1418 = vshrl.u32 %v1417, 7
      %v1419 = vsub.s32 %v1416, %v1418
      %v1420 = vrot.slane %v1404, %v1419
      %v1422 = vunpack.c.l.s4 1966171168
      %v1423 = vunpack.c.0.s8 %v1422
      %v1424 = vlaneseq
      %v1425 = vshrl.u32 %v1424, 7
      %v1426 = vsub.s32 %v1423, %v1425
      %v1427 = vrot.slane %v1405, %v1426
      %v1429 = vunpack.c.l.s4 1966171168
      %v1430 = vunpack.c.0.s8 %v1429
      %v1431 = vlaneseq
      %v1432 = vshrl.u32 %v1431, 7
      %v1433 = vsub.s32 %v1430, %v1432
      %v1434 = vrot.slane %v1406, %v1433
      %v1435 = vcombine.low %v1413, %v1420
      %v1436 = vcombine.low %v1427, %v1434
      %v1438 = vunpack.c.l.s4 1966171168
      %v1439 = vunpack.c.0.s8 %v1438
      %v1440 = vlaneseq
      %v1441 = vshrl.u32 %v1440, 7
      %v1442 = vsub.s32 %v1439, %v1441
      %v1443 = vrot.slane %v1435, %v1442
      %v1445 = vunpack.c.l.s4 1966171168
      %v1446 = vunpack.c.0.s8 %v1445
      %v1447 = vlaneseq
      %v1448 = vshrl.u32 %v1447, 7
      %v1449 = vsub.s32 %v1446, %v1448
      %v1450 = vrot.slane %v1436, %v1449
      %v1451 = vcombine.low %v1443, %v1450
      %v1452 = vcombine.low %v1083, %v1091
      %v1453 = vcombine.low %v1099, %v1107
      %v1454 = vcombine.low %v1116, %v1124
      %v1455 = vcombine.low %v1132, %v1140
      %v1457 = vunpack.c.l.s4 1966171168
      %v1458 = vunpack.c.0.s8 %v1457
      %v1459 = vlaneseq
      %v1460 = vshrl.u32 %v1459, 7
      %v1461 = vsub.s32 %v1458, %v1460
      %v1462 = vrot.slane %v1452, %v1461
      %v1464 = vunpack.c.l.s4 1966171168
      %v1465 = vunpack.c.0.s8 %v1464
      %v1466 = vlaneseq
      %v1467 = vshrl.u32 %v1466, 7
      %v1468 = vsub.s32 %v1465, %v1467
      %v1469 = vrot.slane %v1453, %v1468
      %v1471 = vunpack.c.l.s4 1966171168
      %v1472 = vunpack.c.0.s8 %v1471
      %v1473 = vlaneseq
      %v1474 = vshrl.u32 %v1473, 7
      %v1475 = vsub.s32 %v1472, %v1474
      %v1476 = vrot.slane %v1454, %v1475
      %v1478 = vunpack.c.l.s4 1966171168
      %v1479 = vunpack.c.0.s8 %v1478
      %v1480 = vlaneseq
      %v1481 = vshrl.u32 %v1480, 7
      %v1482 = vsub.s32 %v1479, %v1481
      %v1483 = vrot.slane %v1455, %v1482
      %v1484 = vcombine.low %v1462, %v1469
      %v1485 = vcombine.low %v1476, %v1483
      %v1487 = vunpack.c.l.s4 1966171168
      %v1488 = vunpack.c.0.s8 %v1487
      %v1489 = vlaneseq
      %v1490 = vshrl.u32 %v1489, 7
      %v1491 = vsub.s32 %v1488, %v1490
      %v1492 = vrot.slane %v1484, %v1491
      %v1494 = vunpack.c.l.s4 1966171168
      %v1495 = vunpack.c.0.s8 %v1494
      %v1496 = vlaneseq
      %v1497 = vshrl.u32 %v1496, 7
      %v1498 = vsub.s32 %v1495, %v1497
      %v1499 = vrot.slane %v1485, %v1498
      %v1500 = vcombine.low %v1492, %v1499
      %v1501 = vcombine.low %v1148, %v1157
      %v1502 = vcombine.low %v1165, %v1173
      %v1503 = vcombine.low %v1181, %v1189
      %v1504 = vcombine.low %v1198, %v1206
      %v1506 = vunpack.c.l.s4 1966171168
      %v1507 = vunpack.c.0.s8 %v1506
      %v1508 = vlaneseq
      %v1509 = vshrl.u32 %v1508, 7
      %v1510 = vsub.s32 %v1507, %v1509
      %v1511 = vrot.slane %v1501, %v1510
      %v1513 = vunpack.c.l.s4 1966171168
      %v1514 = vunpack.c.0.s8 %v1513
      %v1515 = vlaneseq
      %v1516 = vshrl.u32 %v1515, 7
      %v1517 = vsub.s32 %v1514, %v1516
      %v1518 = vrot.slane %v1502, %v1517
      %v1520 = vunpack.c.l.s4 1966171168
      %v1521 = vunpack.c.0.s8 %v1520
      %v1522 = vlaneseq
      %v1523 = vshrl.u32 %v1522, 7
      %v1524 = vsub.s32 %v1521, %v1523
      %v1525 = vrot.slane %v1503, %v1524
      %v1527 = vunpack.c.l.s4 1966171168
      %v1528 = vunpack.c.0.s8 %v1527
      %v1529 = vlaneseq
      %v1530 = vshrl.u32 %v1529, 7
      %v1531 = vsub.s32 %v1528, %v1530
      %v1532 = vrot.slane %v1504, %v1531
      %v1533 = vcombine.low %v1511, %v1518
      %v1534 = vcombine.low %v1525, %v1532
      %v1536 = vunpack.c.l.s4 1966171168
      %v1537 = vunpack.c.0.s8 %v1536
      %v1538 = vlaneseq
      %v1539 = vshrl.u32 %v1538, 7
      %v1540 = vsub.s32 %v1537, %v1539
      %v1541 = vrot.slane %v1533, %v1540
      %v1543 = vunpack.c.l.s4 1966171168
      %v1544 = vunpack.c.0.s8 %v1543
      %v1545 = vlaneseq
      %v1546 = vshrl.u32 %v1545, 7
      %v1547 = vsub.s32 %v1544, %v1546
      %v1548 = vrot.slane %v1534, %v1547
      %v1549 = vcombine.low %v1541, %v1548
      %v1550 = vcombine.low %v1214, %v1222
      %v1551 = vcombine.low %v1230, %v1239
      %v1552 = vcombine.low %v1247, %v1255
      %v1553 = vcombine.low %v1263, %v1271
      %v1555 = vunpack.c.l.s4 1966171168
      %v1556 = vunpack.c.0.s8 %v1555
      %v1557 = vlaneseq
      %v1558 = vshrl.u32 %v1557, 7
      %v1559 = vsub.s32 %v1556, %v1558
      %v1560 = vrot.slane %v1550, %v1559
      %v1562 = vunpack.c.l.s4 1966171168
      %v1563 = vunpack.c.0.s8 %v1562
      %v1564 = vlaneseq
      %v1565 = vshrl.u32 %v1564, 7
      %v1566 = vsub.s32 %v1563, %v1565
      %v1567 = vrot.slane %v1551, %v1566
      %v1569 = vunpack.c.l.s4 1966171168
      %v1570 = vunpack.c.0.s8 %v1569
      %v1571 = vlaneseq
      %v1572 = vshrl.u32 %v1571, 7
      %v1573 = vsub.s32 %v1570, %v1572
      %v1574 = vrot.slane %v1552, %v1573
      %v1576 = vunpack.c.l.s4 1966171168
      %v1577 = vunpack.c.0.s8 %v1576
      %v1578 = vlaneseq
      %v1579 = vshrl.u32 %v1578, 7
      %v1580 = vsub.s32 %v1577, %v1579
      %v1581 = vrot.slane %v1553, %v1580
      %v1582 = vcombine.low %v1560, %v1567
      %v1583 = vcombine.low %v1574, %v1581
      %v1585 = vunpack.c.l.s4 1966171168
      %v1586 = vunpack.c.0.s8 %v1585
      %v1587 = vlaneseq
      %v1588 = vshrl.u32 %v1587, 7
      %v1589 = vsub.s32 %v1586, %v1588
      %v1590 = vrot.slane %v1582, %v1589
      %v1592 = vunpack.c.l.s4 1966171168
      %v1593 = vunpack.c.0.s8 %v1592
      %v1594 = vlaneseq
      %v1595 = vshrl.u32 %v1594, 7
      %v1596 = vsub.s32 %v1593, %v1595
      %v1597 = vrot.slane %v1583, %v1596
      %v1598 = vcombine.low %v1590, %v1597
      %v1599 = vcombine.low %v1280, %v1288
      %v1600 = vcombine.low %v1296, %v1304
      %v1601 = vcombine.low %v1312, %v1321
      %v1602 = vcombine.low %v1329, %v1337
      %v1604 = vunpack.c.l.s4 1966171168
      %v1605 = vunpack.c.0.s8 %v1604
      %v1606 = vlaneseq
      %v1607 = vshrl.u32 %v1606, 7
      %v1608 = vsub.s32 %v1605, %v1607
      %v1609 = vrot.slane %v1599, %v1608
      %v1611 = vunpack.c.l.s4 1966171168
      %v1612 = vunpack.c.0.s8 %v1611
      %v1613 = vlaneseq
      %v1614 = vshrl.u32 %v1613, 7
      %v1615 = vsub.s32 %v1612, %v1614
      %v1616 = vrot.slane %v1600, %v1615
      %v1618 = vunpack.c.l.s4 1966171168
      %v1619 = vunpack.c.0.s8 %v1618
      %v1620 = vlaneseq
      %v1621 = vshrl.u32 %v1620, 7
      %v1622 = vsub.s32 %v1619, %v1621
      %v1623 = vrot.slane %v1601, %v1622
      %v1625 = vunpack.c.l.s4 1966171168
      %v1626 = vunpack.c.0.s8 %v1625
      %v1627 = vlaneseq
      %v1628 = vshrl.u32 %v1627, 7
      %v1629 = vsub.s32 %v1626, %v1628
      %v1630 = vrot.slane %v1602, %v1629
      %v1631 = vcombine.low %v1609, %v1616
      %v1632 = vcombine.low %v1623, %v1630
      %v1634 = vunpack.c.l.s4 1966171168
      %v1635 = vunpack.c.0.s8 %v1634
      %v1636 = vlaneseq
      %v1637 = vshrl.u32 %v1636, 7
      %v1638 = vsub.s32 %v1635, %v1637
      %v1639 = vrot.slane %v1631, %v1638
      %v1641 = vunpack.c.l.s4 1966171168
      %v1642 = vunpack.c.0.s8 %v1641
      %v1643 = vlaneseq
      %v1644 = vshrl.u32 %v1643, 7
      %v1645 = vsub.s32 %v1642, %v1644
      %v1646 = vrot.slane %v1632, %v1645
      %v1647 = vcombine.low %v1639, %v1646
      %v1648 = vcombine.low %v1345, %v1353
      %v1650 = vunpack.c.l.s4 1966171168
      %v1651 = vunpack.c.0.s8 %v1650
      %v1652 = vlaneseq
      %v1653 = vshrl.u32 %v1652, 7
      %v1654 = vsub.s32 %v1651, %v1653
      %v1655 = vrot.slane %v1648, %v1654
      %v1657 = vunpack.c.l.s4 1966171168
      %v1658 = vunpack.c.0.s8 %v1657
      %v1659 = vlaneseq
      %v1660 = vshrl.u32 %v1659, 7
      %v1661 = vsub.s32 %v1658, %v1660
      %v1662 = vrot.slane %v1655, %v1661
      %v1665 = vunpack.c.l.b16 %v697
      %v1666 = vunpack.c.l.b16 %v698
      %v1667 = vpack.c.b16 %v1666, %v1665
      %vm1669 = vcmask 130048
      %v1671 = vsel %vm1669, %v1402, 0
      %v1674 = vsel %vm1669, %v1451, 0
      %v1677 = vsel %vm1669, %v1500, 0
      %v1680 = vsel %vm1669, %v1549, 0
      %v1683 = vsel %vm1669, %v1598, 0
      %v1686 = vsel %vm1669, %v1647, 0
      %v1689 = vsel %vm1669, %v1662, 0
      %1691 = vmatprep.subr.bf16.mxu0 0
      %1692 = vmatpush1.bf16.msra.mxu0 %v1667
      %1693 = vmatprep.subr.bf16.mxu0 0
      %1694 = vmatpush1.bf16.msra.mxu0 0
      %1695 = vmatprep.subr.bf16.mxu0 0
      %1696 = vmatpush1.bf16.msra.mxu0 0
      %1697 = vmatprep.subr.bf16.mxu0 0
      %1698 = vmatpush1.bf16.msra.mxu0 0
      %1699 = vmatprep.subr.bf16.mxu0 0
      %1700 = vmatpush1.bf16.msra.mxu0 0
      %1701 = vmatprep.subr.bf16.mxu0 0
      %1702 = vmatpush1.bf16.msra.mxu0 0
      %1703 = vmatprep.subr.bf16.mxu0 0
      %1704 = vmatpush1.bf16.msra.mxu0 0
      %1705 = vmatprep.subr.bf16.mxu0 0
      %1706 = vmatpush1.bf16.msra.mxu0 0
      %1707 = vmatprep.subr.bf16.mxu0 0
      %1708 = vmatpush1.bf16.msra.mxu0 0
      %1709 = vmatprep.subr.bf16.mxu0 0
      %1710 = vmatpush1.bf16.msra.mxu0 0
      %1711 = vmatprep.subr.bf16.mxu0 0
      %1712 = vmatpush1.bf16.msra.mxu0 0
      %1713 = vmatprep.subr.bf16.mxu0 0
      %1714 = vmatpush1.bf16.msra.mxu0 0
      %1715 = vmatprep.subr.bf16.mxu0 0
      %1716 = vmatpush1.bf16.msra.mxu0 0
      %1717 = vmatprep.subr.bf16.mxu0 0
      %1718 = vmatpush1.bf16.msra.mxu0 0
      %1719 = vmatprep.subr.bf16.mxu0 0
      %1720 = vmatpush1.bf16.msra.mxu0 0
      %1721 = vmatprep.subr.bf16.mxu0 0
      %1722 = vmatpush1.bf16.msra.mxu0 0
      %1723 = vmatprep.mubr.bf16.mxu0 0
      %1724 = vmatmul.mubr.bf16.gmra.mrb[0].mxu0 %v1671
      %v1725 = vpop.f32.mrb[0].mxu0
      %v1726 = vadd.f32 0.0, %v1725
      %v1727 = vpop.f32.mrb[0].mxu0
      %v1728 = vpop.f32.mrb[0].mxu0
      %v1729 = vadd.f32 0.0, %v1728
      %v1730 = vpop.f32.mrb[0].mxu0
      %1731 = vmatprep.mubr.bf16.mxu0 0
      %1732 = vmatmul.mubr.bf16.gmra.mrb[0].mxu0 %v1674
      %v1733 = vpop.f32.mrb[0].mxu0
      %v1734 = vadd.f32 0.0, %v1733
      %v1735 = vpop.f32.mrb[0].mxu0
      %v1736 = vpop.f32.mrb[0].mxu0
      %v1737 = vadd.f32 0.0, %v1736
      %v1738 = vpop.f32.mrb[0].mxu0
      %1739 = vmatprep.mubr.bf16.mxu0 0
      %1740 = vmatmul.mubr.bf16.gmra.mrb[0].mxu0 %v1677
      %v1741 = vpop.f32.mrb[0].mxu0
      %v1742 = vadd.f32 0.0, %v1741
      %v1743 = vpop.f32.mrb[0].mxu0
      %v1744 = vpop.f32.mrb[0].mxu0
      %v1745 = vadd.f32 0.0, %v1744
      %v1746 = vpop.f32.mrb[0].mxu0
      %1747 = vmatprep.mubr.bf16.mxu0 0
      %1748 = vmatmul.mubr.bf16.gmra.mrb[0].mxu0 %v1680
      %v1749 = vpop.f32.mrb[0].mxu0
      %v1750 = vadd.f32 0.0, %v1749
      %v1751 = vpop.f32.mrb[0].mxu0
      %v1752 = vpop.f32.mrb[0].mxu0
      %v1753 = vadd.f32 0.0, %v1752
      %v1754 = vpop.f32.mrb[0].mxu0
      %1755 = vmatprep.mubr.bf16.mxu0 0
      %1756 = vmatmul.mubr.bf16.gmra.mrb[0].mxu0 %v1683
      %v1757 = vpop.f32.mrb[0].mxu0
      %v1758 = vadd.f32 0.0, %v1757
      %v1759 = vpop.f32.mrb[0].mxu0
      %v1760 = vpop.f32.mrb[0].mxu0
      %v1761 = vadd.f32 0.0, %v1760
      %v1762 = vpop.f32.mrb[0].mxu0
      %1763 = vmatprep.mubr.bf16.mxu0 0
      %1764 = vmatmul.mubr.bf16.gmra.mrb[0].mxu0 %v1686
      %v1765 = vpop.f32.mrb[0].mxu0
      %v1766 = vadd.f32 0.0, %v1765
      %v1767 = vpop.f32.mrb[0].mxu0
      %v1768 = vpop.f32.mrb[0].mxu0
      %v1769 = vadd.f32 0.0, %v1768
      %v1770 = vpop.f32.mrb[0].mxu0
      %1771 = vmatprep.mubr.bf16.mxu0 0
      %1772 = vmatmul.mubr.bf16.gmra.mrb[0].mxu0 %v1689
      %v1773 = vpop.f32.mrb[0].mxu0
      %v1774 = vadd.f32 0.0, %v1773
      %v1775 = vpop.f32.mrb[0].mxu0
      %v1776 = vpop.f32.mrb[0].mxu0
      %v1777 = vpop.f32.mrb[0].mxu0
      %1778 = vdwg.mxu0
      %v1779 = vcombine.low %v320, %v327
      %v1780 = vcombine.low %v328, %v329
      %v1781 = vcombine.low %v343, %v358
      %v1782 = vcombine.low %v365, %v366
      %v1784 = vunpack.c.l.s4 1966171168
      %v1785 = vunpack.c.0.s8 %v1784
      %v1786 = vlaneseq
      %v1787 = vshrl.u32 %v1786, 7
      %v1788 = vsub.s32 %v1785, %v1787
      %v1789 = vrot.slane %v1779, %v1788
      %v1791 = vunpack.c.l.s4 1966171168
      %v1792 = vunpack.c.0.s8 %v1791
      %v1793 = vlaneseq
      %v1794 = vshrl.u32 %v1793, 7
      %v1795 = vsub.s32 %v1792, %v1794
      %v1796 = vrot.slane %v1780, %v1795
      %v1798 = vunpack.c.l.s4 1966171168
      %v1799 = vunpack.c.0.s8 %v1798
      %v1800 = vlaneseq
      %v1801 = vshrl.u32 %v1800, 7
      %v1802 = vsub.s32 %v1799, %v1801
      %v1803 = vrot.slane %v1781, %v1802
      %v1805 = vunpack.c.l.s4 1966171168
      %v1806 = vunpack.c.0.s8 %v1805
      %v1807 = vlaneseq
      %v1808 = vshrl.u32 %v1807, 7
      %v1809 = vsub.s32 %v1806, %v1808
      %v1810 = vrot.slane %v1782, %v1809
      %v1811 = vcombine.low %v1789, %v1796
      %v1812 = vcombine.low %v1803, %v1810
      %v1814 = vunpack.c.l.s4 1966171168
      %v1815 = vunpack.c.0.s8 %v1814
      %v1816 = vlaneseq
      %v1817 = vshrl.u32 %v1816, 7
      %v1818 = vsub.s32 %v1815, %v1817
      %v1819 = vrot.slane %v1811, %v1818
      %v1821 = vunpack.c.l.s4 1966171168
      %v1822 = vunpack.c.0.s8 %v1821
      %v1823 = vlaneseq
      %v1824 = vshrl.u32 %v1823, 7
      %v1825 = vsub.s32 %v1822, %v1824
      %v1826 = vrot.slane %v1812, %v1825
      %v1827 = vcombine.low %v1819, %v1826
      %v1828 = vcombine.low %v367, %v381
      %v1829 = vcombine.low %v396, %v403
      %v1830 = vcombine.low %v404, %v405
      %v1831 = vcombine.low %v419, %v434
      %v1833 = vunpack.c.l.s4 1966171168
      %v1834 = vunpack.c.0.s8 %v1833
      %v1835 = vlaneseq
      %v1836 = vshrl.u32 %v1835, 7
      %v1837 = vsub.s32 %v1834, %v1836
      %v1838 = vrot.slane %v1828, %v1837
      %v1840 = vunpack.c.l.s4 1966171168
      %v1841 = vunpack.c.0.s8 %v1840
      %v1842 = vlaneseq
      %v1843 = vshrl.u32 %v1842, 7
      %v1844 = vsub.s32 %v1841, %v1843
      %v1845 = vrot.slane %v1829, %v1844
      %v1847 = vunpack.c.l.s4 1966171168
      %v1848 = vunpack.c.0.s8 %v1847
      %v1849 = vlaneseq
      %v1850 = vshrl.u32 %v1849, 7
      %v1851 = vsub.s32 %v1848, %v1850
      %v1852 = vrot.slane %v1830, %v1851
      %v1854 = vunpack.c.l.s4 1966171168
      %v1855 = vunpack.c.0.s8 %v1854
      %v1856 = vlaneseq
      %v1857 = vshrl.u32 %v1856, 7
      %v1858 = vsub.s32 %v1855, %v1857
      %v1859 = vrot.slane %v1831, %v1858
      %v1860 = vcombine.low %v1838, %v1845
      %v1861 = vcombine.low %v1852, %v1859
      %v1863 = vunpack.c.l.s4 1966171168
      %v1864 = vunpack.c.0.s8 %v1863
      %v1865 = vlaneseq
      %v1866 = vshrl.u32 %v1865, 7
      %v1867 = vsub.s32 %v1864, %v1866
      %v1868 = vrot.slane %v1860, %v1867
      %v1870 = vunpack.c.l.s4 1966171168
      %v1871 = vunpack.c.0.s8 %v1870
      %v1872 = vlaneseq
      %v1873 = vshrl.u32 %v1872, 7
      %v1874 = vsub.s32 %v1871, %v1873
      %v1875 = vrot.slane %v1861, %v1874
      %v1876 = vcombine.low %v1868, %v1875
      %v1877 = vcombine.low %v441, %v442
      %v1878 = vcombine.low %v443, %v457
      %v1879 = vcombine.low %v472, %v479
      %v1880 = vcombine.low %v480, %v481
      %v1882 = vunpack.c.l.s4 1966171168
      %v1883 = vunpack.c.0.s8 %v1882
      %v1884 = vlaneseq
      %v1885 = vshrl.u32 %v1884, 7
      %v1886 = vsub.s32 %v1883, %v1885
      %v1887 = vrot.slane %v1877, %v1886
      %v1889 = vunpack.c.l.s4 1966171168
      %v1890 = vunpack.c.0.s8 %v1889
      %v1891 = vlaneseq
      %v1892 = vshrl.u32 %v1891, 7
      %v1893 = vsub.s32 %v1890, %v1892
      %v1894 = vrot.slane %v1878, %v1893
      %v1896 = vunpack.c.l.s4 1966171168
      %v1897 = vunpack.c.0.s8 %v1896
      %v1898 = vlaneseq
      %v1899 = vshrl.u32 %v1898, 7
      %v1900 = vsub.s32 %v1897, %v1899
      %v1901 = vrot.slane %v1879, %v1900
      %v1903 = vunpack.c.l.s4 1966171168
      %v1904 = vunpack.c.0.s8 %v1903
      %v1905 = vlaneseq
      %v1906 = vshrl.u32 %v1905, 7
      %v1907 = vsub.s32 %v1904, %v1906
      %v1908 = vrot.slane %v1880, %v1907
      %v1909 = vcombine.low %v1887, %v1894
      %v1910 = vcombine.low %v1901, %v1908
      %v1912 = vunpack.c.l.s4 1966171168
      %v1913 = vunpack.c.0.s8 %v1912
      %v1914 = vlaneseq
      %v1915 = vshrl.u32 %v1914, 7
      %v1916 = vsub.s32 %v1913, %v1915
      %v1917 = vrot.slane %v1909, %v1916
      %v1919 = vunpack.c.l.s4 1966171168
      %v1920 = vunpack.c.0.s8 %v1919
      %v1921 = vlaneseq
      %v1922 = vshrl.u32 %v1921, 7
      %v1923 = vsub.s32 %v1920, %v1922
      %v1924 = vrot.slane %v1910, %v1923
      %v1925 = vcombine.low %v1917, %v1924
      %v1926 = vcombine.low %v495, %v510
      %v1927 = vcombine.low %v517, %v518
      %v1928 = vcombine.low %v519, %v533
      %v1929 = vcombine.low %v548, %v555
      %v1931 = vunpack.c.l.s4 1966171168
      %v1932 = vunpack.c.0.s8 %v1931
      %v1933 = vlaneseq
      %v1934 = vshrl.u32 %v1933, 7
      %v1935 = vsub.s32 %v1932, %v1934
      %v1936 = vrot.slane %v1926, %v1935
      %v1938 = vunpack.c.l.s4 1966171168
      %v1939 = vunpack.c.0.s8 %v1938
      %v1940 = vlaneseq
      %v1941 = vshrl.u32 %v1940, 7
      %v1942 = vsub.s32 %v1939, %v1941
      %v1943 = vrot.slane %v1927, %v1942
      %v1945 = vunpack.c.l.s4 1966171168
      %v1946 = vunpack.c.0.s8 %v1945
      %v1947 = vlaneseq
      %v1948 = vshrl.u32 %v1947, 7
      %v1949 = vsub.s32 %v1946, %v1948
      %v1950 = vrot.slane %v1928, %v1949
      %v1952 = vunpack.c.l.s4 1966171168
      %v1953 = vunpack.c.0.s8 %v1952
      %v1954 = vlaneseq
      %v1955 = vshrl.u32 %v1954, 7
      %v1956 = vsub.s32 %v1953, %v1955
      %v1957 = vrot.slane %v1929, %v1956
      %v1958 = vcombine.low %v1936, %v1943
      %v1959 = vcombine.low %v1950, %v1957
      %v1961 = vunpack.c.l.s4 1966171168
      %v1962 = vunpack.c.0.s8 %v1961
      %v1963 = vlaneseq
      %v1964 = vshrl.u32 %v1963, 7
      %v1965 = vsub.s32 %v1962, %v1964
      %v1966 = vrot.slane %v1958, %v1965
      %v1968 = vunpack.c.l.s4 1966171168
      %v1969 = vunpack.c.0.s8 %v1968
      %v1970 = vlaneseq
      %v1971 = vshrl.u32 %v1970, 7
      %v1972 = vsub.s32 %v1969, %v1971
      %v1973 = vrot.slane %v1959, %v1972
      %v1974 = vcombine.low %v1966, %v1973
      %v1975 = vcombine.low %v556, %v557
      %v1976 = vcombine.low %v571, %v586
      %v1977 = vcombine.low %v593, %v594
      %v1978 = vcombine.low %v595, %v609
      %v1980 = vunpack.c.l.s4 1966171168
      %v1981 = vunpack.c.0.s8 %v1980
      %v1982 = vlaneseq
      %v1983 = vshrl.u32 %v1982, 7
      %v1984 = vsub.s32 %v1981, %v1983
      %v1985 = vrot.slane %v1975, %v1984
      %v1987 = vunpack.c.l.s4 1966171168
      %v1988 = vunpack.c.0.s8 %v1987
      %v1989 = vlaneseq
      %v1990 = vshrl.u32 %v1989, 7
      %v1991 = vsub.s32 %v1988, %v1990
      %v1992 = vrot.slane %v1976, %v1991
      %v1994 = vunpack.c.l.s4 1966171168
      %v1995 = vunpack.c.0.s8 %v1994
      %v1996 = vlaneseq
      %v1997 = vshrl.u32 %v1996, 7
      %v1998 = vsub.s32 %v1995, %v1997
      %v1999 = vrot.slane %v1977, %v1998
      %v2001 = vunpack.c.l.s4 1966171168
      %v2002 = vunpack.c.0.s8 %v2001
      %v2003 = vlaneseq
      %v2004 = vshrl.u32 %v2003, 7
      %v2005 = vsub.s32 %v2002, %v2004
      %v2006 = vrot.slane %v1978, %v2005
      %v2007 = vcombine.low %v1985, %v1992
      %v2008 = vcombine.low %v1999, %v2006
      %v2010 = vunpack.c.l.s4 1966171168
      %v2011 = vunpack.c.0.s8 %v2010
      %v2012 = vlaneseq
      %v2013 = vshrl.u32 %v2012, 7
      %v2014 = vsub.s32 %v2011, %v2013
      %v2015 = vrot.slane %v2007, %v2014
      %v2017 = vunpack.c.l.s4 1966171168
      %v2018 = vunpack.c.0.s8 %v2017
      %v2019 = vlaneseq
      %v2020 = vshrl.u32 %v2019, 7
      %v2021 = vsub.s32 %v2018, %v2020
      %v2022 = vrot.slane %v2008, %v2021
      %v2023 = vcombine.low %v2015, %v2022
      %v2024 = vcombine.low %v624, %v631
      %v2025 = vcombine.low %v632, %v633
      %v2026 = vcombine.low %v647, %v662
      %v2027 = vcombine.low %v669, %v670
      %v2029 = vunpack.c.l.s4 1966171168
      %v2030 = vunpack.c.0.s8 %v2029
      %v2031 = vlaneseq
      %v2032 = vshrl.u32 %v2031, 7
      %v2033 = vsub.s32 %v2030, %v2032
      %v2034 = vrot.slane %v2024, %v2033
      %v2036 = vunpack.c.l.s4 1966171168
      %v2037 = vunpack.c.0.s8 %v2036
      %v2038 = vlaneseq
      %v2039 = vshrl.u32 %v2038, 7
      %v2040 = vsub.s32 %v2037, %v2039
      %v2041 = vrot.slane %v2025, %v2040
      %v2043 = vunpack.c.l.s4 1966171168
      %v2044 = vunpack.c.0.s8 %v2043
      %v2045 = vlaneseq
      %v2046 = vshrl.u32 %v2045, 7
      %v2047 = vsub.s32 %v2044, %v2046
      %v2048 = vrot.slane %v2026, %v2047
      %v2050 = vunpack.c.l.s4 1966171168
      %v2051 = vunpack.c.0.s8 %v2050
      %v2052 = vlaneseq
      %v2053 = vshrl.u32 %v2052, 7
      %v2054 = vsub.s32 %v2051, %v2053
      %v2055 = vrot.slane %v2027, %v2054
      %v2056 = vcombine.low %v2034, %v2041
      %v2057 = vcombine.low %v2048, %v2055
      %v2059 = vunpack.c.l.s4 1966171168
      %v2060 = vunpack.c.0.s8 %v2059
      %v2061 = vlaneseq
      %v2062 = vshrl.u32 %v2061, 7
      %v2063 = vsub.s32 %v2060, %v2062
      %v2064 = vrot.slane %v2056, %v2063
      %v2066 = vunpack.c.l.s4 1966171168
      %v2067 = vunpack.c.0.s8 %v2066
      %v2068 = vlaneseq
      %v2069 = vshrl.u32 %v2068, 7
      %v2070 = vsub.s32 %v2067, %v2069
      %v2071 = vrot.slane %v2057, %v2070
      %v2072 = vcombine.low %v2064, %v2071
      %v2073 = vcombine.low %v671, %v685
      %v2075 = vunpack.c.l.s4 1966171168
      %v2076 = vunpack.c.0.s8 %v2075
      %v2077 = vlaneseq
      %v2078 = vshrl.u32 %v2077, 7
      %v2079 = vsub.s32 %v2076, %v2078
      %v2080 = vrot.slane %v2073, %v2079
      %v2082 = vunpack.c.l.s4 1966171168
      %v2083 = vunpack.c.0.s8 %v2082
      %v2084 = vlaneseq
      %v2085 = vshrl.u32 %v2084, 7
      %v2086 = vsub.s32 %v2083, %v2085
      %v2087 = vrot.slane %v2080, %v2086
      %v2090 = vunpack.c.l.b16 %v284
      %v2091 = vunpack.c.l.b16 %v285
      %v2092 = vpack.c.b16 %v2091, %v2090
      %v2095 = vsel %vm1669, %v1827, 0
      %v2098 = vsel %vm1669, %v1876, 0
      %v2101 = vsel %vm1669, %v1925, 0
      %v2104 = vsel %vm1669, %v1974, 0
      %v2107 = vsel %vm1669, %v2023, 0
      %v2110 = vsel %vm1669, %v2072, 0
      %v2113 = vsel %vm1669, %v2087, 0
      %2115 = vmatprep.subr.bf16.mxu0 0
      %2116 = vmatpush1.bf16.msra.mxu0 %v2092
      %2117 = vmatprep.subr.bf16.mxu0 0
      %2118 = vmatpush1.bf16.msra.mxu0 0
      %2119 = vmatprep.subr.bf16.mxu0 0
      %2120 = vmatpush1.bf16.msra.mxu0 0
      %2121 = vmatprep.subr.bf16.mxu0 0
      %2122 = vmatpush1.bf16.msra.mxu0 0
      %2123 = vmatprep.subr.bf16.mxu0 0
      %2124 = vmatpush1.bf16.msra.mxu0 0
      %2125 = vmatprep.subr.bf16.mxu0 0
      %2126 = vmatpush1.bf16.msra.mxu0 0
      %2127 = vmatprep.subr.bf16.mxu0 0
      %2128 = vmatpush1.bf16.msra.mxu0 0
      %2129 = vmatprep.subr.bf16.mxu0 0
      %2130 = vmatpush1.bf16.msra.mxu0 0
      %2131 = vmatprep.subr.bf16.mxu0 0
      %2132 = vmatpush1.bf16.msra.mxu0 0
      %2133 = vmatprep.subr.bf16.mxu0 0
      %2134 = vmatpush1.bf16.msra.mxu0 0
      %2135 = vmatprep.subr.bf16.mxu0 0
      %2136 = vmatpush1.bf16.msra.mxu0 0
      %2137 = vmatprep.subr.bf16.mxu0 0
      %2138 = vmatpush1.bf16.msra.mxu0 0
      %2139 = vmatprep.subr.bf16.mxu0 0
      %2140 = vmatpush1.bf16.msra.mxu0 0
      %2141 = vmatprep.subr.bf16.mxu0 0
      %2142 = vmatpush1.bf16.msra.mxu0 0
      %2143 = vmatprep.subr.bf16.mxu0 0
      %2144 = vmatpush1.bf16.msra.mxu0 0
      %2145 = vmatprep.subr.bf16.mxu0 0
      %2146 = vmatpush1.bf16.msra.mxu0 0
      %2147 = vmatprep.mubr.bf16.mxu0 0
      %2148 = vmatmul.mubr.bf16.gmra.mrb[0].mxu0 %v2095
      %v2149 = vpop.f32.mrb[0].mxu0
      %v2150 = vadd.f32 %v1726, %v2149
      %v2151 = vpop.f32.mrb[0].mxu0
      %v2152 = vpop.f32.mrb[0].mxu0
      %v2153 = vadd.f32 %v1729, %v2152
      %v2154 = vpop.f32.mrb[0].mxu0
      %2155 = vmatprep.mubr.bf16.mxu0 0
      %2156 = vmatmul.mubr.bf16.gmra.mrb[0].mxu0 %v2098
      %v2157 = vpop.f32.mrb[0].mxu0
      %v2158 = vadd.f32 %v1734, %v2157
      %v2159 = vpop.f32.mrb[0].mxu0
      %v2160 = vpop.f32.mrb[0].mxu0
      %v2161 = vadd.f32 %v1737, %v2160
      %v2162 = vpop.f32.mrb[0].mxu0
      %2163 = vmatprep.mubr.bf16.mxu0 0
      %2164 = vmatmul.mubr.bf16.gmra.mrb[0].mxu0 %v2101
      %v2165 = vpop.f32.mrb[0].mxu0
      %v2166 = vadd.f32 %v1742, %v2165
      %v2167 = vpop.f32.mrb[0].mxu0
      %v2168 = vpop.f32.mrb[0].mxu0
      %v2169 = vadd.f32 %v1745, %v2168
      %v2170 = vpop.f32.mrb[0].mxu0
      %2171 = vmatprep.mubr.bf16.mxu0 0
      %2172 = vmatmul.mubr.bf16.gmra.mrb[0].mxu0 %v2104
      %v2173 = vpop.f32.mrb[0].mxu0
      %v2174 = vadd.f32 %v1750, %v2173
      %v2175 = vpop.f32.mrb[0].mxu0
      %v2176 = vpop.f32.mrb[0].mxu0
      %v2177 = vadd.f32 %v1753, %v2176
      %v2178 = vpop.f32.mrb[0].mxu0
      %2179 = vmatprep.mubr.bf16.mxu0 0
      %2180 = vmatmul.mubr.bf16.gmra.mrb[0].mxu0 %v2107
      %v2181 = vpop.f32.mrb[0].mxu0
      %v2182 = vadd.f32 %v1758, %v2181
      %v2183 = vpop.f32.mrb[0].mxu0
      %v2184 = vpop.f32.mrb[0].mxu0
      %v2185 = vadd.f32 %v1761, %v2184
      %v2186 = vpop.f32.mrb[0].mxu0
      %2187 = vmatprep.mubr.bf16.mxu0 0
      %2188 = vmatmul.mubr.bf16.gmra.mrb[0].mxu0 %v2110
      %v2189 = vpop.f32.mrb[0].mxu0
      %v2190 = vadd.f32 %v1766, %v2189
      %v2191 = vpop.f32.mrb[0].mxu0
      %v2192 = vpop.f32.mrb[0].mxu0
      %v2193 = vadd.f32 %v1769, %v2192
      %v2194 = vpop.f32.mrb[0].mxu0
      %2195 = vmatprep.mubr.bf16.mxu0 0
      %2196 = vmatmul.mubr.bf16.gmra.mrb[0].mxu0 %v2113
      %v2197 = vpop.f32.mrb[0].mxu0
      %v2198 = vadd.f32 %v1774, %v2197
      %v2199 = vpop.f32.mrb[0].mxu0
      %v2200 = vpop.f32.mrb[0].mxu0
      %v2201 = vpop.f32.mrb[0].mxu0
      %2202 = vdwg.mxu0
      %s2203 = scalar_lea.vmem %s244, 8
      %v2204 = vld [vmem:[%s2203] sm:$0xf]
      %v2205 = vld [vmem:[%s2203 + $0x4] sm:$0x1]
      %v2206 = vld [vmem:[%s2203 + $0x8] sm:$0xf]
      %v2207 = vld [vmem:[%s2203 + $0xc] sm:$0x1]
      %v2208 = vld [vmem:[%s2203 + $0x10] sm:$0xf]
      %v2209 = vld [vmem:[%s2203 + $0x14] sm:$0x1]
      %v2210 = vld [vmem:[%s2203 + $0x18] sm:$0xf]
      %v2211 = vld [vmem:[%s2203 + $0x1c] sm:$0x1]
      %v2212 = vld [vmem:[%s2203 + $0x20] sm:$0xf]
      %v2213 = vld [vmem:[%s2203 + $0x24] sm:$0x1]
      %v2214 = vld [vmem:[%s2203 + $0x28] sm:$0xf]
      %v2215 = vld [vmem:[%s2203 + $0x2c] sm:$0x1]
      %v2216 = vld [vmem:[%s2203 + $0x30] sm:$0xf]
      %v2217 = vld [vmem:[%s2203 + $0x34] sm:$0x1]
      %v2218 = vld [vmem:[%s2203 + $0x38] sm:$0xf]
      %v2219 = vld [vmem:[%s2203 + $0x3c] sm:$0x1]
      %v2220 = vld [vmem:[%s2203 + $0x40] sm:$0xf]
      %v2221 = vld [vmem:[%s2203 + $0x44] sm:$0x1]
      %v2222 = vld [vmem:[%s2203 + $0x48] sm:$0xf]
      %v2223 = vld [vmem:[%s2203 + $0x4c] sm:$0x1]
      %s2224 = scalar_lea.vmem %s248, 16
      %v2225 = vld [vmem:[%s2224] sm:$0xf]
      %v2226 = vld [vmem:[%s2224 + $0x4] sm:$0xf]
      %v2248 = vunpack.c.l.s4 1966171168
      %v2249 = vunpack.c.0.s8 %v2248
      %v2250 = vlaneseq
      %v2251 = vshrl.u32 %v2250, 7
      %v2252 = vsub.s32 %v2249, %v2251
      %v2253 = vrot.slane %v2204, %v2252
      %v2254 = vcombine.high %v2253, %v2253
      %v2256 = vunpack.c.l.s4 1966171168
      %v2257 = vunpack.c.0.s8 %v2256
      %v2258 = vlaneseq
      %v2259 = vshrl.u32 %v2258, 7
      %v2260 = vsub.s32 %v2257, %v2259
      %v2261 = vrot.slane %v2253, %v2260
      %v2263 = vunpack.c.l.s4 1966171168
      %v2264 = vunpack.c.0.s8 %v2263
      %v2265 = vlaneseq
      %v2266 = vshrl.u32 %v2265, 7
      %v2267 = vsub.s32 %v2264, %v2266
      %v2268 = vrot.slane %v2254, %v2267
      %v2269 = vcombine.high %v2261, %v2261
      %v2270 = vcombine.high %v2268, %v2268
      %v2272 = vunpack.c.l.s4 1966171168
      %v2273 = vunpack.c.0.s8 %v2272
      %v2274 = vlaneseq
      %v2275 = vshrl.u32 %v2274, 7
      %v2276 = vsub.s32 %v2273, %v2275
      %v2277 = vrot.slane %v2205, %v2276
      %v2279 = vunpack.c.l.s4 1966171168
      %v2280 = vunpack.c.0.s8 %v2279
      %v2281 = vlaneseq
      %v2282 = vshrl.u32 %v2281, 7
      %v2283 = vsub.s32 %v2280, %v2282
      %v2284 = vrot.slane %v2277, %v2283
      %v2286 = vunpack.c.l.s4 1966171168
      %v2287 = vunpack.c.0.s8 %v2286
      %v2288 = vlaneseq
      %v2289 = vshrl.u32 %v2288, 7
      %v2290 = vsub.s32 %v2287, %v2289
      %v2291 = vrot.slane %v2206, %v2290
      %v2292 = vcombine.high %v2291, %v2291
      %v2294 = vunpack.c.l.s4 1966171168
      %v2295 = vunpack.c.0.s8 %v2294
      %v2296 = vlaneseq
      %v2297 = vshrl.u32 %v2296, 7
      %v2298 = vsub.s32 %v2295, %v2297
      %v2299 = vrot.slane %v2291, %v2298
      %v2301 = vunpack.c.l.s4 1966171168
      %v2302 = vunpack.c.0.s8 %v2301
      %v2303 = vlaneseq
      %v2304 = vshrl.u32 %v2303, 7
      %v2305 = vsub.s32 %v2302, %v2304
      %v2306 = vrot.slane %v2292, %v2305
      %v2307 = vcombine.high %v2299, %v2299
      %v2308 = vcombine.high %v2306, %v2306
      %v2310 = vunpack.c.l.s4 1966171168
      %v2311 = vunpack.c.0.s8 %v2310
      %v2312 = vlaneseq
      %v2313 = vshrl.u32 %v2312, 7
      %v2314 = vsub.s32 %v2311, %v2313
      %v2315 = vrot.slane %v2207, %v2314
      %v2317 = vunpack.c.l.s4 1966171168
      %v2318 = vunpack.c.0.s8 %v2317
      %v2319 = vlaneseq
      %v2320 = vshrl.u32 %v2319, 7
      %v2321 = vsub.s32 %v2318, %v2320
      %v2322 = vrot.slane %v2315, %v2321
      %v2324 = vunpack.c.l.s4 1966171168
      %v2325 = vunpack.c.0.s8 %v2324
      %v2326 = vlaneseq
      %v2327 = vshrl.u32 %v2326, 7
      %v2328 = vsub.s32 %v2325, %v2327
      %v2329 = vrot.slane %v2208, %v2328
      %v2330 = vcombine.high %v2329, %v2329
      %v2332 = vunpack.c.l.s4 1966171168
      %v2333 = vunpack.c.0.s8 %v2332
      %v2334 = vlaneseq
      %v2335 = vshrl.u32 %v2334, 7
      %v2336 = vsub.s32 %v2333, %v2335
      %v2337 = vrot.slane %v2329, %v2336
      %v2339 = vunpack.c.l.s4 1966171168
      %v2340 = vunpack.c.0.s8 %v2339
      %v2341 = vlaneseq
      %v2342 = vshrl.u32 %v2341, 7
      %v2343 = vsub.s32 %v2340, %v2342
      %v2344 = vrot.slane %v2330, %v2343
      %v2345 = vcombine.high %v2337, %v2337
      %v2346 = vcombine.high %v2344, %v2344
      %v2348 = vunpack.c.l.s4 1966171168
      %v2349 = vunpack.c.0.s8 %v2348
      %v2350 = vlaneseq
      %v2351 = vshrl.u32 %v2350, 7
      %v2352 = vsub.s32 %v2349, %v2351
      %v2353 = vrot.slane %v2209, %v2352
      %v2355 = vunpack.c.l.s4 1966171168
      %v2356 = vunpack.c.0.s8 %v2355
      %v2357 = vlaneseq
      %v2358 = vshrl.u32 %v2357, 7
      %v2359 = vsub.s32 %v2356, %v2358
      %v2360 = vrot.slane %v2353, %v2359
      %v2362 = vunpack.c.l.s4 1966171168
      %v2363 = vunpack.c.0.s8 %v2362
      %v2364 = vlaneseq
      %v2365 = vshrl.u32 %v2364, 7
      %v2366 = vsub.s32 %v2363, %v2365
      %v2367 = vrot.slane %v2210, %v2366
      %v2368 = vcombine.high %v2367, %v2367
      %v2370 = vunpack.c.l.s4 1966171168
      %v2371 = vunpack.c.0.s8 %v2370
      %v2372 = vlaneseq
      %v2373 = vshrl.u32 %v2372, 7
      %v2374 = vsub.s32 %v2371, %v2373
      %v2375 = vrot.slane %v2367, %v2374
      %v2377 = vunpack.c.l.s4 1966171168
      %v2378 = vunpack.c.0.s8 %v2377
      %v2379 = vlaneseq
      %v2380 = vshrl.u32 %v2379, 7
      %v2381 = vsub.s32 %v2378, %v2380
      %v2382 = vrot.slane %v2368, %v2381
      %v2383 = vcombine.high %v2375, %v2375
      %v2384 = vcombine.high %v2382, %v2382
      %v2386 = vunpack.c.l.s4 1966171168
      %v2387 = vunpack.c.0.s8 %v2386
      %v2388 = vlaneseq
      %v2389 = vshrl.u32 %v2388, 7
      %v2390 = vsub.s32 %v2387, %v2389
      %v2391 = vrot.slane %v2211, %v2390
      %v2393 = vunpack.c.l.s4 1966171168
      %v2394 = vunpack.c.0.s8 %v2393
      %v2395 = vlaneseq
      %v2396 = vshrl.u32 %v2395, 7
      %v2397 = vsub.s32 %v2394, %v2396
      %v2398 = vrot.slane %v2391, %v2397
      %v2400 = vunpack.c.l.s4 1966171168
      %v2401 = vunpack.c.0.s8 %v2400
      %v2402 = vlaneseq
      %v2403 = vshrl.u32 %v2402, 7
      %v2404 = vsub.s32 %v2401, %v2403
      %v2405 = vrot.slane %v2212, %v2404
      %v2406 = vcombine.high %v2405, %v2405
      %v2408 = vunpack.c.l.s4 1966171168
      %v2409 = vunpack.c.0.s8 %v2408
      %v2410 = vlaneseq
      %v2411 = vshrl.u32 %v2410, 7
      %v2412 = vsub.s32 %v2409, %v2411
      %v2413 = vrot.slane %v2405, %v2412
      %v2415 = vunpack.c.l.s4 1966171168
      %v2416 = vunpack.c.0.s8 %v2415
      %v2417 = vlaneseq
      %v2418 = vshrl.u32 %v2417, 7
      %v2419 = vsub.s32 %v2416, %v2418
      %v2420 = vrot.slane %v2406, %v2419
      %v2421 = vcombine.high %v2413, %v2413
      %v2422 = vcombine.high %v2420, %v2420
      %v2424 = vunpack.c.l.s4 1966171168
      %v2425 = vunpack.c.0.s8 %v2424
      %v2426 = vlaneseq
      %v2427 = vshrl.u32 %v2426, 7
      %v2428 = vsub.s32 %v2425, %v2427
      %v2429 = vrot.slane %v2213, %v2428
      %v2431 = vunpack.c.l.s4 1966171168
      %v2432 = vunpack.c.0.s8 %v2431
      %v2433 = vlaneseq
      %v2434 = vshrl.u32 %v2433, 7
      %v2435 = vsub.s32 %v2432, %v2434
      %v2436 = vrot.slane %v2429, %v2435
      %v2438 = vunpack.c.l.s4 1966171168
      %v2439 = vunpack.c.0.s8 %v2438
      %v2440 = vlaneseq
      %v2441 = vshrl.u32 %v2440, 7
      %v2442 = vsub.s32 %v2439, %v2441
      %v2443 = vrot.slane %v2214, %v2442
      %v2444 = vcombine.high %v2443, %v2443
      %v2446 = vunpack.c.l.s4 1966171168
      %v2447 = vunpack.c.0.s8 %v2446
      %v2448 = vlaneseq
      %v2449 = vshrl.u32 %v2448, 7
      %v2450 = vsub.s32 %v2447, %v2449
      %v2451 = vrot.slane %v2443, %v2450
      %v2453 = vunpack.c.l.s4 1966171168
      %v2454 = vunpack.c.0.s8 %v2453
      %v2455 = vlaneseq
      %v2456 = vshrl.u32 %v2455, 7
      %v2457 = vsub.s32 %v2454, %v2456
      %v2458 = vrot.slane %v2444, %v2457
      %v2459 = vcombine.high %v2451, %v2451
      %v2460 = vcombine.high %v2458, %v2458
      %v2462 = vunpack.c.l.s4 1966171168
      %v2463 = vunpack.c.0.s8 %v2462
      %v2464 = vlaneseq
      %v2465 = vshrl.u32 %v2464, 7
      %v2466 = vsub.s32 %v2463, %v2465
      %v2467 = vrot.slane %v2215, %v2466
      %v2469 = vunpack.c.l.s4 1966171168
      %v2470 = vunpack.c.0.s8 %v2469
      %v2471 = vlaneseq
      %v2472 = vshrl.u32 %v2471, 7
      %v2473 = vsub.s32 %v2470, %v2472
      %v2474 = vrot.slane %v2467, %v2473
      %v2476 = vunpack.c.l.s4 1966171168
      %v2477 = vunpack.c.0.s8 %v2476
      %v2478 = vlaneseq
      %v2479 = vshrl.u32 %v2478, 7
      %v2480 = vsub.s32 %v2477, %v2479
      %v2481 = vrot.slane %v2216, %v2480
      %v2482 = vcombine.high %v2481, %v2481
      %v2484 = vunpack.c.l.s4 1966171168
      %v2485 = vunpack.c.0.s8 %v2484
      %v2486 = vlaneseq
      %v2487 = vshrl.u32 %v2486, 7
      %v2488 = vsub.s32 %v2485, %v2487
      %v2489 = vrot.slane %v2481, %v2488
      %v2491 = vunpack.c.l.s4 1966171168
      %v2492 = vunpack.c.0.s8 %v2491
      %v2493 = vlaneseq
      %v2494 = vshrl.u32 %v2493, 7
      %v2495 = vsub.s32 %v2492, %v2494
      %v2496 = vrot.slane %v2482, %v2495
      %v2497 = vcombine.high %v2489, %v2489
      %v2498 = vcombine.high %v2496, %v2496
      %v2500 = vunpack.c.l.s4 1966171168
      %v2501 = vunpack.c.0.s8 %v2500
      %v2502 = vlaneseq
      %v2503 = vshrl.u32 %v2502, 7
      %v2504 = vsub.s32 %v2501, %v2503
      %v2505 = vrot.slane %v2217, %v2504
      %v2507 = vunpack.c.l.s4 1966171168
      %v2508 = vunpack.c.0.s8 %v2507
      %v2509 = vlaneseq
      %v2510 = vshrl.u32 %v2509, 7
      %v2511 = vsub.s32 %v2508, %v2510
      %v2512 = vrot.slane %v2505, %v2511
      %v2514 = vunpack.c.l.s4 1966171168
      %v2515 = vunpack.c.0.s8 %v2514
      %v2516 = vlaneseq
      %v2517 = vshrl.u32 %v2516, 7
      %v2518 = vsub.s32 %v2515, %v2517
      %v2519 = vrot.slane %v2218, %v2518
      %v2520 = vcombine.high %v2519, %v2519
      %v2522 = vunpack.c.l.s4 1966171168
      %v2523 = vunpack.c.0.s8 %v2522
      %v2524 = vlaneseq
      %v2525 = vshrl.u32 %v2524, 7
      %v2526 = vsub.s32 %v2523, %v2525
      %v2527 = vrot.slane %v2519, %v2526
      %v2529 = vunpack.c.l.s4 1966171168
      %v2530 = vunpack.c.0.s8 %v2529
      %v2531 = vlaneseq
      %v2532 = vshrl.u32 %v2531, 7
      %v2533 = vsub.s32 %v2530, %v2532
      %v2534 = vrot.slane %v2520, %v2533
      %v2535 = vcombine.high %v2527, %v2527
      %v2536 = vcombine.high %v2534, %v2534
      %v2538 = vunpack.c.l.s4 1966171168
      %v2539 = vunpack.c.0.s8 %v2538
      %v2540 = vlaneseq
      %v2541 = vshrl.u32 %v2540, 7
      %v2542 = vsub.s32 %v2539, %v2541
      %v2543 = vrot.slane %v2219, %v2542
      %v2545 = vunpack.c.l.s4 1966171168
      %v2546 = vunpack.c.0.s8 %v2545
      %v2547 = vlaneseq
      %v2548 = vshrl.u32 %v2547, 7
      %v2549 = vsub.s32 %v2546, %v2548
      %v2550 = vrot.slane %v2543, %v2549
      %v2552 = vunpack.c.l.s4 1966171168
      %v2553 = vunpack.c.0.s8 %v2552
      %v2554 = vlaneseq
      %v2555 = vshrl.u32 %v2554, 7
      %v2556 = vsub.s32 %v2553, %v2555
      %v2557 = vrot.slane %v2220, %v2556
      %v2558 = vcombine.high %v2557, %v2557
      %v2560 = vunpack.c.l.s4 1966171168
      %v2561 = vunpack.c.0.s8 %v2560
      %v2562 = vlaneseq
      %v2563 = vshrl.u32 %v2562, 7
      %v2564 = vsub.s32 %v2561, %v2563
      %v2565 = vrot.slane %v2557, %v2564
      %v2567 = vunpack.c.l.s4 1966171168
      %v2568 = vunpack.c.0.s8 %v2567
      %v2569 = vlaneseq
      %v2570 = vshrl.u32 %v2569, 7
      %v2571 = vsub.s32 %v2568, %v2570
      %v2572 = vrot.slane %v2558, %v2571
      %v2573 = vcombine.high %v2565, %v2565
      %v2574 = vcombine.high %v2572, %v2572
      %v2576 = vunpack.c.l.s4 1966171168
      %v2577 = vunpack.c.0.s8 %v2576
      %v2578 = vlaneseq
      %v2579 = vshrl.u32 %v2578, 7
      %v2580 = vsub.s32 %v2577, %v2579
      %v2581 = vrot.slane %v2221, %v2580
      %v2583 = vunpack.c.l.s4 1966171168
      %v2584 = vunpack.c.0.s8 %v2583
      %v2585 = vlaneseq
      %v2586 = vshrl.u32 %v2585, 7
      %v2587 = vsub.s32 %v2584, %v2586
      %v2588 = vrot.slane %v2581, %v2587
      %v2590 = vunpack.c.l.s4 1966171168
      %v2591 = vunpack.c.0.s8 %v2590
      %v2592 = vlaneseq
      %v2593 = vshrl.u32 %v2592, 7
      %v2594 = vsub.s32 %v2591, %v2593
      %v2595 = vrot.slane %v2222, %v2594
      %v2596 = vcombine.high %v2595, %v2595
      %v2598 = vunpack.c.l.s4 1966171168
      %v2599 = vunpack.c.0.s8 %v2598
      %v2600 = vlaneseq
      %v2601 = vshrl.u32 %v2600, 7
      %v2602 = vsub.s32 %v2599, %v2601
      %v2603 = vrot.slane %v2595, %v2602
      %v2605 = vunpack.c.l.s4 1966171168
      %v2606 = vunpack.c.0.s8 %v2605
      %v2607 = vlaneseq
      %v2608 = vshrl.u32 %v2607, 7
      %v2609 = vsub.s32 %v2606, %v2608
      %v2610 = vrot.slane %v2596, %v2609
      %v2611 = vcombine.high %v2603, %v2603
      %v2612 = vcombine.high %v2610, %v2610
      %v2614 = vunpack.c.l.s4 1966171168
      %v2615 = vunpack.c.0.s8 %v2614
      %v2616 = vlaneseq
      %v2617 = vshrl.u32 %v2616, 7
      %v2618 = vsub.s32 %v2615, %v2617
      %v2619 = vrot.slane %v2223, %v2618
      %v2621 = vunpack.c.l.s4 1966171168
      %v2622 = vunpack.c.0.s8 %v2621
      %v2623 = vlaneseq
      %v2624 = vshrl.u32 %v2623, 7
      %v2625 = vsub.s32 %v2622, %v2624
      %v2626 = vrot.slane %v2619, %v2625
      %v2627 = vcombine.low %v2261, %v2268
      %v2628 = vcombine.low %v2269, %v2270
      %v2629 = vcombine.low %v2284, %v2299
      %v2630 = vcombine.low %v2306, %v2307
      %v2632 = vunpack.c.l.s4 1966171168
      %v2633 = vunpack.c.0.s8 %v2632
      %v2634 = vlaneseq
      %v2635 = vshrl.u32 %v2634, 7
      %v2636 = vsub.s32 %v2633, %v2635
      %v2637 = vrot.slane %v2627, %v2636
      %v2639 = vunpack.c.l.s4 1966171168
      %v2640 = vunpack.c.0.s8 %v2639
      %v2641 = vlaneseq
      %v2642 = vshrl.u32 %v2641, 7
      %v2643 = vsub.s32 %v2640, %v2642
      %v2644 = vrot.slane %v2628, %v2643
      %v2646 = vunpack.c.l.s4 1966171168
      %v2647 = vunpack.c.0.s8 %v2646
      %v2648 = vlaneseq
      %v2649 = vshrl.u32 %v2648, 7
      %v2650 = vsub.s32 %v2647, %v2649
      %v2651 = vrot.slane %v2629, %v2650
      %v2653 = vunpack.c.l.s4 1966171168
      %v2654 = vunpack.c.0.s8 %v2653
      %v2655 = vlaneseq
      %v2656 = vshrl.u32 %v2655, 7
      %v2657 = vsub.s32 %v2654, %v2656
      %v2658 = vrot.slane %v2630, %v2657
      %v2659 = vcombine.low %v2637, %v2644
      %v2660 = vcombine.low %v2651, %v2658
      %v2662 = vunpack.c.l.s4 1966171168
      %v2663 = vunpack.c.0.s8 %v2662
      %v2664 = vlaneseq
      %v2665 = vshrl.u32 %v2664, 7
      %v2666 = vsub.s32 %v2663, %v2665
      %v2667 = vrot.slane %v2659, %v2666
      %v2669 = vunpack.c.l.s4 1966171168
      %v2670 = vunpack.c.0.s8 %v2669
      %v2671 = vlaneseq
      %v2672 = vshrl.u32 %v2671, 7
      %v2673 = vsub.s32 %v2670, %v2672
      %v2674 = vrot.slane %v2660, %v2673
      %v2675 = vcombine.low %v2667, %v2674
      %v2676 = vcombine.low %v2308, %v2322
      %v2677 = vcombine.low %v2337, %v2344
      %v2678 = vcombine.low %v2345, %v2346
      %v2679 = vcombine.low %v2360, %v2375
      %v2681 = vunpack.c.l.s4 1966171168
      %v2682 = vunpack.c.0.s8 %v2681
      %v2683 = vlaneseq
      %v2684 = vshrl.u32 %v2683, 7
      %v2685 = vsub.s32 %v2682, %v2684
      %v2686 = vrot.slane %v2676, %v2685
      %v2688 = vunpack.c.l.s4 1966171168
      %v2689 = vunpack.c.0.s8 %v2688
      %v2690 = vlaneseq
      %v2691 = vshrl.u32 %v2690, 7
      %v2692 = vsub.s32 %v2689, %v2691
      %v2693 = vrot.slane %v2677, %v2692
      %v2695 = vunpack.c.l.s4 1966171168
      %v2696 = vunpack.c.0.s8 %v2695
      %v2697 = vlaneseq
      %v2698 = vshrl.u32 %v2697, 7
      %v2699 = vsub.s32 %v2696, %v2698
      %v2700 = vrot.slane %v2678, %v2699
      %v2702 = vunpack.c.l.s4 1966171168
      %v2703 = vunpack.c.0.s8 %v2702
      %v2704 = vlaneseq
      %v2705 = vshrl.u32 %v2704, 7
      %v2706 = vsub.s32 %v2703, %v2705
      %v2707 = vrot.slane %v2679, %v2706
      %v2708 = vcombine.low %v2686, %v2693
      %v2709 = vcombine.low %v2700, %v2707
      %v2711 = vunpack.c.l.s4 1966171168
      %v2712 = vunpack.c.0.s8 %v2711
      %v2713 = vlaneseq
      %v2714 = vshrl.u32 %v2713, 7
      %v2715 = vsub.s32 %v2712, %v2714
      %v2716 = vrot.slane %v2708, %v2715
      %v2718 = vunpack.c.l.s4 1966171168
      %v2719 = vunpack.c.0.s8 %v2718
      %v2720 = vlaneseq
      %v2721 = vshrl.u32 %v2720, 7
      %v2722 = vsub.s32 %v2719, %v2721
      %v2723 = vrot.slane %v2709, %v2722
      %v2724 = vcombine.low %v2716, %v2723
      %v2725 = vcombine.low %v2382, %v2383
      %v2726 = vcombine.low %v2384, %v2398
      %v2727 = vcombine.low %v2413, %v2420
      %v2728 = vcombine.low %v2421, %v2422
      %v2730 = vunpack.c.l.s4 1966171168
      %v2731 = vunpack.c.0.s8 %v2730
      %v2732 = vlaneseq
      %v2733 = vshrl.u32 %v2732, 7
      %v2734 = vsub.s32 %v2731, %v2733
      %v2735 = vrot.slane %v2725, %v2734
      %v2737 = vunpack.c.l.s4 1966171168
      %v2738 = vunpack.c.0.s8 %v2737
      %v2739 = vlaneseq
      %v2740 = vshrl.u32 %v2739, 7
      %v2741 = vsub.s32 %v2738, %v2740
      %v2742 = vrot.slane %v2726, %v2741
      %v2744 = vunpack.c.l.s4 1966171168
      %v2745 = vunpack.c.0.s8 %v2744
      %v2746 = vlaneseq
      %v2747 = vshrl.u32 %v2746, 7
      %v2748 = vsub.s32 %v2745, %v2747
      %v2749 = vrot.slane %v2727, %v2748
      %v2751 = vunpack.c.l.s4 1966171168
      %v2752 = vunpack.c.0.s8 %v2751
      %v2753 = vlaneseq
      %v2754 = vshrl.u32 %v2753, 7
      %v2755 = vsub.s32 %v2752, %v2754
      %v2756 = vrot.slane %v2728, %v2755
      %v2757 = vcombine.low %v2735, %v2742
      %v2758 = vcombine.low %v2749, %v2756
      %v2760 = vunpack.c.l.s4 1966171168
      %v2761 = vunpack.c.0.s8 %v2760
      %v2762 = vlaneseq
      %v2763 = vshrl.u32 %v2762, 7
      %v2764 = vsub.s32 %v2761, %v2763
      %v2765 = vrot.slane %v2757, %v2764
      %v2767 = vunpack.c.l.s4 1966171168
      %v2768 = vunpack.c.0.s8 %v2767
      %v2769 = vlaneseq
      %v2770 = vshrl.u32 %v2769, 7
      %v2771 = vsub.s32 %v2768, %v2770
      %v2772 = vrot.slane %v2758, %v2771
      %v2773 = vcombine.low %v2765, %v2772
      %v2774 = vcombine.low %v2436, %v2451
      %v2775 = vcombine.low %v2458, %v2459
      %v2776 = vcombine.low %v2460, %v2474
      %v2777 = vcombine.low %v2489, %v2496
      %v2779 = vunpack.c.l.s4 1966171168
      %v2780 = vunpack.c.0.s8 %v2779
      %v2781 = vlaneseq
      %v2782 = vshrl.u32 %v2781, 7
      %v2783 = vsub.s32 %v2780, %v2782
      %v2784 = vrot.slane %v2774, %v2783
      %v2786 = vunpack.c.l.s4 1966171168
      %v2787 = vunpack.c.0.s8 %v2786
      %v2788 = vlaneseq
      %v2789 = vshrl.u32 %v2788, 7
      %v2790 = vsub.s32 %v2787, %v2789
      %v2791 = vrot.slane %v2775, %v2790
      %v2793 = vunpack.c.l.s4 1966171168
      %v2794 = vunpack.c.0.s8 %v2793
      %v2795 = vlaneseq
      %v2796 = vshrl.u32 %v2795, 7
      %v2797 = vsub.s32 %v2794, %v2796
      %v2798 = vrot.slane %v2776, %v2797
      %v2800 = vunpack.c.l.s4 1966171168
      %v2801 = vunpack.c.0.s8 %v2800
      %v2802 = vlaneseq
      %v2803 = vshrl.u32 %v2802, 7
      %v2804 = vsub.s32 %v2801, %v2803
      %v2805 = vrot.slane %v2777, %v2804
      %v2806 = vcombine.low %v2784, %v2791
      %v2807 = vcombine.low %v2798, %v2805
      %v2809 = vunpack.c.l.s4 1966171168
      %v2810 = vunpack.c.0.s8 %v2809
      %v2811 = vlaneseq
      %v2812 = vshrl.u32 %v2811, 7
      %v2813 = vsub.s32 %v2810, %v2812
      %v2814 = vrot.slane %v2806, %v2813
      %v2816 = vunpack.c.l.s4 1966171168
      %v2817 = vunpack.c.0.s8 %v2816
      %v2818 = vlaneseq
      %v2819 = vshrl.u32 %v2818, 7
      %v2820 = vsub.s32 %v2817, %v2819
      %v2821 = vrot.slane %v2807, %v2820
      %v2822 = vcombine.low %v2814, %v2821
      %v2823 = vcombine.low %v2497, %v2498
      %v2824 = vcombine.low %v2512, %v2527
      %v2825 = vcombine.low %v2534, %v2535
      %v2826 = vcombine.low %v2536, %v2550
      %v2828 = vunpack.c.l.s4 1966171168
      %v2829 = vunpack.c.0.s8 %v2828
      %v2830 = vlaneseq
      %v2831 = vshrl.u32 %v2830, 7
      %v2832 = vsub.s32 %v2829, %v2831
      %v2833 = vrot.slane %v2823, %v2832
      %v2835 = vunpack.c.l.s4 1966171168
      %v2836 = vunpack.c.0.s8 %v2835
      %v2837 = vlaneseq
      %v2838 = vshrl.u32 %v2837, 7
      %v2839 = vsub.s32 %v2836, %v2838
      %v2840 = vrot.slane %v2824, %v2839
      %v2842 = vunpack.c.l.s4 1966171168
      %v2843 = vunpack.c.0.s8 %v2842
      %v2844 = vlaneseq
      %v2845 = vshrl.u32 %v2844, 7
      %v2846 = vsub.s32 %v2843, %v2845
      %v2847 = vrot.slane %v2825, %v2846
      %v2849 = vunpack.c.l.s4 1966171168
      %v2850 = vunpack.c.0.s8 %v2849
      %v2851 = vlaneseq
      %v2852 = vshrl.u32 %v2851, 7
      %v2853 = vsub.s32 %v2850, %v2852
      %v2854 = vrot.slane %v2826, %v2853
      %v2855 = vcombine.low %v2833, %v2840
      %v2856 = vcombine.low %v2847, %v2854
      %v2858 = vunpack.c.l.s4 1966171168
      %v2859 = vunpack.c.0.s8 %v2858
      %v2860 = vlaneseq
      %v2861 = vshrl.u32 %v2860, 7
      %v2862 = vsub.s32 %v2859, %v2861
      %v2863 = vrot.slane %v2855, %v2862
      %v2865 = vunpack.c.l.s4 1966171168
      %v2866 = vunpack.c.0.s8 %v2865
      %v2867 = vlaneseq
      %v2868 = vshrl.u32 %v2867, 7
      %v2869 = vsub.s32 %v2866, %v2868
      %v2870 = vrot.slane %v2856, %v2869
      %v2871 = vcombine.low %v2863, %v2870
      %v2872 = vcombine.low %v2565, %v2572
      %v2873 = vcombine.low %v2573, %v2574
      %v2874 = vcombine.low %v2588, %v2603
      %v2875 = vcombine.low %v2610, %v2611
      %v2877 = vunpack.c.l.s4 1966171168
      %v2878 = vunpack.c.0.s8 %v2877
      %v2879 = vlaneseq
      %v2880 = vshrl.u32 %v2879, 7
      %v2881 = vsub.s32 %v2878, %v2880
      %v2882 = vrot.slane %v2872, %v2881
      %v2884 = vunpack.c.l.s4 1966171168
      %v2885 = vunpack.c.0.s8 %v2884
      %v2886 = vlaneseq
      %v2887 = vshrl.u32 %v2886, 7
      %v2888 = vsub.s32 %v2885, %v2887
      %v2889 = vrot.slane %v2873, %v2888
      %v2891 = vunpack.c.l.s4 1966171168
      %v2892 = vunpack.c.0.s8 %v2891
      %v2893 = vlaneseq
      %v2894 = vshrl.u32 %v2893, 7
      %v2895 = vsub.s32 %v2892, %v2894
      %v2896 = vrot.slane %v2874, %v2895
      %v2898 = vunpack.c.l.s4 1966171168
      %v2899 = vunpack.c.0.s8 %v2898
      %v2900 = vlaneseq
      %v2901 = vshrl.u32 %v2900, 7
      %v2902 = vsub.s32 %v2899, %v2901
      %v2903 = vrot.slane %v2875, %v2902
      %v2904 = vcombine.low %v2882, %v2889
      %v2905 = vcombine.low %v2896, %v2903
      %v2907 = vunpack.c.l.s4 1966171168
      %v2908 = vunpack.c.0.s8 %v2907
      %v2909 = vlaneseq
      %v2910 = vshrl.u32 %v2909, 7
      %v2911 = vsub.s32 %v2908, %v2910
      %v2912 = vrot.slane %v2904, %v2911
      %v2914 = vunpack.c.l.s4 1966171168
      %v2915 = vunpack.c.0.s8 %v2914
      %v2916 = vlaneseq
      %v2917 = vshrl.u32 %v2916, 7
      %v2918 = vsub.s32 %v2915, %v2917
      %v2919 = vrot.slane %v2905, %v2918
      %v2920 = vcombine.low %v2912, %v2919
      %v2921 = vcombine.low %v2612, %v2626
      %v2923 = vunpack.c.l.s4 1966171168
      %v2924 = vunpack.c.0.s8 %v2923
      %v2925 = vlaneseq
      %v2926 = vshrl.u32 %v2925, 7
      %v2927 = vsub.s32 %v2924, %v2926
      %v2928 = vrot.slane %v2921, %v2927
      %v2930 = vunpack.c.l.s4 1966171168
      %v2931 = vunpack.c.0.s8 %v2930
      %v2932 = vlaneseq
      %v2933 = vshrl.u32 %v2932, 7
      %v2934 = vsub.s32 %v2931, %v2933
      %v2935 = vrot.slane %v2928, %v2934
      %v2938 = vunpack.c.l.b16 %v2225
      %v2939 = vunpack.c.l.b16 %v2226
      %v2940 = vpack.c.b16 %v2939, %v2938
      %v2943 = vsel %vm1669, %v2675, 0
      %v2946 = vsel %vm1669, %v2724, 0
      %v2949 = vsel %vm1669, %v2773, 0
      %v2952 = vsel %vm1669, %v2822, 0
      %v2955 = vsel %vm1669, %v2871, 0
      %v2958 = vsel %vm1669, %v2920, 0
      %v2961 = vsel %vm1669, %v2935, 0
      %2963 = vmatprep.subr.bf16.mxu0 0
      %2964 = vmatpush1.bf16.msra.mxu0 %v2940
      %2965 = vmatprep.subr.bf16.mxu0 0
      %2966 = vmatpush1.bf16.msra.mxu0 0
      %2967 = vmatprep.subr.bf16.mxu0 0
      %2968 = vmatpush1.bf16.msra.mxu0 0
      %2969 = vmatprep.subr.bf16.mxu0 0
      %2970 = vmatpush1.bf16.msra.mxu0 0
      %2971 = vmatprep.subr.bf16.mxu0 0
      %2972 = vmatpush1.bf16.msra.mxu0 0
      %2973 = vmatprep.subr.bf16.mxu0 0
      %2974 = vmatpush1.bf16.msra.mxu0 0
      %2975 = vmatprep.subr.bf16.mxu0 0
      %2976 = vmatpush1.bf16.msra.mxu0 0
      %2977 = vmatprep.subr.bf16.mxu0 0
      %2978 = vmatpush1.bf16.msra.mxu0 0
      %2979 = vmatprep.subr.bf16.mxu0 0
      %2980 = vmatpush1.bf16.msra.mxu0 0
      %2981 = vmatprep.subr.bf16.mxu0 0
      %2982 = vmatpush1.bf16.msra.mxu0 0
      %2983 = vmatprep.subr.bf16.mxu0 0
      %2984 = vmatpush1.bf16.msra.mxu0 0
      %2985 = vmatprep.subr.bf16.mxu0 0
      %2986 = vmatpush1.bf16.msra.mxu0 0
      %2987 = vmatprep.subr.bf16.mxu0 0
      %2988 = vmatpush1.bf16.msra.mxu0 0
      %2989 = vmatprep.subr.bf16.mxu0 0
      %2990 = vmatpush1.bf16.msra.mxu0 0
      %2991 = vmatprep.subr.bf16.mxu0 0
      %2992 = vmatpush1.bf16.msra.mxu0 0
      %2993 = vmatprep.subr.bf16.mxu0 0
      %2994 = vmatpush1.bf16.msra.mxu0 0
      %2995 = vmatprep.mubr.bf16.mxu0 0
      %2996 = vmatmul.mubr.bf16.gmra.mrb[0].mxu0 %v2943
      %v2997 = vpop.f32.mrb[0].mxu0
      %v2998 = vadd.f32 0.0, %v2997
      %v2999 = vpop.f32.mrb[0].mxu0
      %v3000 = vpop.f32.mrb[0].mxu0
      %v3001 = vadd.f32 0.0, %v3000
      %v3002 = vpop.f32.mrb[0].mxu0
      %3003 = vmatprep.mubr.bf16.mxu0 0
      %3004 = vmatmul.mubr.bf16.gmra.mrb[0].mxu0 %v2946
      %v3005 = vpop.f32.mrb[0].mxu0
      %v3006 = vadd.f32 0.0, %v3005
      %v3007 = vpop.f32.mrb[0].mxu0
      %v3008 = vpop.f32.mrb[0].mxu0
      %v3009 = vadd.f32 0.0, %v3008
      %v3010 = vpop.f32.mrb[0].mxu0
      %3011 = vmatprep.mubr.bf16.mxu0 0
      %3012 = vmatmul.mubr.bf16.gmra.mrb[0].mxu0 %v2949
      %v3013 = vpop.f32.mrb[0].mxu0
      %v3014 = vadd.f32 0.0, %v3013
      %v3015 = vpop.f32.mrb[0].mxu0
      %v3016 = vpop.f32.mrb[0].mxu0
      %v3017 = vadd.f32 0.0, %v3016
      %v3018 = vpop.f32.mrb[0].mxu0
      %3019 = vmatprep.mubr.bf16.mxu0 0
      %3020 = vmatmul.mubr.bf16.gmra.mrb[0].mxu0 %v2952
      %v3021 = vpop.f32.mrb[0].mxu0
      %v3022 = vadd.f32 0.0, %v3021
      %v3023 = vpop.f32.mrb[0].mxu0
      %v3024 = vpop.f32.mrb[0].mxu0
      %v3025 = vadd.f32 0.0, %v3024
      %v3026 = vpop.f32.mrb[0].mxu0
      %3027 = vmatprep.mubr.bf16.mxu0 0
      %3028 = vmatmul.mubr.bf16.gmra.mrb[0].mxu0 %v2955
      %v3029 = vpop.f32.mrb[0].mxu0
      %v3030 = vadd.f32 0.0, %v3029
      %v3031 = vpop.f32.mrb[0].mxu0
      %v3032 = vpop.f32.mrb[0].mxu0
      %v3033 = vadd.f32 0.0, %v3032
      %v3034 = vpop.f32.mrb[0].mxu0
      %3035 = vmatprep.mubr.bf16.mxu0 0
      %3036 = vmatmul.mubr.bf16.gmra.mrb[0].mxu0 %v2958
      %v3037 = vpop.f32.mrb[0].mxu0
      %v3038 = vadd.f32 0.0, %v3037
      %v3039 = vpop.f32.mrb[0].mxu0
      %v3040 = vpop.f32.mrb[0].mxu0
      %v3041 = vadd.f32 0.0, %v3040
      %v3042 = vpop.f32.mrb[0].mxu0
      %3043 = vmatprep.mubr.bf16.mxu0 0
      %3044 = vmatmul.mubr.bf16.gmra.mrb[0].mxu0 %v2961
      %v3045 = vpop.f32.mrb[0].mxu0
      %v3046 = vadd.f32 0.0, %v3045
      %v3047 = vpop.f32.mrb[0].mxu0
      %v3048 = vpop.f32.mrb[0].mxu0
      %v3049 = vpop.f32.mrb[0].mxu0
      %3050 = vdwg.mxu0
      %v3051 = vadd.f32 %v2150, %v2998
      %v3052 = vadd.f32 %v2153, %v3001
      %v3053 = vadd.f32 %v2158, %v3006
      %v3054 = vadd.f32 %v2161, %v3009
      %v3055 = vadd.f32 %v2166, %v3014
      %v3056 = vadd.f32 %v2169, %v3017
      %v3057 = vadd.f32 %v2174, %v3022
      %v3058 = vadd.f32 %v2177, %v3025
      %v3059 = vadd.f32 %v2182, %v3030
      %v3060 = vadd.f32 %v2185, %v3033
      %v3061 = vadd.f32 %v2190, %v3038
      %v3062 = vadd.f32 %v2193, %v3041
      %v3063 = vadd.f32 %v2198, %v3046
      %v3064 = vld [vmem:[%s2203] sm:$0xf]
      %v3065 = vld [vmem:[%s2203 + $0x4] sm:$0x3]
      %v3066 = vld [vmem:[%s2203 + $0x8] sm:$0xf]
      %v3067 = vld [vmem:[%s2203 + $0xc] sm:$0x3]
      %v3068 = vld [vmem:[%s2203 + $0x10] sm:$0xf]
      %v3069 = vld [vmem:[%s2203 + $0x14] sm:$0x3]
      %v3070 = vld [vmem:[%s2203 + $0x18] sm:$0xf]
      %v3071 = vld [vmem:[%s2203 + $0x1c] sm:$0x3]
      %v3072 = vld [vmem:[%s2203 + $0x20] sm:$0xf]
      %v3073 = vld [vmem:[%s2203 + $0x24] sm:$0x3]
      %v3074 = vld [vmem:[%s2203 + $0x28] sm:$0xf]
      %v3075 = vld [vmem:[%s2203 + $0x2c] sm:$0x3]
      %v3076 = vld [vmem:[%s2203 + $0x30] sm:$0xf]
      %v3077 = vld [vmem:[%s2203 + $0x34] sm:$0x3]
      %v3078 = vld [vmem:[%s2203 + $0x38] sm:$0xf]
      %v3079 = vld [vmem:[%s2203 + $0x3c] sm:$0x3]
      %v3080 = vld [vmem:[%s2203 + $0x40] sm:$0xf]
      %v3081 = vld [vmem:[%s2203 + $0x44] sm:$0x3]
      %v3082 = vld [vmem:[%s2203 + $0x48] sm:$0xf]
      %v3083 = vld [vmem:[%s2203 + $0x4c] sm:$0x3]
      %s3084 = scalar_lea.vmem %s248, 24
      %v3085 = vld [vmem:[%s3084] sm:$0xf]
      %v3086 = vld [vmem:[%s3084 + $0x4] sm:$0xf]
      %v3108 = vunpack.c.l.s4 1966171168
      %v3109 = vunpack.c.0.s8 %v3108
      %v3110 = vlaneseq
      %v3111 = vshrl.u32 %v3110, 7
      %v3112 = vsub.s32 %v3109, %v3111
      %v3113 = vrot.slane %v3064, %v3112
      %v3114 = vcombine.high %v3113, %v3113
      %v3116 = vunpack.c.l.s4 1966171168
      %v3117 = vunpack.c.0.s8 %v3116
      %v3118 = vlaneseq
      %v3119 = vshrl.u32 %v3118, 7
      %v3120 = vsub.s32 %v3117, %v3119
      %v3121 = vrot.slane %v3113, %v3120
      %v3123 = vunpack.c.l.s4 1966171168
      %v3124 = vunpack.c.0.s8 %v3123
      %v3125 = vlaneseq
      %v3126 = vshrl.u32 %v3125, 7
      %v3127 = vsub.s32 %v3124, %v3126
      %v3128 = vrot.slane %v3114, %v3127
      %v3129 = vcombine.high %v3121, %v3121
      %v3130 = vcombine.high %v3128, %v3128
      %v3132 = vunpack.c.l.s4 1966171168
      %v3133 = vunpack.c.0.s8 %v3132
      %v3134 = vlaneseq
      %v3135 = vshrl.u32 %v3134, 7
      %v3136 = vsub.s32 %v3133, %v3135
      %v3137 = vrot.slane %v3065, %v3136
      %v3138 = vcombine.high %v3137, %v3137
      %v3140 = vunpack.c.l.s4 1966171168
      %v3141 = vunpack.c.0.s8 %v3140
      %v3142 = vlaneseq
      %v3143 = vshrl.u32 %v3142, 7
      %v3144 = vsub.s32 %v3141, %v3143
      %v3145 = vrot.slane %v3137, %v3144
      %v3147 = vunpack.c.l.s4 1966171168
      %v3148 = vunpack.c.0.s8 %v3147
      %v3149 = vlaneseq
      %v3150 = vshrl.u32 %v3149, 7
      %v3151 = vsub.s32 %v3148, %v3150
      %v3152 = vrot.slane %v3138, %v3151
      %v3154 = vunpack.c.l.s4 1966171168
      %v3155 = vunpack.c.0.s8 %v3154
      %v3156 = vlaneseq
      %v3157 = vshrl.u32 %v3156, 7
      %v3158 = vsub.s32 %v3155, %v3157
      %v3159 = vrot.slane %v3066, %v3158
      %v3160 = vcombine.high %v3159, %v3159
      %v3162 = vunpack.c.l.s4 1966171168
      %v3163 = vunpack.c.0.s8 %v3162
      %v3164 = vlaneseq
      %v3165 = vshrl.u32 %v3164, 7
      %v3166 = vsub.s32 %v3163, %v3165
      %v3167 = vrot.slane %v3159, %v3166
      %v3169 = vunpack.c.l.s4 1966171168
      %v3170 = vunpack.c.0.s8 %v3169
      %v3171 = vlaneseq
      %v3172 = vshrl.u32 %v3171, 7
      %v3173 = vsub.s32 %v3170, %v3172
      %v3174 = vrot.slane %v3160, %v3173
      %v3175 = vcombine.high %v3167, %v3167
      %v3176 = vcombine.high %v3174, %v3174
      %v3178 = vunpack.c.l.s4 1966171168
      %v3179 = vunpack.c.0.s8 %v3178
      %v3180 = vlaneseq
      %v3181 = vshrl.u32 %v3180, 7
      %v3182 = vsub.s32 %v3179, %v3181
      %v3183 = vrot.slane %v3067, %v3182
      %v3184 = vcombine.high %v3183, %v3183
      %v3186 = vunpack.c.l.s4 1966171168
      %v3187 = vunpack.c.0.s8 %v3186
      %v3188 = vlaneseq
      %v3189 = vshrl.u32 %v3188, 7
      %v3190 = vsub.s32 %v3187, %v3189
      %v3191 = vrot.slane %v3183, %v3190
      %v3193 = vunpack.c.l.s4 1966171168
      %v3194 = vunpack.c.0.s8 %v3193
      %v3195 = vlaneseq
      %v3196 = vshrl.u32 %v3195, 7
      %v3197 = vsub.s32 %v3194, %v3196
      %v3198 = vrot.slane %v3184, %v3197
      %v3200 = vunpack.c.l.s4 1966171168
      %v3201 = vunpack.c.0.s8 %v3200
      %v3202 = vlaneseq
      %v3203 = vshrl.u32 %v3202, 7
      %v3204 = vsub.s32 %v3201, %v3203
      %v3205 = vrot.slane %v3068, %v3204
      %v3206 = vcombine.high %v3205, %v3205
      %v3208 = vunpack.c.l.s4 1966171168
      %v3209 = vunpack.c.0.s8 %v3208
      %v3210 = vlaneseq
      %v3211 = vshrl.u32 %v3210, 7
      %v3212 = vsub.s32 %v3209, %v3211
      %v3213 = vrot.slane %v3205, %v3212
      %v3215 = vunpack.c.l.s4 1966171168
      %v3216 = vunpack.c.0.s8 %v3215
      %v3217 = vlaneseq
      %v3218 = vshrl.u32 %v3217, 7
      %v3219 = vsub.s32 %v3216, %v3218
      %v3220 = vrot.slane %v3206, %v3219
      %v3221 = vcombine.high %v3213, %v3213
      %v3222 = vcombine.high %v3220, %v3220
      %v3224 = vunpack.c.l.s4 1966171168
      %v3225 = vunpack.c.0.s8 %v3224
      %v3226 = vlaneseq
      %v3227 = vshrl.u32 %v3226, 7
      %v3228 = vsub.s32 %v3225, %v3227
      %v3229 = vrot.slane %v3069, %v3228
      %v3230 = vcombine.high %v3229, %v3229
      %v3232 = vunpack.c.l.s4 1966171168
      %v3233 = vunpack.c.0.s8 %v3232
      %v3234 = vlaneseq
      %v3235 = vshrl.u32 %v3234, 7
      %v3236 = vsub.s32 %v3233, %v3235
      %v3237 = vrot.slane %v3229, %v3236
      %v3239 = vunpack.c.l.s4 1966171168
      %v3240 = vunpack.c.0.s8 %v3239
      %v3241 = vlaneseq
      %v3242 = vshrl.u32 %v3241, 7
      %v3243 = vsub.s32 %v3240, %v3242
      %v3244 = vrot.slane %v3230, %v3243
      %v3246 = vunpack.c.l.s4 1966171168
      %v3247 = vunpack.c.0.s8 %v3246
      %v3248 = vlaneseq
      %v3249 = vshrl.u32 %v3248, 7
      %v3250 = vsub.s32 %v3247, %v3249
      %v3251 = vrot.slane %v3070, %v3250
      %v3252 = vcombine.high %v3251, %v3251
      %v3254 = vunpack.c.l.s4 1966171168
      %v3255 = vunpack.c.0.s8 %v3254
      %v3256 = vlaneseq
      %v3257 = vshrl.u32 %v3256, 7
      %v3258 = vsub.s32 %v3255, %v3257
      %v3259 = vrot.slane %v3251, %v3258
      %v3261 = vunpack.c.l.s4 1966171168
      %v3262 = vunpack.c.0.s8 %v3261
      %v3263 = vlaneseq
      %v3264 = vshrl.u32 %v3263, 7
      %v3265 = vsub.s32 %v3262, %v3264
      %v3266 = vrot.slane %v3252, %v3265
      %v3267 = vcombine.high %v3259, %v3259
      %v3268 = vcombine.high %v3266, %v3266
      %v3270 = vunpack.c.l.s4 1966171168
      %v3271 = vunpack.c.0.s8 %v3270
      %v3272 = vlaneseq
      %v3273 = vshrl.u32 %v3272, 7
      %v3274 = vsub.s32 %v3271, %v3273
      %v3275 = vrot.slane %v3071, %v3274
      %v3276 = vcombine.high %v3275, %v3275
      %v3278 = vunpack.c.l.s4 1966171168
      %v3279 = vunpack.c.0.s8 %v3278
      %v3280 = vlaneseq
      %v3281 = vshrl.u32 %v3280, 7
      %v3282 = vsub.s32 %v3279, %v3281
      %v3283 = vrot.slane %v3275, %v3282
      %v3285 = vunpack.c.l.s4 1966171168
      %v3286 = vunpack.c.0.s8 %v3285
      %v3287 = vlaneseq
      %v3288 = vshrl.u32 %v3287, 7
      %v3289 = vsub.s32 %v3286, %v3288
      %v3290 = vrot.slane %v3276, %v3289
      %v3292 = vunpack.c.l.s4 1966171168
      %v3293 = vunpack.c.0.s8 %v3292
      %v3294 = vlaneseq
      %v3295 = vshrl.u32 %v3294, 7
      %v3296 = vsub.s32 %v3293, %v3295
      %v3297 = vrot.slane %v3072, %v3296
      %v3298 = vcombine.high %v3297, %v3297
      %v3300 = vunpack.c.l.s4 1966171168
      %v3301 = vunpack.c.0.s8 %v3300
      %v3302 = vlaneseq
      %v3303 = vshrl.u32 %v3302, 7
      %v3304 = vsub.s32 %v3301, %v3303
      %v3305 = vrot.slane %v3297, %v3304
      %v3307 = vunpack.c.l.s4 1966171168
      %v3308 = vunpack.c.0.s8 %v3307
      %v3309 = vlaneseq
      %v3310 = vshrl.u32 %v3309, 7
      %v3311 = vsub.s32 %v3308, %v3310
      %v3312 = vrot.slane %v3298, %v3311
      %v3313 = vcombine.high %v3305, %v3305
      %v3314 = vcombine.high %v3312, %v3312
      %v3316 = vunpack.c.l.s4 1966171168
      %v3317 = vunpack.c.0.s8 %v3316
      %v3318 = vlaneseq
      %v3319 = vshrl.u32 %v3318, 7
      %v3320 = vsub.s32 %v3317, %v3319
      %v3321 = vrot.slane %v3073, %v3320
      %v3322 = vcombine.high %v3321, %v3321
      %v3324 = vunpack.c.l.s4 1966171168
      %v3325 = vunpack.c.0.s8 %v3324
      %v3326 = vlaneseq
      %v3327 = vshrl.u32 %v3326, 7
      %v3328 = vsub.s32 %v3325, %v3327
      %v3329 = vrot.slane %v3321, %v3328
      %v3331 = vunpack.c.l.s4 1966171168
      %v3332 = vunpack.c.0.s8 %v3331
      %v3333 = vlaneseq
      %v3334 = vshrl.u32 %v3333, 7
      %v3335 = vsub.s32 %v3332, %v3334
      %v3336 = vrot.slane %v3322, %v3335
      %v3338 = vunpack.c.l.s4 1966171168
      %v3339 = vunpack.c.0.s8 %v3338
      %v3340 = vlaneseq
      %v3341 = vshrl.u32 %v3340, 7
      %v3342 = vsub.s32 %v3339, %v3341
      %v3343 = vrot.slane %v3074, %v3342
      %v3344 = vcombine.high %v3343, %v3343
      %v3346 = vunpack.c.l.s4 1966171168
      %v3347 = vunpack.c.0.s8 %v3346
      %v3348 = vlaneseq
      %v3349 = vshrl.u32 %v3348, 7
      %v3350 = vsub.s32 %v3347, %v3349
      %v3351 = vrot.slane %v3343, %v3350
      %v3353 = vunpack.c.l.s4 1966171168
      %v3354 = vunpack.c.0.s8 %v3353
      %v3355 = vlaneseq
      %v3356 = vshrl.u32 %v3355, 7
      %v3357 = vsub.s32 %v3354, %v3356
      %v3358 = vrot.slane %v3344, %v3357
      %v3359 = vcombine.high %v3351, %v3351
      %v3360 = vcombine.high %v3358, %v3358
      %v3362 = vunpack.c.l.s4 1966171168
      %v3363 = vunpack.c.0.s8 %v3362
      %v3364 = vlaneseq
      %v3365 = vshrl.u32 %v3364, 7
      %v3366 = vsub.s32 %v3363, %v3365
      %v3367 = vrot.slane %v3075, %v3366
      %v3368 = vcombine.high %v3367, %v3367
      %v3370 = vunpack.c.l.s4 1966171168
      %v3371 = vunpack.c.0.s8 %v3370
      %v3372 = vlaneseq
      %v3373 = vshrl.u32 %v3372, 7
      %v3374 = vsub.s32 %v3371, %v3373
      %v3375 = vrot.slane %v3367, %v3374
      %v3377 = vunpack.c.l.s4 1966171168
      %v3378 = vunpack.c.0.s8 %v3377
      %v3379 = vlaneseq
      %v3380 = vshrl.u32 %v3379, 7
      %v3381 = vsub.s32 %v3378, %v3380
      %v3382 = vrot.slane %v3368, %v3381
      %v3384 = vunpack.c.l.s4 1966171168
      %v3385 = vunpack.c.0.s8 %v3384
      %v3386 = vlaneseq
      %v3387 = vshrl.u32 %v3386, 7
      %v3388 = vsub.s32 %v3385, %v3387
      %v3389 = vrot.slane %v3076, %v3388
      %v3390 = vcombine.high %v3389, %v3389
      %v3392 = vunpack.c.l.s4 1966171168
      %v3393 = vunpack.c.0.s8 %v3392
      %v3394 = vlaneseq
      %v3395 = vshrl.u32 %v3394, 7
      %v3396 = vsub.s32 %v3393, %v3395
      %v3397 = vrot.slane %v3389, %v3396
      %v3399 = vunpack.c.l.s4 1966171168
      %v3400 = vunpack.c.0.s8 %v3399
      %v3401 = vlaneseq
      %v3402 = vshrl.u32 %v3401, 7
      %v3403 = vsub.s32 %v3400, %v3402
      %v3404 = vrot.slane %v3390, %v3403
      %v3405 = vcombine.high %v3397, %v3397
      %v3406 = vcombine.high %v3404, %v3404
      %v3408 = vunpack.c.l.s4 1966171168
      %v3409 = vunpack.c.0.s8 %v3408
      %v3410 = vlaneseq
      %v3411 = vshrl.u32 %v3410, 7
      %v3412 = vsub.s32 %v3409, %v3411
      %v3413 = vrot.slane %v3077, %v3412
      %v3414 = vcombine.high %v3413, %v3413
      %v3416 = vunpack.c.l.s4 1966171168
      %v3417 = vunpack.c.0.s8 %v3416
      %v3418 = vlaneseq
      %v3419 = vshrl.u32 %v3418, 7
      %v3420 = vsub.s32 %v3417, %v3419
      %v3421 = vrot.slane %v3413, %v3420
      %v3423 = vunpack.c.l.s4 1966171168
      %v3424 = vunpack.c.0.s8 %v3423
      %v3425 = vlaneseq
      %v3426 = vshrl.u32 %v3425, 7
      %v3427 = vsub.s32 %v3424, %v3426
      %v3428 = vrot.slane %v3414, %v3427
      %v3430 = vunpack.c.l.s4 1966171168
      %v3431 = vunpack.c.0.s8 %v3430
      %v3432 = vlaneseq
      %v3433 = vshrl.u32 %v3432, 7
      %v3434 = vsub.s32 %v3431, %v3433
      %v3435 = vrot.slane %v3078, %v3434
      %v3436 = vcombine.high %v3435, %v3435
      %v3438 = vunpack.c.l.s4 1966171168
      %v3439 = vunpack.c.0.s8 %v3438
      %v3440 = vlaneseq
      %v3441 = vshrl.u32 %v3440, 7
      %v3442 = vsub.s32 %v3439, %v3441
      %v3443 = vrot.slane %v3435, %v3442
      %v3445 = vunpack.c.l.s4 1966171168
      %v3446 = vunpack.c.0.s8 %v3445
      %v3447 = vlaneseq
      %v3448 = vshrl.u32 %v3447, 7
      %v3449 = vsub.s32 %v3446, %v3448
      %v3450 = vrot.slane %v3436, %v3449
      %v3451 = vcombine.high %v3443, %v3443
      %v3452 = vcombine.high %v3450, %v3450
      %v3454 = vunpack.c.l.s4 1966171168
      %v3455 = vunpack.c.0.s8 %v3454
      %v3456 = vlaneseq
      %v3457 = vshrl.u32 %v3456, 7
      %v3458 = vsub.s32 %v3455, %v3457
      %v3459 = vrot.slane %v3079, %v3458
      %v3460 = vcombine.high %v3459, %v3459
      %v3462 = vunpack.c.l.s4 1966171168
      %v3463 = vunpack.c.0.s8 %v3462
      %v3464 = vlaneseq
      %v3465 = vshrl.u32 %v3464, 7
      %v3466 = vsub.s32 %v3463, %v3465
      %v3467 = vrot.slane %v3459, %v3466
      %v3469 = vunpack.c.l.s4 1966171168
      %v3470 = vunpack.c.0.s8 %v3469
      %v3471 = vlaneseq
      %v3472 = vshrl.u32 %v3471, 7
      %v3473 = vsub.s32 %v3470, %v3472
      %v3474 = vrot.slane %v3460, %v3473
      %v3476 = vunpack.c.l.s4 1966171168
      %v3477 = vunpack.c.0.s8 %v3476
      %v3478 = vlaneseq
      %v3479 = vshrl.u32 %v3478, 7
      %v3480 = vsub.s32 %v3477, %v3479
      %v3481 = vrot.slane %v3080, %v3480
      %v3482 = vcombine.high %v3481, %v3481
      %v3484 = vunpack.c.l.s4 1966171168
      %v3485 = vunpack.c.0.s8 %v3484
      %v3486 = vlaneseq
      %v3487 = vshrl.u32 %v3486, 7
      %v3488 = vsub.s32 %v3485, %v3487
      %v3489 = vrot.slane %v3481, %v3488
      %v3491 = vunpack.c.l.s4 1966171168
      %v3492 = vunpack.c.0.s8 %v3491
      %v3493 = vlaneseq
      %v3494 = vshrl.u32 %v3493, 7
      %v3495 = vsub.s32 %v3492, %v3494
      %v3496 = vrot.slane %v3482, %v3495
      %v3497 = vcombine.high %v3489, %v3489
      %v3498 = vcombine.high %v3496, %v3496
      %v3500 = vunpack.c.l.s4 1966171168
      %v3501 = vunpack.c.0.s8 %v3500
      %v3502 = vlaneseq
      %v3503 = vshrl.u32 %v3502, 7
      %v3504 = vsub.s32 %v3501, %v3503
      %v3505 = vrot.slane %v3081, %v3504
      %v3506 = vcombine.high %v3505, %v3505
      %v3508 = vunpack.c.l.s4 1966171168
      %v3509 = vunpack.c.0.s8 %v3508
      %v3510 = vlaneseq
      %v3511 = vshrl.u32 %v3510, 7
      %v3512 = vsub.s32 %v3509, %v3511
      %v3513 = vrot.slane %v3505, %v3512
      %v3515 = vunpack.c.l.s4 1966171168
      %v3516 = vunpack.c.0.s8 %v3515
      %v3517 = vlaneseq
      %v3518 = vshrl.u32 %v3517, 7
      %v3519 = vsub.s32 %v3516, %v3518
      %v3520 = vrot.slane %v3506, %v3519
      %v3522 = vunpack.c.l.s4 1966171168
      %v3523 = vunpack.c.0.s8 %v3522
      %v3524 = vlaneseq
      %v3525 = vshrl.u32 %v3524, 7
      %v3526 = vsub.s32 %v3523, %v3525
      %v3527 = vrot.slane %v3082, %v3526
      %v3528 = vcombine.high %v3527, %v3527
      %v3530 = vunpack.c.l.s4 1966171168
      %v3531 = vunpack.c.0.s8 %v3530
      %v3532 = vlaneseq
      %v3533 = vshrl.u32 %v3532, 7
      %v3534 = vsub.s32 %v3531, %v3533
      %v3535 = vrot.slane %v3527, %v3534
      %v3537 = vunpack.c.l.s4 1966171168
      %v3538 = vunpack.c.0.s8 %v3537
      %v3539 = vlaneseq
      %v3540 = vshrl.u32 %v3539, 7
      %v3541 = vsub.s32 %v3538, %v3540
      %v3542 = vrot.slane %v3528, %v3541
      %v3543 = vcombine.high %v3535, %v3535
      %v3544 = vcombine.high %v3542, %v3542
      %v3546 = vunpack.c.l.s4 1966171168
      %v3547 = vunpack.c.0.s8 %v3546
      %v3548 = vlaneseq
      %v3549 = vshrl.u32 %v3548, 7
      %v3550 = vsub.s32 %v3547, %v3549
      %v3551 = vrot.slane %v3083, %v3550
      %v3552 = vcombine.high %v3551, %v3551
      %v3554 = vunpack.c.l.s4 1966171168
      %v3555 = vunpack.c.0.s8 %v3554
      %v3556 = vlaneseq
      %v3557 = vshrl.u32 %v3556, 7
      %v3558 = vsub.s32 %v3555, %v3557
      %v3559 = vrot.slane %v3551, %v3558
      %v3561 = vunpack.c.l.s4 1966171168
      %v3562 = vunpack.c.0.s8 %v3561
      %v3563 = vlaneseq
      %v3564 = vshrl.u32 %v3563, 7
      %v3565 = vsub.s32 %v3562, %v3564
      %v3566 = vrot.slane %v3552, %v3565
      %v3568 = vshrl.u32 %v3121, 16
      %v3570 = vrot.slane %v3568, 7
      %v3571 = vrot.slane %v3570, 1
      %v3573 = vshll.u32 %v3128, 16
      %v3575 = vsel %vm943, %v3571, %v3573
      %v3576 = vshrl.u32 %v3128, 16
      %v3578 = vrot.slane %v3576, 7
      %v3579 = vrot.slane %v3578, 1
      %v3581 = vshll.u32 %v3129, 16
      %v3583 = vsel %vm943, %v3579, %v3581
      %v3584 = vshrl.u32 %v3129, 16
      %v3586 = vrot.slane %v3584, 7
      %v3587 = vrot.slane %v3586, 1
      %v3589 = vshll.u32 %v3130, 16
      %v3591 = vsel %vm943, %v3587, %v3589
      %v3592 = vshrl.u32 %v3130, 16
      %v3594 = vrot.slane %v3592, 7
      %v3595 = vrot.slane %v3594, 1
      %v3597 = vshll.u32 %v3145, 16
      %v3599 = vsel %vm943, %v3595, %v3597
      %v3600 = vshrl.u32 %v3145, 16
      %v3602 = vrot.slane %v3600, 7
      %v3603 = vrot.slane %v3602, 1
      %v3605 = vshll.u32 %v3152, 16
      %v3607 = vsel %vm943, %v3603, %v3605
      %v3609 = vshrl.u32 %v3167, 16
      %v3611 = vrot.slane %v3609, 7
      %v3612 = vrot.slane %v3611, 1
      %v3614 = vshll.u32 %v3174, 16
      %v3616 = vsel %vm943, %v3612, %v3614
      %v3617 = vshrl.u32 %v3174, 16
      %v3619 = vrot.slane %v3617, 7
      %v3620 = vrot.slane %v3619, 1
      %v3622 = vshll.u32 %v3175, 16
      %v3624 = vsel %vm943, %v3620, %v3622
      %v3625 = vshrl.u32 %v3175, 16
      %v3627 = vrot.slane %v3625, 7
      %v3628 = vrot.slane %v3627, 1
      %v3630 = vshll.u32 %v3176, 16
      %v3632 = vsel %vm943, %v3628, %v3630
      %v3633 = vshrl.u32 %v3176, 16
      %v3635 = vrot.slane %v3633, 7
      %v3636 = vrot.slane %v3635, 1
      %v3638 = vshll.u32 %v3191, 16
      %v3640 = vsel %vm943, %v3636, %v3638
      %v3641 = vshrl.u32 %v3191, 16
      %v3643 = vrot.slane %v3641, 7
      %v3644 = vrot.slane %v3643, 1
      %v3646 = vshll.u32 %v3198, 16
      %v3648 = vsel %vm943, %v3644, %v3646
      %v3650 = vshrl.u32 %v3213, 16
      %v3652 = vrot.slane %v3650, 7
      %v3653 = vrot.slane %v3652, 1
      %v3655 = vshll.u32 %v3220, 16
      %v3657 = vsel %vm943, %v3653, %v3655
      %v3658 = vshrl.u32 %v3220, 16
      %v3660 = vrot.slane %v3658, 7
      %v3661 = vrot.slane %v3660, 1
      %v3663 = vshll.u32 %v3221, 16
      %v3665 = vsel %vm943, %v3661, %v3663
      %v3666 = vshrl.u32 %v3221, 16
      %v3668 = vrot.slane %v3666, 7
      %v3669 = vrot.slane %v3668, 1
      %v3671 = vshll.u32 %v3222, 16
      %v3673 = vsel %vm943, %v3669, %v3671
      %v3674 = vshrl.u32 %v3222, 16
      %v3676 = vrot.slane %v3674, 7
      %v3677 = vrot.slane %v3676, 1
      %v3679 = vshll.u32 %v3237, 16
      %v3681 = vsel %vm943, %v3677, %v3679
      %v3682 = vshrl.u32 %v3237, 16
      %v3684 = vrot.slane %v3682, 7
      %v3685 = vrot.slane %v3684, 1
      %v3687 = vshll.u32 %v3244, 16
      %v3689 = vsel %vm943, %v3685, %v3687
      %v3691 = vshrl.u32 %v3259, 16
      %v3693 = vrot.slane %v3691, 7
      %v3694 = vrot.slane %v3693, 1
      %v3696 = vshll.u32 %v3266, 16
      %v3698 = vsel %vm943, %v3694, %v3696
      %v3699 = vshrl.u32 %v3266, 16
      %v3701 = vrot.slane %v3699, 7
      %v3702 = vrot.slane %v3701, 1
      %v3704 = vshll.u32 %v3267, 16
      %v3706 = vsel %vm943, %v3702, %v3704
      %v3707 = vshrl.u32 %v3267, 16
      %v3709 = vrot.slane %v3707, 7
      %v3710 = vrot.slane %v3709, 1
      %v3712 = vshll.u32 %v3268, 16
      %v3714 = vsel %vm943, %v3710, %v3712
      %v3715 = vshrl.u32 %v3268, 16
      %v3717 = vrot.slane %v3715, 7
      %v3718 = vrot.slane %v3717, 1
      %v3720 = vshll.u32 %v3283, 16
      %v3722 = vsel %vm943, %v3718, %v3720
      %v3723 = vshrl.u32 %v3283, 16
      %v3725 = vrot.slane %v3723, 7
      %v3726 = vrot.slane %v3725, 1
      %v3728 = vshll.u32 %v3290, 16
      %v3730 = vsel %vm943, %v3726, %v3728
      %v3732 = vshrl.u32 %v3305, 16
      %v3734 = vrot.slane %v3732, 7
      %v3735 = vrot.slane %v3734, 1
      %v3737 = vshll.u32 %v3312, 16
      %v3739 = vsel %vm943, %v3735, %v3737
      %v3740 = vshrl.u32 %v3312, 16
      %v3742 = vrot.slane %v3740, 7
      %v3743 = vrot.slane %v3742, 1
      %v3745 = vshll.u32 %v3313, 16
      %v3747 = vsel %vm943, %v3743, %v3745
      %v3748 = vshrl.u32 %v3313, 16
      %v3750 = vrot.slane %v3748, 7
      %v3751 = vrot.slane %v3750, 1
      %v3753 = vshll.u32 %v3314, 16
      %v3755 = vsel %vm943, %v3751, %v3753
      %v3756 = vshrl.u32 %v3314, 16
      %v3758 = vrot.slane %v3756, 7
      %v3759 = vrot.slane %v3758, 1
      %v3761 = vshll.u32 %v3329, 16
      %v3763 = vsel %vm943, %v3759, %v3761
      %v3764 = vshrl.u32 %v3329, 16
      %v3766 = vrot.slane %v3764, 7
      %v3767 = vrot.slane %v3766, 1
      %v3769 = vshll.u32 %v3336, 16
      %v3771 = vsel %vm943, %v3767, %v3769
      %v3773 = vshrl.u32 %v3351, 16
      %v3775 = vrot.slane %v3773, 7
      %v3776 = vrot.slane %v3775, 1
      %v3778 = vshll.u32 %v3358, 16
      %v3780 = vsel %vm943, %v3776, %v3778
      %v3781 = vshrl.u32 %v3358, 16
      %v3783 = vrot.slane %v3781, 7
      %v3784 = vrot.slane %v3783, 1
      %v3786 = vshll.u32 %v3359, 16
      %v3788 = vsel %vm943, %v3784, %v3786
      %v3789 = vshrl.u32 %v3359, 16
      %v3791 = vrot.slane %v3789, 7
      %v3792 = vrot.slane %v3791, 1
      %v3794 = vshll.u32 %v3360, 16
      %v3796 = vsel %vm943, %v3792, %v3794
      %v3797 = vshrl.u32 %v3360, 16
      %v3799 = vrot.slane %v3797, 7
      %v3800 = vrot.slane %v3799, 1
      %v3802 = vshll.u32 %v3375, 16
      %v3804 = vsel %vm943, %v3800, %v3802
      %v3805 = vshrl.u32 %v3375, 16
      %v3807 = vrot.slane %v3805, 7
      %v3808 = vrot.slane %v3807, 1
      %v3810 = vshll.u32 %v3382, 16
      %v3812 = vsel %vm943, %v3808, %v3810
      %v3814 = vshrl.u32 %v3397, 16
      %v3816 = vrot.slane %v3814, 7
      %v3817 = vrot.slane %v3816, 1
      %v3819 = vshll.u32 %v3404, 16
      %v3821 = vsel %vm943, %v3817, %v3819
      %v3822 = vshrl.u32 %v3404, 16
      %v3824 = vrot.slane %v3822, 7
      %v3825 = vrot.slane %v3824, 1
      %v3827 = vshll.u32 %v3405, 16
      %v3829 = vsel %vm943, %v3825, %v3827
      %v3830 = vshrl.u32 %v3405, 16
      %v3832 = vrot.slane %v3830, 7
      %v3833 = vrot.slane %v3832, 1
      %v3835 = vshll.u32 %v3406, 16
      %v3837 = vsel %vm943, %v3833, %v3835
      %v3838 = vshrl.u32 %v3406, 16
      %v3840 = vrot.slane %v3838, 7
      %v3841 = vrot.slane %v3840, 1
      %v3843 = vshll.u32 %v3421, 16
      %v3845 = vsel %vm943, %v3841, %v3843
      %v3846 = vshrl.u32 %v3421, 16
      %v3848 = vrot.slane %v3846, 7
      %v3849 = vrot.slane %v3848, 1
      %v3851 = vshll.u32 %v3428, 16
      %v3853 = vsel %vm943, %v3849, %v3851
      %v3855 = vshrl.u32 %v3443, 16
      %v3857 = vrot.slane %v3855, 7
      %v3858 = vrot.slane %v3857, 1
      %v3860 = vshll.u32 %v3450, 16
      %v3862 = vsel %vm943, %v3858, %v3860
      %v3863 = vshrl.u32 %v3450, 16
      %v3865 = vrot.slane %v3863, 7
      %v3866 = vrot.slane %v3865, 1
      %v3868 = vshll.u32 %v3451, 16
      %v3870 = vsel %vm943, %v3866, %v3868
      %v3871 = vshrl.u32 %v3451, 16
      %v3873 = vrot.slane %v3871, 7
      %v3874 = vrot.slane %v3873, 1
      %v3876 = vshll.u32 %v3452, 16
      %v3878 = vsel %vm943, %v3874, %v3876
      %v3879 = vshrl.u32 %v3452, 16
      %v3881 = vrot.slane %v3879, 7
      %v3882 = vrot.slane %v3881, 1
      %v3884 = vshll.u32 %v3467, 16
      %v3886 = vsel %vm943, %v3882, %v3884
      %v3887 = vshrl.u32 %v3467, 16
      %v3889 = vrot.slane %v3887, 7
      %v3890 = vrot.slane %v3889, 1
      %v3892 = vshll.u32 %v3474, 16
      %v3894 = vsel %vm943, %v3890, %v3892
      %v3896 = vshrl.u32 %v3489, 16
      %v3898 = vrot.slane %v3896, 7
      %v3899 = vrot.slane %v3898, 1
      %v3901 = vshll.u32 %v3496, 16
      %v3903 = vsel %vm943, %v3899, %v3901
      %v3904 = vshrl.u32 %v3496, 16
      %v3906 = vrot.slane %v3904, 7
      %v3907 = vrot.slane %v3906, 1
      %v3909 = vshll.u32 %v3497, 16
      %v3911 = vsel %vm943, %v3907, %v3909
      %v3912 = vshrl.u32 %v3497, 16
      %v3914 = vrot.slane %v3912, 7
      %v3915 = vrot.slane %v3914, 1
      %v3917 = vshll.u32 %v3498, 16
      %v3919 = vsel %vm943, %v3915, %v3917
      %v3920 = vshrl.u32 %v3498, 16
      %v3922 = vrot.slane %v3920, 7
      %v3923 = vrot.slane %v3922, 1
      %v3925 = vshll.u32 %v3513, 16
      %v3927 = vsel %vm943, %v3923, %v3925
      %v3928 = vshrl.u32 %v3513, 16
      %v3930 = vrot.slane %v3928, 7
      %v3931 = vrot.slane %v3930, 1
      %v3933 = vshll.u32 %v3520, 16
      %v3935 = vsel %vm943, %v3931, %v3933
      %v3937 = vshrl.u32 %v3535, 16
      %v3939 = vrot.slane %v3937, 7
      %v3940 = vrot.slane %v3939, 1
      %v3942 = vshll.u32 %v3542, 16
      %v3944 = vsel %vm943, %v3940, %v3942
      %v3945 = vshrl.u32 %v3542, 16
      %v3947 = vrot.slane %v3945, 7
      %v3948 = vrot.slane %v3947, 1
      %v3950 = vshll.u32 %v3543, 16
      %v3952 = vsel %vm943, %v3948, %v3950
      %v3953 = vshrl.u32 %v3543, 16
      %v3955 = vrot.slane %v3953, 7
      %v3956 = vrot.slane %v3955, 1
      %v3958 = vshll.u32 %v3544, 16
      %v3960 = vsel %vm943, %v3956, %v3958
      %v3961 = vshrl.u32 %v3544, 16
      %v3963 = vrot.slane %v3961, 7
      %v3964 = vrot.slane %v3963, 1
      %v3966 = vshll.u32 %v3559, 16
      %v3968 = vsel %vm943, %v3964, %v3966
      %v3969 = vshrl.u32 %v3559, 16
      %v3971 = vrot.slane %v3969, 7
      %v3972 = vrot.slane %v3971, 1
      %v3974 = vshll.u32 %v3566, 16
      %v3976 = vsel %vm943, %v3972, %v3974
      %v3977 = vcombine.low %v3575, %v3583
      %v3978 = vcombine.low %v3591, %v3599
      %v3979 = vcombine.low %v3607, %v3616
      %v3980 = vcombine.low %v3624, %v3632
      %v3982 = vunpack.c.l.s4 1966171168
      %v3983 = vunpack.c.0.s8 %v3982
      %v3984 = vlaneseq
      %v3985 = vshrl.u32 %v3984, 7
      %v3986 = vsub.s32 %v3983, %v3985
      %v3987 = vrot.slane %v3977, %v3986
      %v3989 = vunpack.c.l.s4 1966171168
      %v3990 = vunpack.c.0.s8 %v3989
      %v3991 = vlaneseq
      %v3992 = vshrl.u32 %v3991, 7
      %v3993 = vsub.s32 %v3990, %v3992
      %v3994 = vrot.slane %v3978, %v3993
      %v3996 = vunpack.c.l.s4 1966171168
      %v3997 = vunpack.c.0.s8 %v3996
      %v3998 = vlaneseq
      %v3999 = vshrl.u32 %v3998, 7
      %v4000 = vsub.s32 %v3997, %v3999
      %v4001 = vrot.slane %v3979, %v4000
      %v4003 = vunpack.c.l.s4 1966171168
      %v4004 = vunpack.c.0.s8 %v4003
      %v4005 = vlaneseq
      %v4006 = vshrl.u32 %v4005, 7
      %v4007 = vsub.s32 %v4004, %v4006
      %v4008 = vrot.slane %v3980, %v4007
      %v4009 = vcombine.low %v3987, %v3994
      %v4010 = vcombine.low %v4001, %v4008
      %v4012 = vunpack.c.l.s4 1966171168
      %v4013 = vunpack.c.0.s8 %v4012
      %v4014 = vlaneseq
      %v4015 = vshrl.u32 %v4014, 7
      %v4016 = vsub.s32 %v4013, %v4015
      %v4017 = vrot.slane %v4009, %v4016
      %v4019 = vunpack.c.l.s4 1966171168
      %v4020 = vunpack.c.0.s8 %v4019
      %v4021 = vlaneseq
      %v4022 = vshrl.u32 %v4021, 7
      %v4023 = vsub.s32 %v4020, %v4022
      %v4024 = vrot.slane %v4010, %v4023
      %v4025 = vcombine.low %v4017, %v4024
      %v4026 = vcombine.low %v3640, %v3648
      %v4027 = vcombine.low %v3657, %v3665
      %v4028 = vcombine.low %v3673, %v3681
      %v4029 = vcombine.low %v3689, %v3698
      %v4031 = vunpack.c.l.s4 1966171168
      %v4032 = vunpack.c.0.s8 %v4031
      %v4033 = vlaneseq
      %v4034 = vshrl.u32 %v4033, 7
      %v4035 = vsub.s32 %v4032, %v4034
      %v4036 = vrot.slane %v4026, %v4035
      %v4038 = vunpack.c.l.s4 1966171168
      %v4039 = vunpack.c.0.s8 %v4038
      %v4040 = vlaneseq
      %v4041 = vshrl.u32 %v4040, 7
      %v4042 = vsub.s32 %v4039, %v4041
      %v4043 = vrot.slane %v4027, %v4042
      %v4045 = vunpack.c.l.s4 1966171168
      %v4046 = vunpack.c.0.s8 %v4045
      %v4047 = vlaneseq
      %v4048 = vshrl.u32 %v4047, 7
      %v4049 = vsub.s32 %v4046, %v4048
      %v4050 = vrot.slane %v4028, %v4049
      %v4052 = vunpack.c.l.s4 1966171168
      %v4053 = vunpack.c.0.s8 %v4052
      %v4054 = vlaneseq
      %v4055 = vshrl.u32 %v4054, 7
      %v4056 = vsub.s32 %v4053, %v4055
      %v4057 = vrot.slane %v4029, %v4056
      %v4058 = vcombine.low %v4036, %v4043
      %v4059 = vcombine.low %v4050, %v4057
      %v4061 = vunpack.c.l.s4 1966171168
      %v4062 = vunpack.c.0.s8 %v4061
      %v4063 = vlaneseq
      %v4064 = vshrl.u32 %v4063, 7
      %v4065 = vsub.s32 %v4062, %v4064
      %v4066 = vrot.slane %v4058, %v4065
      %v4068 = vunpack.c.l.s4 1966171168
      %v4069 = vunpack.c.0.s8 %v4068
      %v4070 = vlaneseq
      %v4071 = vshrl.u32 %v4070, 7
      %v4072 = vsub.s32 %v4069, %v4071
      %v4073 = vrot.slane %v4059, %v4072
      %v4074 = vcombine.low %v4066, %v4073
      %v4075 = vcombine.low %v3706, %v3714
      %v4076 = vcombine.low %v3722, %v3730
      %v4077 = vcombine.low %v3739, %v3747
      %v4078 = vcombine.low %v3755, %v3763
      %v4080 = vunpack.c.l.s4 1966171168
      %v4081 = vunpack.c.0.s8 %v4080
      %v4082 = vlaneseq
      %v4083 = vshrl.u32 %v4082, 7
      %v4084 = vsub.s32 %v4081, %v4083
      %v4085 = vrot.slane %v4075, %v4084
      %v4087 = vunpack.c.l.s4 1966171168
      %v4088 = vunpack.c.0.s8 %v4087
      %v4089 = vlaneseq
      %v4090 = vshrl.u32 %v4089, 7
      %v4091 = vsub.s32 %v4088, %v4090
      %v4092 = vrot.slane %v4076, %v4091
      %v4094 = vunpack.c.l.s4 1966171168
      %v4095 = vunpack.c.0.s8 %v4094
      %v4096 = vlaneseq
      %v4097 = vshrl.u32 %v4096, 7
      %v4098 = vsub.s32 %v4095, %v4097
      %v4099 = vrot.slane %v4077, %v4098
      %v4101 = vunpack.c.l.s4 1966171168
      %v4102 = vunpack.c.0.s8 %v4101
      %v4103 = vlaneseq
      %v4104 = vshrl.u32 %v4103, 7
      %v4105 = vsub.s32 %v4102, %v4104
      %v4106 = vrot.slane %v4078, %v4105
      %v4107 = vcombine.low %v4085, %v4092
      %v4108 = vcombine.low %v4099, %v4106
      %v4110 = vunpack.c.l.s4 1966171168
      %v4111 = vunpack.c.0.s8 %v4110
      %v4112 = vlaneseq
      %v4113 = vshrl.u32 %v4112, 7
      %v4114 = vsub.s32 %v4111, %v4113
      %v4115 = vrot.slane %v4107, %v4114
      %v4117 = vunpack.c.l.s4 1966171168
      %v4118 = vunpack.c.0.s8 %v4117
      %v4119 = vlaneseq
      %v4120 = vshrl.u32 %v4119, 7
      %v4121 = vsub.s32 %v4118, %v4120
      %v4122 = vrot.slane %v4108, %v4121
      %v4123 = vcombine.low %v4115, %v4122
      %v4124 = vcombine.low %v3771, %v3780
      %v4125 = vcombine.low %v3788, %v3796
      %v4126 = vcombine.low %v3804, %v3812
      %v4127 = vcombine.low %v3821, %v3829
      %v4129 = vunpack.c.l.s4 1966171168
      %v4130 = vunpack.c.0.s8 %v4129
      %v4131 = vlaneseq
      %v4132 = vshrl.u32 %v4131, 7
      %v4133 = vsub.s32 %v4130, %v4132
      %v4134 = vrot.slane %v4124, %v4133
      %v4136 = vunpack.c.l.s4 1966171168
      %v4137 = vunpack.c.0.s8 %v4136
      %v4138 = vlaneseq
      %v4139 = vshrl.u32 %v4138, 7
      %v4140 = vsub.s32 %v4137, %v4139
      %v4141 = vrot.slane %v4125, %v4140
      %v4143 = vunpack.c.l.s4 1966171168
      %v4144 = vunpack.c.0.s8 %v4143
      %v4145 = vlaneseq
      %v4146 = vshrl.u32 %v4145, 7
      %v4147 = vsub.s32 %v4144, %v4146
      %v4148 = vrot.slane %v4126, %v4147
      %v4150 = vunpack.c.l.s4 1966171168
      %v4151 = vunpack.c.0.s8 %v4150
      %v4152 = vlaneseq
      %v4153 = vshrl.u32 %v4152, 7
      %v4154 = vsub.s32 %v4151, %v4153
      %v4155 = vrot.slane %v4127, %v4154
      %v4156 = vcombine.low %v4134, %v4141
      %v4157 = vcombine.low %v4148, %v4155
      %v4159 = vunpack.c.l.s4 1966171168
      %v4160 = vunpack.c.0.s8 %v4159
      %v4161 = vlaneseq
      %v4162 = vshrl.u32 %v4161, 7
      %v4163 = vsub.s32 %v4160, %v4162
      %v4164 = vrot.slane %v4156, %v4163
      %v4166 = vunpack.c.l.s4 1966171168
      %v4167 = vunpack.c.0.s8 %v4166
      %v4168 = vlaneseq
      %v4169 = vshrl.u32 %v4168, 7
      %v4170 = vsub.s32 %v4167, %v4169
      %v4171 = vrot.slane %v4157, %v4170
      %v4172 = vcombine.low %v4164, %v4171
      %v4173 = vcombine.low %v3837, %v3845
      %v4174 = vcombine.low %v3853, %v3862
      %v4175 = vcombine.low %v3870, %v3878
      %v4176 = vcombine.low %v3886, %v3894
      %v4178 = vunpack.c.l.s4 1966171168
      %v4179 = vunpack.c.0.s8 %v4178
      %v4180 = vlaneseq
      %v4181 = vshrl.u32 %v4180, 7
      %v4182 = vsub.s32 %v4179, %v4181
      %v4183 = vrot.slane %v4173, %v4182
      %v4185 = vunpack.c.l.s4 1966171168
      %v4186 = vunpack.c.0.s8 %v4185
      %v4187 = vlaneseq
      %v4188 = vshrl.u32 %v4187, 7
      %v4189 = vsub.s32 %v4186, %v4188
      %v4190 = vrot.slane %v4174, %v4189
      %v4192 = vunpack.c.l.s4 1966171168
      %v4193 = vunpack.c.0.s8 %v4192
      %v4194 = vlaneseq
      %v4195 = vshrl.u32 %v4194, 7
      %v4196 = vsub.s32 %v4193, %v4195
      %v4197 = vrot.slane %v4175, %v4196
      %v4199 = vunpack.c.l.s4 1966171168
      %v4200 = vunpack.c.0.s8 %v4199
      %v4201 = vlaneseq
      %v4202 = vshrl.u32 %v4201, 7
      %v4203 = vsub.s32 %v4200, %v4202
      %v4204 = vrot.slane %v4176, %v4203
      %v4205 = vcombine.low %v4183, %v4190
      %v4206 = vcombine.low %v4197, %v4204
      %v4208 = vunpack.c.l.s4 1966171168
      %v4209 = vunpack.c.0.s8 %v4208
      %v4210 = vlaneseq
      %v4211 = vshrl.u32 %v4210, 7
      %v4212 = vsub.s32 %v4209, %v4211
      %v4213 = vrot.slane %v4205, %v4212
      %v4215 = vunpack.c.l.s4 1966171168
      %v4216 = vunpack.c.0.s8 %v4215
      %v4217 = vlaneseq
      %v4218 = vshrl.u32 %v4217, 7
      %v4219 = vsub.s32 %v4216, %v4218
      %v4220 = vrot.slane %v4206, %v4219
      %v4221 = vcombine.low %v4213, %v4220
      %v4222 = vcombine.low %v3903, %v3911
      %v4223 = vcombine.low %v3919, %v3927
      %v4224 = vcombine.low %v3935, %v3944
      %v4225 = vcombine.low %v3952, %v3960
      %v4227 = vunpack.c.l.s4 1966171168
      %v4228 = vunpack.c.0.s8 %v4227
      %v4229 = vlaneseq
      %v4230 = vshrl.u32 %v4229, 7
      %v4231 = vsub.s32 %v4228, %v4230
      %v4232 = vrot.slane %v4222, %v4231
      %v4234 = vunpack.c.l.s4 1966171168
      %v4235 = vunpack.c.0.s8 %v4234
      %v4236 = vlaneseq
      %v4237 = vshrl.u32 %v4236, 7
      %v4238 = vsub.s32 %v4235, %v4237
      %v4239 = vrot.slane %v4223, %v4238
      %v4241 = vunpack.c.l.s4 1966171168
      %v4242 = vunpack.c.0.s8 %v4241
      %v4243 = vlaneseq
      %v4244 = vshrl.u32 %v4243, 7
      %v4245 = vsub.s32 %v4242, %v4244
      %v4246 = vrot.slane %v4224, %v4245
      %v4248 = vunpack.c.l.s4 1966171168
      %v4249 = vunpack.c.0.s8 %v4248
      %v4250 = vlaneseq
      %v4251 = vshrl.u32 %v4250, 7
      %v4252 = vsub.s32 %v4249, %v4251
      %v4253 = vrot.slane %v4225, %v4252
      %v4254 = vcombine.low %v4232, %v4239
      %v4255 = vcombine.low %v4246, %v4253
      %v4257 = vunpack.c.l.s4 1966171168
      %v4258 = vunpack.c.0.s8 %v4257
      %v4259 = vlaneseq
      %v4260 = vshrl.u32 %v4259, 7
      %v4261 = vsub.s32 %v4258, %v4260
      %v4262 = vrot.slane %v4254, %v4261
      %v4264 = vunpack.c.l.s4 1966171168
      %v4265 = vunpack.c.0.s8 %v4264
      %v4266 = vlaneseq
      %v4267 = vshrl.u32 %v4266, 7
      %v4268 = vsub.s32 %v4265, %v4267
      %v4269 = vrot.slane %v4255, %v4268
      %v4270 = vcombine.low %v4262, %v4269
      %v4271 = vcombine.low %v3968, %v3976
      %v4273 = vunpack.c.l.s4 1966171168
      %v4274 = vunpack.c.0.s8 %v4273
      %v4275 = vlaneseq
      %v4276 = vshrl.u32 %v4275, 7
      %v4277 = vsub.s32 %v4274, %v4276
      %v4278 = vrot.slane %v4271, %v4277
      %v4280 = vunpack.c.l.s4 1966171168
      %v4281 = vunpack.c.0.s8 %v4280
      %v4282 = vlaneseq
      %v4283 = vshrl.u32 %v4282, 7
      %v4284 = vsub.s32 %v4281, %v4283
      %v4285 = vrot.slane %v4278, %v4284
      %v4288 = vunpack.c.l.b16 %v3085
      %v4289 = vunpack.c.l.b16 %v3086
      %v4290 = vpack.c.b16 %v4289, %v4288
      %v4293 = vsel %vm1669, %v4025, 0
      %v4296 = vsel %vm1669, %v4074, 0
      %v4299 = vsel %vm1669, %v4123, 0
      %v4302 = vsel %vm1669, %v4172, 0
      %v4305 = vsel %vm1669, %v4221, 0
      %v4308 = vsel %vm1669, %v4270, 0
      %v4311 = vsel %vm1669, %v4285, 0
      %4313 = vmatprep.subr.bf16.mxu0 0
      %4314 = vmatpush1.bf16.msra.mxu0 %v4290
      %4315 = vmatprep.subr.bf16.mxu0 0
      %4316 = vmatpush1.bf16.msra.mxu0 0
      %4317 = vmatprep.subr.bf16.mxu0 0
      %4318 = vmatpush1.bf16.msra.mxu0 0
      %4319 = vmatprep.subr.bf16.mxu0 0
      %4320 = vmatpush1.bf16.msra.mxu0 0
      %4321 = vmatprep.subr.bf16.mxu0 0
      %4322 = vmatpush1.bf16.msra.mxu0 0
      %4323 = vmatprep.subr.bf16.mxu0 0
      %4324 = vmatpush1.bf16.msra.mxu0 0
      %4325 = vmatprep.subr.bf16.mxu0 0
      %4326 = vmatpush1.bf16.msra.mxu0 0
      %4327 = vmatprep.subr.bf16.mxu0 0
      %4328 = vmatpush1.bf16.msra.mxu0 0
      %4329 = vmatprep.subr.bf16.mxu0 0
      %4330 = vmatpush1.bf16.msra.mxu0 0
      %4331 = vmatprep.subr.bf16.mxu0 0
      %4332 = vmatpush1.bf16.msra.mxu0 0
      %4333 = vmatprep.subr.bf16.mxu0 0
      %4334 = vmatpush1.bf16.msra.mxu0 0
      %4335 = vmatprep.subr.bf16.mxu0 0
      %4336 = vmatpush1.bf16.msra.mxu0 0
      %4337 = vmatprep.subr.bf16.mxu0 0
      %4338 = vmatpush1.bf16.msra.mxu0 0
      %4339 = vmatprep.subr.bf16.mxu0 0
      %4340 = vmatpush1.bf16.msra.mxu0 0
      %4341 = vmatprep.subr.bf16.mxu0 0
      %4342 = vmatpush1.bf16.msra.mxu0 0
      %4343 = vmatprep.subr.bf16.mxu0 0
      %4344 = vmatpush1.bf16.msra.mxu0 0
      %4345 = vmatprep.mubr.bf16.mxu0 0
      %4346 = vmatmul.mubr.bf16.gmra.mrb[0].mxu0 %v4293
      %v4347 = vpop.f32.mrb[0].mxu0
      %v4348 = vadd.f32 0.0, %v4347
      %v4349 = vpop.f32.mrb[0].mxu0
      %v4350 = vpop.f32.mrb[0].mxu0
      %v4351 = vadd.f32 0.0, %v4350
      %v4352 = vpop.f32.mrb[0].mxu0
      %4353 = vmatprep.mubr.bf16.mxu0 0
      %4354 = vmatmul.mubr.bf16.gmra.mrb[0].mxu0 %v4296
      %v4355 = vpop.f32.mrb[0].mxu0
      %v4356 = vadd.f32 0.0, %v4355
      %v4357 = vpop.f32.mrb[0].mxu0
      %v4358 = vpop.f32.mrb[0].mxu0
      %v4359 = vadd.f32 0.0, %v4358
      %v4360 = vpop.f32.mrb[0].mxu0
      %4361 = vmatprep.mubr.bf16.mxu0 0
      %4362 = vmatmul.mubr.bf16.gmra.mrb[0].mxu0 %v4299
      %v4363 = vpop.f32.mrb[0].mxu0
      %v4364 = vadd.f32 0.0, %v4363
      %v4365 = vpop.f32.mrb[0].mxu0
      %v4366 = vpop.f32.mrb[0].mxu0
      %v4367 = vadd.f32 0.0, %v4366
      %v4368 = vpop.f32.mrb[0].mxu0
      %4369 = vmatprep.mubr.bf16.mxu0 0
      %4370 = vmatmul.mubr.bf16.gmra.mrb[0].mxu0 %v4302
      %v4371 = vpop.f32.mrb[0].mxu0
      %v4372 = vadd.f32 0.0, %v4371
      %v4373 = vpop.f32.mrb[0].mxu0
      %v4374 = vpop.f32.mrb[0].mxu0
      %v4375 = vadd.f32 0.0, %v4374
      %v4376 = vpop.f32.mrb[0].mxu0
      %4377 = vmatprep.mubr.bf16.mxu0 0
      %4378 = vmatmul.mubr.bf16.gmra.mrb[0].mxu0 %v4305
      %v4379 = vpop.f32.mrb[0].mxu0
      %v4380 = vadd.f32 0.0, %v4379
      %v4381 = vpop.f32.mrb[0].mxu0
      %v4382 = vpop.f32.mrb[0].mxu0
      %v4383 = vadd.f32 0.0, %v4382
      %v4384 = vpop.f32.mrb[0].mxu0
      %4385 = vmatprep.mubr.bf16.mxu0 0
      %4386 = vmatmul.mubr.bf16.gmra.mrb[0].mxu0 %v4308
      %v4387 = vpop.f32.mrb[0].mxu0
      %v4388 = vadd.f32 0.0, %v4387
      %v4389 = vpop.f32.mrb[0].mxu0
      %v4390 = vpop.f32.mrb[0].mxu0
      %v4391 = vadd.f32 0.0, %v4390
      %v4392 = vpop.f32.mrb[0].mxu0
      %4393 = vmatprep.mubr.bf16.mxu0 0
      %4394 = vmatmul.mubr.bf16.gmra.mrb[0].mxu0 %v4311
      %v4395 = vpop.f32.mrb[0].mxu0
      %v4396 = vadd.f32 0.0, %v4395
      %v4397 = vpop.f32.mrb[0].mxu0
      %v4398 = vpop.f32.mrb[0].mxu0
      %v4399 = vpop.f32.mrb[0].mxu0
      %4400 = vdwg.mxu0
      %v4401 = vadd.f32 %v3051, %v4348
      %v4402 = vadd.f32 %v3052, %v4351
      %v4403 = vadd.f32 %v3053, %v4356
      %v4404 = vadd.f32 %v3054, %v4359
      %v4405 = vadd.f32 %v3055, %v4364
      %v4406 = vadd.f32 %v3056, %v4367
      %v4407 = vadd.f32 %v3057, %v4372
      %v4408 = vadd.f32 %v3058, %v4375
      %v4409 = vadd.f32 %v3059, %v4380
      %v4410 = vadd.f32 %v3060, %v4383
      %v4411 = vadd.f32 %v3061, %v4388
      %v4412 = vadd.f32 %v3062, %v4391
      %v4413 = vadd.f32 %v3063, %v4396
      %v4414 = vld [vmem:[%s251] sm:$0x1]
      %v4416 = vlaneseq
      %v4417 = vshrl.u32 %v4416, 7
      %v4418 = vsub.s32 0, %v4417
      %v4419 = vrot.slane %v4414, %v4418
      %v4421 = vadd.f32 %v4401, %v4419
      %v4422 = vadd.f32 %v4402, %v4419
      %v4423 = vadd.f32 %v4403, %v4419
      %v4424 = vadd.f32 %v4404, %v4419
      %v4425 = vadd.f32 %v4405, %v4419
      %v4426 = vadd.f32 %v4406, %v4419
      %v4427 = vadd.f32 %v4407, %v4419
      %v4428 = vadd.f32 %v4408, %v4419
      %v4429 = vadd.f32 %v4409, %v4419
      %v4430 = vadd.f32 %v4410, %v4419
      %v4431 = vadd.f32 %v4411, %v4419
      %v4432 = vadd.f32 %v4412, %v4419
      %v4433 = vadd.f32 %v4413, %v4419
      %vm4434 = vcmp.gt.f32.partialorder %v4421, 0.0
      %vm4435 = vcmp.gt.f32.partialorder %v4422, 0.0
      %vm4436 = vcmp.gt.f32.partialorder %v4423, 0.0
      %vm4437 = vcmp.gt.f32.partialorder %v4424, 0.0
      %vm4438 = vcmp.gt.f32.partialorder %v4425, 0.0
      %vm4439 = vcmp.gt.f32.partialorder %v4426, 0.0
      %vm4440 = vcmp.gt.f32.partialorder %v4427, 0.0
      %vm4441 = vcmp.gt.f32.partialorder %v4428, 0.0
      %vm4442 = vcmp.gt.f32.partialorder %v4429, 0.0
      %vm4443 = vcmp.gt.f32.partialorder %v4430, 0.0
      %vm4444 = vcmp.gt.f32.partialorder %v4431, 0.0
      %vm4445 = vcmp.gt.f32.partialorder %v4432, 0.0
      %vm4446 = vcmp.gt.f32.partialorder %v4433, 0.0
      %v4447 = vld [vmem:[%s254] sm:$0x1]
      %v4449 = vlaneseq
      %v4450 = vshrl.u32 %v4449, 7
      %v4451 = vsub.s32 0, %v4450
      %v4452 = vrot.slane %v4447, %v4451
      %v4454 = vmul.f32 %v4452, %v4421
      %v4455 = vmul.f32 %v4452, %v4422
      %v4456 = vmul.f32 %v4452, %v4423
      %v4457 = vmul.f32 %v4452, %v4424
      %v4458 = vmul.f32 %v4452, %v4425
      %v4459 = vmul.f32 %v4452, %v4426
      %v4460 = vmul.f32 %v4452, %v4427
      %v4461 = vmul.f32 %v4452, %v4428
      %v4462 = vmul.f32 %v4452, %v4429
      %v4463 = vmul.f32 %v4452, %v4430
      %v4464 = vmul.f32 %v4452, %v4431
      %v4465 = vmul.f32 %v4452, %v4432
      %v4466 = vmul.f32 %v4452, %v4433
      %v4467 = vsel %vm4434, %v4421, %v4454
      %v4468 = vsel %vm4435, %v4422, %v4455
      %v4469 = vsel %vm4436, %v4423, %v4456
      %v4470 = vsel %vm4437, %v4424, %v4457
      %v4471 = vsel %vm4438, %v4425, %v4458
      %v4472 = vsel %vm4439, %v4426, %v4459
      %v4473 = vsel %vm4440, %v4427, %v4460
      %v4474 = vsel %vm4441, %v4428, %v4461
      %v4475 = vsel %vm4442, %v4429, %v4462
      %v4476 = vsel %vm4443, %v4430, %v4463
      %v4477 = vsel %vm4444, %v4431, %v4464
      %v4478 = vsel %vm4445, %v4432, %v4465
      %v4479 = vsel %vm4446, %v4433, %v4466
      %v4493 = vcombine.high %v4467, %v4467
      %v4495 = vunpack.c.l.s4 1983009808
      %v4496 = vunpack.c.0.s8 %v4495
      %v4497 = vlaneseq
      %v4498 = vshrl.u32 %v4497, 7
      %v4499 = vsub.s32 %v4496, %v4498
      %v4500 = vrot.slane %v4467, %v4499
      %v4502 = vunpack.c.l.s4 1983009808
      %v4503 = vunpack.c.0.s8 %v4502
      %v4504 = vlaneseq
      %v4505 = vshrl.u32 %v4504, 7
      %v4506 = vsub.s32 %v4503, %v4505
      %v4507 = vrot.slane %v4493, %v4506
      %v4508 = vcombine.high %v4500, %v4500
      %v4509 = vcombine.high %v4507, %v4507
      %v4510 = vcombine.high %v4468, %v4468
      %v4512 = vunpack.c.l.s4 1983009808
      %v4513 = vunpack.c.0.s8 %v4512
      %v4514 = vlaneseq
      %v4515 = vshrl.u32 %v4514, 7
      %v4516 = vsub.s32 %v4513, %v4515
      %v4517 = vrot.slane %v4468, %v4516
      %v4519 = vunpack.c.l.s4 1983009808
      %v4520 = vunpack.c.0.s8 %v4519
      %v4521 = vlaneseq
      %v4522 = vshrl.u32 %v4521, 7
      %v4523 = vsub.s32 %v4520, %v4522
      %v4524 = vrot.slane %v4510, %v4523
      %v4525 = vcombine.high %v4517, %v4517
      %v4526 = vcombine.high %v4524, %v4524
      %v4527 = vcombine.high %v4469, %v4469
      %v4529 = vunpack.c.l.s4 1983009808
      %v4530 = vunpack.c.0.s8 %v4529
      %v4531 = vlaneseq
      %v4532 = vshrl.u32 %v4531, 7
      %v4533 = vsub.s32 %v4530, %v4532
      %v4534 = vrot.slane %v4469, %v4533
      %v4536 = vunpack.c.l.s4 1983009808
      %v4537 = vunpack.c.0.s8 %v4536
      %v4538 = vlaneseq
      %v4539 = vshrl.u32 %v4538, 7
      %v4540 = vsub.s32 %v4537, %v4539
      %v4541 = vrot.slane %v4527, %v4540
      %v4542 = vcombine.high %v4534, %v4534
      %v4543 = vcombine.high %v4541, %v4541
      %v4544 = vcombine.high %v4470, %v4470
      %v4546 = vunpack.c.l.s4 1983009808
      %v4547 = vunpack.c.0.s8 %v4546
      %v4548 = vlaneseq
      %v4549 = vshrl.u32 %v4548, 7
      %v4550 = vsub.s32 %v4547, %v4549
      %v4551 = vrot.slane %v4470, %v4550
      %v4553 = vunpack.c.l.s4 1983009808
      %v4554 = vunpack.c.0.s8 %v4553
      %v4555 = vlaneseq
      %v4556 = vshrl.u32 %v4555, 7
      %v4557 = vsub.s32 %v4554, %v4556
      %v4558 = vrot.slane %v4544, %v4557
      %v4559 = vcombine.high %v4551, %v4551
      %v4560 = vcombine.high %v4558, %v4558
      %v4561 = vcombine.high %v4471, %v4471
      %v4563 = vunpack.c.l.s4 1983009808
      %v4564 = vunpack.c.0.s8 %v4563
      %v4565 = vlaneseq
      %v4566 = vshrl.u32 %v4565, 7
      %v4567 = vsub.s32 %v4564, %v4566
      %v4568 = vrot.slane %v4471, %v4567
      %v4570 = vunpack.c.l.s4 1983009808
      %v4571 = vunpack.c.0.s8 %v4570
      %v4572 = vlaneseq
      %v4573 = vshrl.u32 %v4572, 7
      %v4574 = vsub.s32 %v4571, %v4573
      %v4575 = vrot.slane %v4561, %v4574
      %v4576 = vcombine.high %v4568, %v4568
      %v4577 = vcombine.high %v4575, %v4575
      %v4578 = vcombine.high %v4472, %v4472
      %v4580 = vunpack.c.l.s4 1983009808
      %v4581 = vunpack.c.0.s8 %v4580
      %v4582 = vlaneseq
      %v4583 = vshrl.u32 %v4582, 7
      %v4584 = vsub.s32 %v4581, %v4583
      %v4585 = vrot.slane %v4472, %v4584
      %v4587 = vunpack.c.l.s4 1983009808
      %v4588 = vunpack.c.0.s8 %v4587
      %v4589 = vlaneseq
      %v4590 = vshrl.u32 %v4589, 7
      %v4591 = vsub.s32 %v4588, %v4590
      %v4592 = vrot.slane %v4578, %v4591
      %v4593 = vcombine.high %v4585, %v4585
      %v4594 = vcombine.high %v4592, %v4592
      %v4595 = vcombine.high %v4473, %v4473
      %v4597 = vunpack.c.l.s4 1983009808
      %v4598 = vunpack.c.0.s8 %v4597
      %v4599 = vlaneseq
      %v4600 = vshrl.u32 %v4599, 7
      %v4601 = vsub.s32 %v4598, %v4600
      %v4602 = vrot.slane %v4473, %v4601
      %v4604 = vunpack.c.l.s4 1983009808
      %v4605 = vunpack.c.0.s8 %v4604
      %v4606 = vlaneseq
      %v4607 = vshrl.u32 %v4606, 7
      %v4608 = vsub.s32 %v4605, %v4607
      %v4609 = vrot.slane %v4595, %v4608
      %v4610 = vcombine.high %v4602, %v4602
      %v4611 = vcombine.high %v4609, %v4609
      %v4612 = vcombine.high %v4474, %v4474
      %v4614 = vunpack.c.l.s4 1983009808
      %v4615 = vunpack.c.0.s8 %v4614
      %v4616 = vlaneseq
      %v4617 = vshrl.u32 %v4616, 7
      %v4618 = vsub.s32 %v4615, %v4617
      %v4619 = vrot.slane %v4474, %v4618
      %v4621 = vunpack.c.l.s4 1983009808
      %v4622 = vunpack.c.0.s8 %v4621
      %v4623 = vlaneseq
      %v4624 = vshrl.u32 %v4623, 7
      %v4625 = vsub.s32 %v4622, %v4624
      %v4626 = vrot.slane %v4612, %v4625
      %v4627 = vcombine.high %v4619, %v4619
      %v4628 = vcombine.high %v4626, %v4626
      %v4629 = vcombine.high %v4475, %v4475
      %v4631 = vunpack.c.l.s4 1983009808
      %v4632 = vunpack.c.0.s8 %v4631
      %v4633 = vlaneseq
      %v4634 = vshrl.u32 %v4633, 7
      %v4635 = vsub.s32 %v4632, %v4634
      %v4636 = vrot.slane %v4475, %v4635
      %v4638 = vunpack.c.l.s4 1983009808
      %v4639 = vunpack.c.0.s8 %v4638
      %v4640 = vlaneseq
      %v4641 = vshrl.u32 %v4640, 7
      %v4642 = vsub.s32 %v4639, %v4641
      %v4643 = vrot.slane %v4629, %v4642
      %v4644 = vcombine.high %v4636, %v4636
      %v4645 = vcombine.high %v4643, %v4643
      %v4646 = vcombine.high %v4476, %v4476
      %v4648 = vunpack.c.l.s4 1983009808
      %v4649 = vunpack.c.0.s8 %v4648
      %v4650 = vlaneseq
      %v4651 = vshrl.u32 %v4650, 7
      %v4652 = vsub.s32 %v4649, %v4651
      %v4653 = vrot.slane %v4476, %v4652
      %v4655 = vunpack.c.l.s4 1983009808
      %v4656 = vunpack.c.0.s8 %v4655
      %v4657 = vlaneseq
      %v4658 = vshrl.u32 %v4657, 7
      %v4659 = vsub.s32 %v4656, %v4658
      %v4660 = vrot.slane %v4646, %v4659
      %v4661 = vcombine.high %v4653, %v4653
      %v4662 = vcombine.high %v4660, %v4660
      %v4663 = vcombine.high %v4477, %v4477
      %v4665 = vunpack.c.l.s4 1983009808
      %v4666 = vunpack.c.0.s8 %v4665
      %v4667 = vlaneseq
      %v4668 = vshrl.u32 %v4667, 7
      %v4669 = vsub.s32 %v4666, %v4668
      %v4670 = vrot.slane %v4477, %v4669
      %v4672 = vunpack.c.l.s4 1983009808
      %v4673 = vunpack.c.0.s8 %v4672
      %v4674 = vlaneseq
      %v4675 = vshrl.u32 %v4674, 7
      %v4676 = vsub.s32 %v4673, %v4675
      %v4677 = vrot.slane %v4663, %v4676
      %v4678 = vcombine.high %v4670, %v4670
      %v4679 = vcombine.high %v4677, %v4677
      %v4680 = vcombine.high %v4478, %v4478
      %v4682 = vunpack.c.l.s4 1983009808
      %v4683 = vunpack.c.0.s8 %v4682
      %v4684 = vlaneseq
      %v4685 = vshrl.u32 %v4684, 7
      %v4686 = vsub.s32 %v4683, %v4685
      %v4687 = vrot.slane %v4478, %v4686
      %v4689 = vunpack.c.l.s4 1983009808
      %v4690 = vunpack.c.0.s8 %v4689
      %v4691 = vlaneseq
      %v4692 = vshrl.u32 %v4691, 7
      %v4693 = vsub.s32 %v4690, %v4692
      %v4694 = vrot.slane %v4680, %v4693
      %v4695 = vcombine.high %v4687, %v4687
      %v4696 = vcombine.high %v4694, %v4694
      %v4698 = vunpack.c.l.s4 1983009808
      %v4699 = vunpack.c.0.s8 %v4698
      %v4700 = vlaneseq
      %v4701 = vshrl.u32 %v4700, 7
      %v4702 = vsub.s32 %v4699, %v4701
      %v4703 = vrot.slane %v4479, %v4702
      %v4704 = vcombine.high %v4703, %v4703
      %v4705 = vlaneseq
      %v4706 = vshrl.u32 %v4705, 7
      %v4707 = vadd.s32 %v4706, 8
      %v4708 = vsub.s32 %v4706, 1
      %v4709 = vsub.s32 %v4707, 1
      %vm4710 = vcmp.ge.s32.totalorder %v4708, 0
      %vm4711 = vcmp.ge.s32.totalorder %v4709, 0
      %vm4712 = vmand 0, %vm4710
      %vm4713 = vmand 0, %vm4711
      %vm4714 = vmand 1, %vm4710
      %vm4715 = vmand 1, %vm4711
      %vm4716 = vcmp.lt.s32.totalorder %v4708, 8
      %vm4717 = vcmp.lt.s32.totalorder %v4709, 8
      %vm4718 = vmand %vm4712, %vm4716
      %vm4719 = vmand %vm4713, %vm4717
      %vm4720 = vmand %vm4714, %vm4716
      %vm4721 = vmand %vm4715, %vm4717
      %v4722 = vsel %vm4718, 1, 0
      %v4723 = vsel %vm4719, 1, 0
      %v4724 = vsel %vm4720, 1, 0
      %v4725 = vsel %vm4721, 1, 0
      %vm4726 = vcmp.eq.s32.totalorder %v4722, 1
      %vm4727 = vcmp.eq.s32.totalorder %v4723, 1
      %vm4728 = vcmp.eq.s32.totalorder %v4724, 1
      %vm4729 = vcmp.eq.s32.totalorder %v4725, 1
      %v4730 = vcombine.low %v4500, %v4508
      %v4731 = vcombine.low %v4507, %v4509
      %v4733 = vunpack.c.l.s4 1983009808
      %v4734 = vunpack.c.0.s8 %v4733
      %v4735 = vlaneseq
      %v4736 = vshrl.u32 %v4735, 7
      %v4737 = vsub.s32 %v4734, %v4736
      %v4738 = vrot.slane %v4730, %v4737
      %v4740 = vunpack.c.l.s4 1983009808
      %v4741 = vunpack.c.0.s8 %v4740
      %v4742 = vlaneseq
      %v4743 = vshrl.u32 %v4742, 7
      %v4744 = vsub.s32 %v4741, %v4743
      %v4745 = vrot.slane %v4731, %v4744
      %v4746 = vcombine.low %v4738, %v4745
      %v4748 = vunpack.c.l.s4 1983009808
      %v4749 = vunpack.c.0.s8 %v4748
      %v4750 = vlaneseq
      %v4751 = vshrl.u32 %v4750, 7
      %v4752 = vsub.s32 %v4749, %v4751
      %v4753 = vrot.slane %v4517, %v4752
      %v4754 = vcombine.low %v4525, %v4524
      %v4755 = vcombine.low %v4526, %v4534
      %v4757 = vunpack.c.l.s4 1983009808
      %v4758 = vunpack.c.0.s8 %v4757
      %v4759 = vlaneseq
      %v4760 = vshrl.u32 %v4759, 7
      %v4761 = vsub.s32 %v4758, %v4760
      %v4762 = vrot.slane %v4754, %v4761
      %v4764 = vunpack.c.l.s4 1983009808
      %v4765 = vunpack.c.0.s8 %v4764
      %v4766 = vlaneseq
      %v4767 = vshrl.u32 %v4766, 7
      %v4768 = vsub.s32 %v4765, %v4767
      %v4769 = vrot.slane %v4755, %v4768
      %v4770 = vcombine.low %v4762, %v4769
      %v4772 = vunpack.c.l.s4 1983009808
      %v4773 = vunpack.c.0.s8 %v4772
      %v4774 = vlaneseq
      %v4775 = vshrl.u32 %v4774, 7
      %v4776 = vsub.s32 %v4773, %v4775
      %v4777 = vrot.slane %v4542, %v4776
      %v4778 = vcombine.low %v4541, %v4543
      %v4779 = vcombine.low %v4551, %v4559
      %v4781 = vunpack.c.l.s4 1983009808
      %v4782 = vunpack.c.0.s8 %v4781
      %v4783 = vlaneseq
      %v4784 = vshrl.u32 %v4783, 7
      %v4785 = vsub.s32 %v4782, %v4784
      %v4786 = vrot.slane %v4778, %v4785
      %v4788 = vunpack.c.l.s4 1983009808
      %v4789 = vunpack.c.0.s8 %v4788
      %v4790 = vlaneseq
      %v4791 = vshrl.u32 %v4790, 7
      %v4792 = vsub.s32 %v4789, %v4791
      %v4793 = vrot.slane %v4779, %v4792
      %v4794 = vcombine.low %v4786, %v4793
      %v4796 = vunpack.c.l.s4 1983009808
      %v4797 = vunpack.c.0.s8 %v4796
      %v4798 = vlaneseq
      %v4799 = vshrl.u32 %v4798, 7
      %v4800 = vsub.s32 %v4797, %v4799
      %v4801 = vrot.slane %v4558, %v4800
      %v4802 = vcombine.low %v4560, %v4568
      %v4803 = vcombine.low %v4576, %v4575
      %v4805 = vunpack.c.l.s4 1983009808
      %v4806 = vunpack.c.0.s8 %v4805
      %v4807 = vlaneseq
      %v4808 = vshrl.u32 %v4807, 7
      %v4809 = vsub.s32 %v4806, %v4808
      %v4810 = vrot.slane %v4802, %v4809
      %v4812 = vunpack.c.l.s4 1983009808
      %v4813 = vunpack.c.0.s8 %v4812
      %v4814 = vlaneseq
      %v4815 = vshrl.u32 %v4814, 7
      %v4816 = vsub.s32 %v4813, %v4815
      %v4817 = vrot.slane %v4803, %v4816
      %v4818 = vcombine.low %v4810, %v4817
      %v4820 = vunpack.c.l.s4 1983009808
      %v4821 = vunpack.c.0.s8 %v4820
      %v4822 = vlaneseq
      %v4823 = vshrl.u32 %v4822, 7
      %v4824 = vsub.s32 %v4821, %v4823
      %v4825 = vrot.slane %v4577, %v4824
      %v4826 = vcombine.low %v4585, %v4593
      %v4827 = vcombine.low %v4592, %v4594
      %v4829 = vunpack.c.l.s4 1983009808
      %v4830 = vunpack.c.0.s8 %v4829
      %v4831 = vlaneseq
      %v4832 = vshrl.u32 %v4831, 7
      %v4833 = vsub.s32 %v4830, %v4832
      %v4834 = vrot.slane %v4826, %v4833
      %v4836 = vunpack.c.l.s4 1983009808
      %v4837 = vunpack.c.0.s8 %v4836
      %v4838 = vlaneseq
      %v4839 = vshrl.u32 %v4838, 7
      %v4840 = vsub.s32 %v4837, %v4839
      %v4841 = vrot.slane %v4827, %v4840
      %v4842 = vcombine.low %v4834, %v4841
      %v4844 = vunpack.c.l.s4 1983009808
      %v4845 = vunpack.c.0.s8 %v4844
      %v4846 = vlaneseq
      %v4847 = vshrl.u32 %v4846, 7
      %v4848 = vsub.s32 %v4845, %v4847
      %v4849 = vrot.slane %v4602, %v4848
      %v4850 = vcombine.low %v4610, %v4609
      %v4851 = vcombine.low %v4611, %v4619
      %v4853 = vunpack.c.l.s4 1983009808
      %v4854 = vunpack.c.0.s8 %v4853
      %v4855 = vlaneseq
      %v4856 = vshrl.u32 %v4855, 7
      %v4857 = vsub.s32 %v4854, %v4856
      %v4858 = vrot.slane %v4850, %v4857
      %v4860 = vunpack.c.l.s4 1983009808
      %v4861 = vunpack.c.0.s8 %v4860
      %v4862 = vlaneseq
      %v4863 = vshrl.u32 %v4862, 7
      %v4864 = vsub.s32 %v4861, %v4863
      %v4865 = vrot.slane %v4851, %v4864
      %v4866 = vcombine.low %v4858, %v4865
      %v4868 = vunpack.c.l.s4 1983009808
      %v4869 = vunpack.c.0.s8 %v4868
      %v4870 = vlaneseq
      %v4871 = vshrl.u32 %v4870, 7
      %v4872 = vsub.s32 %v4869, %v4871
      %v4873 = vrot.slane %v4627, %v4872
      %v4874 = vcombine.low %v4626, %v4628
      %v4875 = vcombine.low %v4636, %v4644
      %v4877 = vunpack.c.l.s4 1983009808
      %v4878 = vunpack.c.0.s8 %v4877
      %v4879 = vlaneseq
      %v4880 = vshrl.u32 %v4879, 7
      %v4881 = vsub.s32 %v4878, %v4880
      %v4882 = vrot.slane %v4874, %v4881
      %v4884 = vunpack.c.l.s4 1983009808
      %v4885 = vunpack.c.0.s8 %v4884
      %v4886 = vlaneseq
      %v4887 = vshrl.u32 %v4886, 7
      %v4888 = vsub.s32 %v4885, %v4887
      %v4889 = vrot.slane %v4875, %v4888
      %v4890 = vcombine.low %v4882, %v4889
      %v4892 = vunpack.c.l.s4 1983009808
      %v4893 = vunpack.c.0.s8 %v4892
      %v4894 = vlaneseq
      %v4895 = vshrl.u32 %v4894, 7
      %v4896 = vsub.s32 %v4893, %v4895
      %v4897 = vrot.slane %v4643, %v4896
      %v4898 = vcombine.low %v4645, %v4653
      %v4899 = vcombine.low %v4661, %v4660
      %v4901 = vunpack.c.l.s4 1983009808
      %v4902 = vunpack.c.0.s8 %v4901
      %v4903 = vlaneseq
      %v4904 = vshrl.u32 %v4903, 7
      %v4905 = vsub.s32 %v4902, %v4904
      %v4906 = vrot.slane %v4898, %v4905
      %v4908 = vunpack.c.l.s4 1983009808
      %v4909 = vunpack.c.0.s8 %v4908
      %v4910 = vlaneseq
      %v4911 = vshrl.u32 %v4910, 7
      %v4912 = vsub.s32 %v4909, %v4911
      %v4913 = vrot.slane %v4899, %v4912
      %v4914 = vcombine.low %v4906, %v4913
      %v4916 = vunpack.c.l.s4 1983009808
      %v4917 = vunpack.c.0.s8 %v4916
      %v4918 = vlaneseq
      %v4919 = vshrl.u32 %v4918, 7
      %v4920 = vsub.s32 %v4917, %v4919
      %v4921 = vrot.slane %v4662, %v4920
      %v4922 = vcombine.low %v4670, %v4678
      %v4923 = vcombine.low %v4677, %v4679
      %v4925 = vunpack.c.l.s4 1983009808
      %v4926 = vunpack.c.0.s8 %v4925
      %v4927 = vlaneseq
      %v4928 = vshrl.u32 %v4927, 7
      %v4929 = vsub.s32 %v4926, %v4928
      %v4930 = vrot.slane %v4922, %v4929
      %v4932 = vunpack.c.l.s4 1983009808
      %v4933 = vunpack.c.0.s8 %v4932
      %v4934 = vlaneseq
      %v4935 = vshrl.u32 %v4934, 7
      %v4936 = vsub.s32 %v4933, %v4935
      %v4937 = vrot.slane %v4923, %v4936
      %v4938 = vcombine.low %v4930, %v4937
      %v4940 = vunpack.c.l.s4 1983009808
      %v4941 = vunpack.c.0.s8 %v4940
      %v4942 = vlaneseq
      %v4943 = vshrl.u32 %v4942, 7
      %v4944 = vsub.s32 %v4941, %v4943
      %v4945 = vrot.slane %v4687, %v4944
      %v4946 = vcombine.low %v4695, %v4694
      %v4947 = vcombine.low %v4696, %v4703
      %v4949 = vunpack.c.l.s4 1983009808
      %v4950 = vunpack.c.0.s8 %v4949
      %v4951 = vlaneseq
      %v4952 = vshrl.u32 %v4951, 7
      %v4953 = vsub.s32 %v4950, %v4952
      %v4954 = vrot.slane %v4946, %v4953
      %v4956 = vunpack.c.l.s4 1983009808
      %v4957 = vunpack.c.0.s8 %v4956
      %v4958 = vlaneseq
      %v4959 = vshrl.u32 %v4958, 7
      %v4960 = vsub.s32 %v4957, %v4959
      %v4961 = vrot.slane %v4947, %v4960
      %v4962 = vcombine.low %v4954, %v4961
      %v4964 = vunpack.c.l.s4 1983009808
      %v4965 = vunpack.c.0.s8 %v4964
      %v4966 = vlaneseq
      %v4967 = vshrl.u32 %v4966, 7
      %v4968 = vsub.s32 %v4965, %v4967
      %v4969 = vrot.slane %v4704, %v4968
      %v4990 = vsel %vm4726, %v4746, 0.0
      %v4991 = vsel %vm4727, %v4753, 0.0
      %v4992 = vsel %vm4728, %v4770, 0.0
      %v4993 = vsel %vm4729, %v4777, 0.0
      %v4994 = vsel %vm4728, %v4794, 0.0
      %v4995 = vsel %vm4729, %v4801, 0.0
      %v4996 = vsel %vm4728, %v4818, 0.0
      %v4997 = vsel %vm4729, %v4825, 0.0
      %v4998 = vsel %vm4728, %v4842, 0.0
      %v4999 = vsel %vm4729, %v4849, 0.0
      %v5000 = vsel %vm4728, %v4866, 0.0
      %v5001 = vsel %vm4729, %v4873, 0.0
      %v5002 = vsel %vm4728, %v4890, 0.0
      %v5003 = vsel %vm4729, %v4897, 0.0
      %v5004 = vsel %vm4728, %v4914, 0.0
      %v5005 = vsel %vm4729, %v4921, 0.0
      %v5006 = vsel %vm4728, %v4938, 0.0
      %v5007 = vsel %vm4729, %v4945, 0.0
      %v5008 = vsel %vm4726, %v4962, 0.0
      %v5009 = vsel %vm4727, %v4969, 0.0
      %v5010 = vpack.c.bf16 %v4991, %v4990
      %v5011 = vpack.c.bf16 %v4993, %v4992
      %v5012 = vpack.c.bf16 %v4995, %v4994
      %v5013 = vpack.c.bf16 %v4997, %v4996
      %v5014 = vpack.c.bf16 %v4999, %v4998
      %v5015 = vpack.c.bf16 %v5001, %v5000
      %v5016 = vpack.c.bf16 %v5003, %v5002
      %v5017 = vpack.c.bf16 %v5005, %v5004
      %v5018 = vpack.c.bf16 %v5007, %v5006
      %v5019 = vpack.c.bf16 %v5009, %v5008
      %v5030 = vunpack.c.l.b16 %v5010
      %v5031 = vunpack.c.h.b16 %v5010
      %v5032 = vunpack.c.l.b16 %v5011
      %v5033 = vunpack.c.h.b16 %v5011
      %v5034 = vunpack.c.l.b16 %v5012
      %v5035 = vunpack.c.h.b16 %v5012
      %v5036 = vunpack.c.l.b16 %v5013
      %v5037 = vunpack.c.h.b16 %v5013
      %v5038 = vunpack.c.l.b16 %v5014
      %v5039 = vunpack.c.h.b16 %v5014
      %v5040 = vunpack.c.l.b16 %v5015
      %v5041 = vunpack.c.h.b16 %v5015
      %v5042 = vunpack.c.l.b16 %v5016
      %v5043 = vunpack.c.h.b16 %v5016
      %v5044 = vunpack.c.l.b16 %v5017
      %v5045 = vunpack.c.h.b16 %v5017
      %v5046 = vunpack.c.l.b16 %v5018
      %v5047 = vunpack.c.h.b16 %v5018
      %v5048 = vunpack.c.l.b16 %v5019
      %v5049 = vunpack.c.h.b16 %v5019
      %v5050 = vpack.c.b16 %v5030, %v5030
      %v5051 = vpack.c.b16 %v5031, %v5031
      %v5052 = vpack.c.b16 %v5032, %v5032
      %v5053 = vpack.c.b16 %v5033, %v5033
      %v5054 = vpack.c.b16 %v5034, %v5034
      %v5055 = vpack.c.b16 %v5035, %v5035
      %v5056 = vpack.c.b16 %v5036, %v5036
      %v5057 = vpack.c.b16 %v5037, %v5037
      %v5058 = vpack.c.b16 %v5038, %v5038
      %v5059 = vpack.c.b16 %v5039, %v5039
      %v5060 = vpack.c.b16 %v5040, %v5040
      %v5061 = vpack.c.b16 %v5041, %v5041
      %v5062 = vpack.c.b16 %v5042, %v5042
      %v5063 = vpack.c.b16 %v5043, %v5043
      %v5064 = vpack.c.b16 %v5044, %v5044
      %v5065 = vpack.c.b16 %v5045, %v5045
      %v5066 = vpack.c.b16 %v5046, %v5046
      %v5067 = vpack.c.b16 %v5047, %v5047
      %v5068 = vpack.c.b16 %v5048, %v5048
      %v5069 = vpack.c.b16 %v5049, %v5049
      %vm5090 = vcmask 60416
      %5091 = vst.msk [vmem:[%s262] sm:$0xf] %vm5090, %v5050
      %vm5092 = vcmask 57344
      %5093 = vst.msk [vmem:[%s262 + $0x4] sm:$0x1] %vm5092, %v5051
      %5094 = vst.msk [vmem:[%s262 + $0x8] sm:$0xf] %vm5090, %v5052
      %5095 = vst.msk [vmem:[%s262 + $0xc] sm:$0x1] %vm5092, %v5053
      %5096 = vst.msk [vmem:[%s262 + $0x10] sm:$0xf] %vm5090, %v5054
      %5097 = vst.msk [vmem:[%s262 + $0x14] sm:$0x1] %vm5092, %v5055
      %5098 = vst.msk [vmem:[%s262 + $0x18] sm:$0xf] %vm5090, %v5056
      %5099 = vst.msk [vmem:[%s262 + $0x1c] sm:$0x1] %vm5092, %v5057
      %5100 = vst.msk [vmem:[%s262 + $0x20] sm:$0xf] %vm5090, %v5058
      %5101 = vst.msk [vmem:[%s262 + $0x24] sm:$0x1] %vm5092, %v5059
      %5102 = vst.msk [vmem:[%s262 + $0x28] sm:$0xf] %vm5090, %v5060
      %5103 = vst.msk [vmem:[%s262 + $0x2c] sm:$0x1] %vm5092, %v5061
      %5104 = vst.msk [vmem:[%s262 + $0x30] sm:$0xf] %vm5090, %v5062
      %5105 = vst.msk [vmem:[%s262 + $0x34] sm:$0x1] %vm5092, %v5063
      %5106 = vst.msk [vmem:[%s262 + $0x38] sm:$0xf] %vm5090, %v5064
      %5107 = vst.msk [vmem:[%s262 + $0x3c] sm:$0x1] %vm5092, %v5065
      %5108 = vst.msk [vmem:[%s262 + $0x40] sm:$0xf] %vm5090, %v5066
      %5109 = vst.msk [vmem:[%s262 + $0x44] sm:$0x1] %vm5092, %v5067
      %5110 = vst.msk [vmem:[%s262 + $0x48] sm:$0xf] %vm5090, %v5068
      %5111 = vst.msk [vmem:[%s262 + $0x4c] sm:$0x1] %vm5092, %v5069
      %p5112 = scmp.lt.s32.totalorder %s19, 1
      %s5113 = scalar_select %p5112, %s19, 1
      %p5114 = scmp.lt.s32.totalorder %s20, 0
      %s5115 = scalar_select %p5114, %s20, 0
      %s5116 = smul.addr %s5113, 20
      %s5117 = sadd.s32 %s5115, %s5116
      %s5118 = smul.addr %s5117, 4
      %s5119 = scalar_lea.vmem %s4, %s5118
      // Predicated region
      $region37: #{conv2_forward.2} parent=35 // pred_check
        %p5120 = pneg %p151
      $region38: #{conv2_forward.2} parent=35 // pred_check_branch
        %5122 = sbr.rel (%p5120) target = $region40
      $region39: #{conv2_forward.2} parent=35 // pred_region
        _
      $region40: #{conv2_forward.2} parent=35 // pred_fallthru
        _
    $region36: #{conv2_forward.2} parent=5 // pred_fallthru
      _
    %p5123 = scmp.le.s32.totalorder 2, %s10
    // Predicated region
    $region41: #{conv2_forward.2} parent=5 // pred_check
      %p5124 = pneg %p5123
    $region42: #{conv2_forward.2} parent=5 // pred_check_branch
      %5126 = sbr.rel (%p5124) target = $region44
    $region43: #{conv2_forward.2} parent=5 // pred_region
      %s5127 = ssub.s32 %s10, 2
      // Predicated region
      $region45: #{conv2_forward.2} parent=43 // pred_check
        %p5128 = pneg %p157
      $region46: #{conv2_forward.2} parent=43 // pred_check_branch
        %5130 = sbr.rel (%p5128) target = $region48
      $region47: #{conv2_forward.2} parent=43 // pred_region
        %p5131 = scmp.lt.s32.totalorder %s21, 1
        %s5132 = scalar_select %p5131, %s21, 1
        %p5133 = scmp.lt.s32.totalorder %s22, 0
        %s5134 = scalar_select %p5133, %s22, 0
        %s5135 = smul.addr %s5132, 20
        %s5136 = sadd.s32 %s5134, %s5135
        %s5137 = smul.addr %s5136, 4
        %s5138 = scalar_lea.vmem %s4, %s5137
      $region48: #{conv2_forward.2} parent=43 // pred_fallthru
        _
    $region44: #{conv2_forward.2} parent=5 // pred_fallthru
      _
  $region6: #{conv2_forward.2} parent=0 // loop_footer
    %s14 = sadd.s32 1, %s10
  $region7: #{conv2_forward.2} parent=0 // loop_footer_branch
    %9 = sbr.rel target = $region3
  $region8: #{conv2_forward.2} parent=0 // loop_exit
    _

</llo_original>
